<compile_context>
chip_gen: v7x
topology: tpu7x:2x2x1
jax: 0.10.0
libtpu: 0.0.40
codegen_flags: <defaults>
</compile_context>

<pallas_src>
import functools

import jax
import jax.numpy as jnp
from jax import lax
from jax.experimental import pallas as pl
from jax.experimental.pallas import tpu as pltpu

# ---- model constants (small, consistent with the module) ----
BLOCK_SIZE = 8       # max sequence length T
N_EMBED = 32         # n_embed
N_HEAD = 4           # n_head
N_LAYER = 2          # number of transformer blocks
VOCAB_SIZE = 32
HIDDEN = 4 * N_EMBED
V_PAD = 128          # lm_head output padded to a full 128-lane width
LN_EPS = 1e-5        # torch.nn.LayerNorm default
NEG_INF = -1e30      # finite "minus infinity" for the causal mask


def _layernorm(x, gamma, beta):
    # x: (M, C); gamma/beta: (1, C)
    mean = jnp.mean(x, axis=-1, keepdims=True)
    var = jnp.mean((x - mean) ** 2, axis=-1, keepdims=True)
    return (x - mean) * lax.rsqrt(var + LN_EPS) * gamma + beta


# ----------------------------------------------------------------------------
# Fully fused forward kernel (single invocation, no grid).
# ----------------------------------------------------------------------------
def gpt_kernel(idx_ref, tok_ref, pos_ref, mask_ref, wqkv_ref, wproj_ref,
               w1_ref, b1_ref, w2_ref, vecs_ref, lnf_ref, wlm_ref, blm_ref,
               o_ref, *, B, T):
    C = N_EMBED
    H = N_HEAD
    hs = C // H
    BT = B * T

    # ---- token embedding gather (one-hot matmul) + positional embedding ----
    idx = idx_ref[...]                                              # (BT, 1) int32
    onehot = (idx == lax.broadcasted_iota(jnp.int32, (BT, VOCAB_SIZE), 1)
              ).astype(jnp.float32)                                 # (BT, V)
    x = jnp.dot(onehot, tok_ref[...],
                preferred_element_type=jnp.float32)                 # (BT, C)
    x = x + pos_ref[...]                                            # pos pre-tiled to (BT, C)

    # Precomputed additive mask: 0 where attending is allowed (same batch,
    # causal), NEG_INF elsewhere.  Shape (BT, BT).
    mask_bias = mask_ref[...]

    # NOTE: the reference multiplies by sqrt(head_size), it does NOT divide.
    scale = float(hs) ** 0.5

    for l in range(N_LAYER):                                        # unrolled
        wproj_l = wproj_ref[l]                                      # (C, C)
        vecs_l = vecs_ref[l]                                        # (6, C)
        bproj = vecs_l[0:1]
        b2 = vecs_l[1:2]
        ln1_g, ln1_b = vecs_l[2:3], vecs_l[3:4]
        ln2_g, ln2_b = vecs_l[4:5], vecs_l[5:6]

        # --- multi-head causal self-attention (fused QKV matmul) ---
        qkv = jnp.dot(x, wqkv_ref[l],
                      preferred_element_type=jnp.float32)           # (BT, 3C)
        sa = jnp.zeros((BT, C), jnp.float32)
        for h in range(H):                                          # unrolled
            q = qkv[:, h * hs:(h + 1) * hs]                         # (BT, hs)
            k = qkv[:, C + h * hs:C + (h + 1) * hs]                 # (BT, hs)
            v = qkv[:, 2 * C + h * hs:2 * C + (h + 1) * hs]         # (BT, hs)

            # q @ k^T over the flattened batch*time axis (plain 2-D matmul).
            s = lax.dot_general(q, k, (((1,), (1,)), ((), ())),
                                preferred_element_type=jnp.float32)  # (BT, BT)
            s = s * scale + mask_bias
            m = jnp.max(s, axis=-1, keepdims=True)
            e = jnp.exp(s - m)
            p = e * pl.reciprocal(jnp.sum(e, axis=-1, keepdims=True),
                                  approx=True)
            ctx = jnp.dot(p, v, preferred_element_type=jnp.float32)  # (BT, hs)
            # accumulate this head's slice of the output projection
            # (avoids a cross-lane concatenate of head outputs).
            sa = sa + jnp.dot(ctx, wproj_l[h * hs:(h + 1) * hs, :],
                              preferred_element_type=jnp.float32)
        sa = sa + bproj

        # post-norm residual (exactly as in the reference Block.forward)
        x = _layernorm(x + sa, ln1_g, ln1_b)

        # --- feed-forward ---
        h1 = jnp.dot(x, w1_ref[l],
                     preferred_element_type=jnp.float32) + b1_ref[l]
        h1 = jnp.maximum(h1, 0.0)
        ff = jnp.dot(h1, w2_ref[l],
                     preferred_element_type=jnp.float32) + b2

        x = _layernorm(x + ff, ln2_g, ln2_b)

    # ---- final LayerNorm + lm_head (lane-padded to V_PAD) ----
    x = _layernorm(x, lnf_ref[0:1, :], lnf_ref[1:2, :])
    logits = jnp.dot(x, wlm_ref[...],
                     preferred_element_type=jnp.float32) + blm_ref[...]
    o_ref[...] = logits.astype(o_ref.dtype)


# ----------------------------------------------------------------------------
# Wrapper: one pallas_call for the whole forward.
# ----------------------------------------------------------------------------
@jax.jit
def gpt_forward(index, params):
    """Forward pass. Returns (logits, loss) with loss=None (no targets)."""
    B, T = index.shape
    BT = B * T
    idx_col = index.reshape(BT, 1).astype(jnp.int32)

    # positional embedding pre-tiled to (BT, C) so the kernel does a plain add.
    pos_tiled = jnp.tile(params["pos_emb"][:T], (B, 1))

    # additive block-diagonal causal mask over the flattened (BT, BT) scores:
    # rows/cols in different batch elements, or future positions, get NEG_INF.
    row = jnp.arange(BT)[:, None]
    col = jnp.arange(BT)[None, :]
    allowed = jnp.logical_and(row // T == col // T, row >= col)
    mask_bias = jnp.where(allowed, 0.0, NEG_INF).astype(jnp.float32)

    kernel = functools.partial(gpt_kernel, B=B, T=T)
    vmem = lambda: pl.BlockSpec(memory_space=pltpu.MemorySpace.VMEM)

    logits_pad = pl.pallas_call(
        kernel,
        out_shape=jax.ShapeDtypeStruct((BT, V_PAD), jnp.float32),
        in_specs=[vmem() for _ in range(13)],
        out_specs=vmem(),
    )(idx_col, params["tok_emb"], pos_tiled, mask_bias,
      params["wqkv"], params["wproj"],
      params["w1"], params["b1"], params["w2"],
      params["vecs"], params["lnf"],
      params["w_lm_pad"], params["b_lm_pad"])

    logits = logits_pad[:, :VOCAB_SIZE].reshape(B, T, VOCAB_SIZE)
    # TODO(synk): cross-entropy loss path (targets is not None) not implemented;
    # the reference returns loss=None when targets is None.
    return logits, None


# ----------------------------------------------------------------------------
# Parameter init (matches _init_weights: Linear/Embedding ~ N(0, 0.02), bias 0,
# LayerNorm gamma=1 beta=0). Per-layer params are stacked/packed for the kernel.
# ----------------------------------------------------------------------------
def init_params(key, vocab_size=VOCAB_SIZE, n_embed=N_EMBED, n_layer=N_LAYER):
    keys = iter(jax.random.split(key, 64))
    normal = lambda shape: 0.02 * jax.random.normal(next(keys), shape, jnp.float32)
    hidden = 4 * n_embed

    wqkv, wproj, w1, b1, w2, vecs = [], [], [], [], [], []
    for _ in range(n_layer):
        wq = normal((n_embed, n_embed))
        wk = normal((n_embed, n_embed))
        wv = normal((n_embed, n_embed))
        wqkv.append(jnp.concatenate([wq, wk, wv], axis=1))          # (C, 3C)
        wproj.append(normal((n_embed, n_embed)))
        w1.append(normal((n_embed, hidden)))
        b1.append(jnp.zeros((1, hidden), jnp.float32))
        w2.append(normal((hidden, n_embed)))
        # packed per-layer (C,)-vectors: [bproj, b2, ln1_g, ln1_b, ln2_g, ln2_b]
        vecs.append(jnp.stack([
            jnp.zeros((n_embed,), jnp.float32),   # bproj
            jnp.zeros((n_embed,), jnp.float32),   # b2
            jnp.ones((n_embed,), jnp.float32),    # ln1 gamma
            jnp.zeros((n_embed,), jnp.float32),   # ln1 beta
            jnp.ones((n_embed,), jnp.float32),    # ln2 gamma
            jnp.zeros((n_embed,), jnp.float32),   # ln2 beta
        ]))

    w_lm = normal((n_embed, vocab_size))
    w_lm_pad = jnp.zeros((n_embed, V_PAD), jnp.float32).at[:, :vocab_size].set(w_lm)
    b_lm_pad = jnp.zeros((1, V_PAD), jnp.float32)   # bias is zero-init anyway

    return {
        "tok_emb": normal((vocab_size, n_embed)),
        "pos_emb": normal((BLOCK_SIZE, n_embed)),
        "wqkv": jnp.stack(wqkv),                    # (L, C, 3C)
        "wproj": jnp.stack(wproj),                  # (L, C, C)
        "w1": jnp.stack(w1),                        # (L, C, 4C)
        "b1": jnp.stack(b1),                        # (L, 1, 4C)
        "w2": jnp.stack(w2),                        # (L, 4C, C)
        "vecs": jnp.stack(vecs),                    # (L, 6, C)
        "lnf": jnp.stack([jnp.ones((n_embed,), jnp.float32),
                          jnp.zeros((n_embed,), jnp.float32)]),     # (2, C)
        "w_lm_pad": w_lm_pad,                       # (C, V_PAD)
        "b_lm_pad": b_lm_pad,                       # (1, V_PAD)
    }


if __name__ == "__main__":
    key = jax.random.PRNGKey(0)
    pkey, ikey = jax.random.split(key)
    params = init_params(pkey)

    B, T = 2, BLOCK_SIZE
    index = jax.random.randint(ikey, (B, T), 0, VOCAB_SIZE, dtype=jnp.int32)

    logits, loss = gpt_forward(index, params)
    logits = jax.block_until_ready(logits)
    assert logits.shape == (B, T, VOCAB_SIZE)
    assert loss is None
    assert bool(jnp.all(jnp.isfinite(logits)))
    print("KERNEL_OK")
</pallas_src>

<mosaic_0001>
module attributes {stable_mosaic.version = 11 : i64} {
  func.func @gpt_kernel(%arg0: memref<16x1xi32, #tpu.memory_space<vmem>>, %arg1: memref<32x32xf32, #tpu.memory_space<vmem>>, %arg2: memref<16x32xf32, #tpu.memory_space<vmem>>, %arg3: memref<16x16xf32, #tpu.memory_space<vmem>>, %arg4: memref<2x32x96xf32, #tpu.memory_space<vmem>>, %arg5: memref<2x32x32xf32, #tpu.memory_space<vmem>>, %arg6: memref<2x32x128xf32, #tpu.memory_space<vmem>>, %arg7: memref<2x1x128xf32, #tpu.memory_space<vmem>>, %arg8: memref<2x128x32xf32, #tpu.memory_space<vmem>>, %arg9: memref<2x6x32xf32, #tpu.memory_space<vmem>>, %arg10: memref<2x32xf32, #tpu.memory_space<vmem>>, %arg11: memref<32x128xf32, #tpu.memory_space<vmem>>, %arg12: memref<1x128xf32, #tpu.memory_space<vmem>>, %arg13: memref<16x128xf32, #tpu.memory_space<vmem>>) attributes {dimension_semantics = [], scalar_prefetch = 0 : i64, scratch_operands = 0 : i64, tpu.core_type = #tpu.core_type<tc>} {
    %c0 = arith.constant 0 : index
    %c0_0 = arith.constant 0 : index
    %0 = vector.load %arg0[%c0, %c0_0] : memref<16x1xi32, #tpu.memory_space<vmem>>, vector<16x1xi32>
    %1 = tpu.iota {dimensions = array<i32: 1>} : vector<16x32xi32>
    %2 = vector.broadcast %0 : vector<16x1xi32> to vector<16x32xi32>
    %3 = arith.cmpi eq, %2, %1 : vector<16x32xi32>
    %4 = arith.extui %3 : vector<16x32xi1> to vector<16x32xi32>
    %5 = arith.sitofp %4 : vector<16x32xi32> to vector<16x32xf32>
    %c0_1 = arith.constant 0 : index
    %c0_2 = arith.constant 0 : index
    %6 = vector.load %arg1[%c0_1, %c0_2] : memref<32x32xf32, #tpu.memory_space<vmem>>, vector<32x32xf32>
    %cst = arith.constant dense<0.000000e+00> : vector<16x32xf32>
    %7 = tpu.matmul %5, %6, %cst {dimension_numbers = #tpu.dot_dimension_numbers<[1], [0], [0], [1], [0, 0, 1, 1], [], []>} : vector<16x32xf32>, vector<32x32xf32>, vector<16x32xf32> -> vector<16x32xf32>
    %c0_3 = arith.constant 0 : index
    %c0_4 = arith.constant 0 : index
    %8 = vector.load %arg2[%c0_3, %c0_4] : memref<16x32xf32, #tpu.memory_space<vmem>>, vector<16x32xf32>
    %9 = arith.addf %7, %8 : vector<16x32xf32>
    %c0_5 = arith.constant 0 : index
    %c0_6 = arith.constant 0 : index
    %10 = vector.load %arg3[%c0_5, %c0_6] : memref<16x16xf32, #tpu.memory_space<vmem>>, vector<16x16xf32>
    %c0_7 = arith.constant 0 : index
    %c0_8 = arith.constant 0 : index
    %c0_9 = arith.constant 0 : index
    %11 = vector.load %arg5[%c0_7, %c0_8, %c0_9] : memref<2x32x32xf32, #tpu.memory_space<vmem>>, vector<1x32x32xf32>
    %12 = vector.shape_cast %11 : vector<1x32x32xf32> to vector<32x32xf32>
    %c0_10 = arith.constant 0 : index
    %c0_11 = arith.constant 0 : index
    %c0_12 = arith.constant 0 : index
    %13 = vector.load %arg9[%c0_10, %c0_11, %c0_12] : memref<2x6x32xf32, #tpu.memory_space<vmem>>, vector<1x6x32xf32>
    %14 = vector.shape_cast %13 : vector<1x6x32xf32> to vector<6x32xf32>
    %15 = vector.extract_strided_slice %14 {offsets = [0, 0], sizes = [1, 32], strides = [1, 1]} : vector<6x32xf32> to vector<1x32xf32>
    %16 = vector.extract_strided_slice %14 {offsets = [1, 0], sizes = [1, 32], strides = [1, 1]} : vector<6x32xf32> to vector<1x32xf32>
    %17 = vector.extract_strided_slice %14 {offsets = [2, 0], sizes = [1, 32], strides = [1, 1]} : vector<6x32xf32> to vector<1x32xf32>
    %18 = vector.extract_strided_slice %14 {offsets = [3, 0], sizes = [1, 32], strides = [1, 1]} : vector<6x32xf32> to vector<1x32xf32>
    %19 = vector.extract_strided_slice %14 {offsets = [4, 0], sizes = [1, 32], strides = [1, 1]} : vector<6x32xf32> to vector<1x32xf32>
    %20 = vector.extract_strided_slice %14 {offsets = [5, 0], sizes = [1, 32], strides = [1, 1]} : vector<6x32xf32> to vector<1x32xf32>
    %c0_13 = arith.constant 0 : index
    %c0_14 = arith.constant 0 : index
    %c0_15 = arith.constant 0 : index
    %21 = vector.load %arg4[%c0_13, %c0_14, %c0_15] : memref<2x32x96xf32, #tpu.memory_space<vmem>>, vector<1x32x96xf32>
    %22 = vector.shape_cast %21 : vector<1x32x96xf32> to vector<32x96xf32>
    %cst_16 = arith.constant dense<0.000000e+00> : vector<16x96xf32>
    %23 = tpu.matmul %9, %22, %cst_16 {dimension_numbers = #tpu.dot_dimension_numbers<[1], [0], [0], [1], [0, 0, 1, 1], [], []>} : vector<16x32xf32>, vector<32x96xf32>, vector<16x96xf32> -> vector<16x96xf32>
    %cst_17 = arith.constant 0.000000e+00 : f32
    %24 = vector.broadcast %cst_17 : f32 to vector<16x32xf32>
    %25 = vector.extract_strided_slice %23 {offsets = [0, 0], sizes = [16, 8], strides = [1, 1]} : vector<16x96xf32> to vector<16x8xf32>
    %26 = vector.extract_strided_slice %23 {offsets = [0, 32], sizes = [16, 8], strides = [1, 1]} : vector<16x96xf32> to vector<16x8xf32>
    %27 = vector.extract_strided_slice %23 {offsets = [0, 64], sizes = [16, 8], strides = [1, 1]} : vector<16x96xf32> to vector<16x8xf32>
    %cst_18 = arith.constant dense<0.000000e+00> : vector<16x16xf32>
    %28 = tpu.matmul %25, %26, %cst_18 {dimension_numbers = #tpu.dot_dimension_numbers<[1], [1], [0], [0], [0, 0, 1, 0], [], []>} : vector<16x8xf32>, vector<16x8xf32>, vector<16x16xf32> -> vector<16x16xf32>
    %cst_19 = arith.constant 2.82842708 : f32
    %29 = vector.broadcast %cst_19 : f32 to vector<16x16xf32>
    %30 = arith.mulf %28, %29 : vector<16x16xf32>
    %31 = arith.addf %30, %10 : vector<16x16xf32>
    %cst_20 = arith.constant dense<0xFF800000> : vector<16xf32>
    %32 = vector.multi_reduction <maximumf>, %31, %cst_20 [1] : vector<16x16xf32> to vector<16xf32>
    %33 = vector.shape_cast %32 : vector<16xf32> to vector<16x1xf32>
    %34 = vector.broadcast %33 : vector<16x1xf32> to vector<16x16xf32>
    %35 = arith.subf %31, %34 : vector<16x16xf32>
    %36 = math.exp %35 : vector<16x16xf32>
    %cst_21 = arith.constant dense<0.000000e+00> : vector<16xf32>
    %37 = vector.multi_reduction <add>, %36, %cst_21 [1] : vector<16x16xf32> to vector<16xf32>
    %38 = vector.shape_cast %37 : vector<16xf32> to vector<16x1xf32>
    %39 = tpu.reciprocal %38 {approx = true} : vector<16x1xf32> -> vector<16x1xf32>
    %40 = vector.broadcast %39 : vector<16x1xf32> to vector<16x16xf32>
    %41 = arith.mulf %36, %40 : vector<16x16xf32>
    %cst_22 = arith.constant dense<0.000000e+00> : vector<16x8xf32>
    %42 = tpu.matmul %41, %27, %cst_22 {dimension_numbers = #tpu.dot_dimension_numbers<[1], [0], [0], [1], [0, 0, 1, 1], [], []>} : vector<16x16xf32>, vector<16x8xf32>, vector<16x8xf32> -> vector<16x8xf32>
    %43 = vector.extract_strided_slice %12 {offsets = [0, 0], sizes = [8, 32], strides = [1, 1]} : vector<32x32xf32> to vector<8x32xf32>
    %cst_23 = arith.constant dense<0.000000e+00> : vector<16x32xf32>
    %44 = tpu.matmul %42, %43, %cst_23 {dimension_numbers = #tpu.dot_dimension_numbers<[1], [0], [0], [1], [0, 0, 1, 1], [], []>} : vector<16x8xf32>, vector<8x32xf32>, vector<16x32xf32> -> vector<16x32xf32>
    %45 = arith.addf %24, %44 : vector<16x32xf32>
    %46 = vector.extract_strided_slice %23 {offsets = [0, 8], sizes = [16, 8], strides = [1, 1]} : vector<16x96xf32> to vector<16x8xf32>
    %47 = vector.extract_strided_slice %23 {offsets = [0, 40], sizes = [16, 8], strides = [1, 1]} : vector<16x96xf32> to vector<16x8xf32>
    %48 = vector.extract_strided_slice %23 {offsets = [0, 72], sizes = [16, 8], strides = [1, 1]} : vector<16x96xf32> to vector<16x8xf32>
    %cst_24 = arith.constant dense<0.000000e+00> : vector<16x16xf32>
    %49 = tpu.matmul %46, %47, %cst_24 {dimension_numbers = #tpu.dot_dimension_numbers<[1], [1], [0], [0], [0, 0, 1, 0], [], []>} : vector<16x8xf32>, vector<16x8xf32>, vector<16x16xf32> -> vector<16x16xf32>
    %cst_25 = arith.constant 2.82842708 : f32
    %50 = vector.broadcast %cst_25 : f32 to vector<16x16xf32>
    %51 = arith.mulf %49, %50 : vector<16x16xf32>
    %52 = arith.addf %51, %10 : vector<16x16xf32>
    %cst_26 = arith.constant dense<0xFF800000> : vector<16xf32>
    %53 = vector.multi_reduction <maximumf>, %52, %cst_26 [1] : vector<16x16xf32> to vector<16xf32>
    %54 = vector.shape_cast %53 : vector<16xf32> to vector<16x1xf32>
    %55 = vector.broadcast %54 : vector<16x1xf32> to vector<16x16xf32>
    %56 = arith.subf %52, %55 : vector<16x16xf32>
    %57 = math.exp %56 : vector<16x16xf32>
    %cst_27 = arith.constant dense<0.000000e+00> : vector<16xf32>
    %58 = vector.multi_reduction <add>, %57, %cst_27 [1] : vector<16x16xf32> to vector<16xf32>
    %59 = vector.shape_cast %58 : vector<16xf32> to vector<16x1xf32>
    %60 = tpu.reciprocal %59 {approx = true} : vector<16x1xf32> -> vector<16x1xf32>
    %61 = vector.broadcast %60 : vector<16x1xf32> to vector<16x16xf32>
    %62 = arith.mulf %57, %61 : vector<16x16xf32>
    %cst_28 = arith.constant dense<0.000000e+00> : vector<16x8xf32>
    %63 = tpu.matmul %62, %48, %cst_28 {dimension_numbers = #tpu.dot_dimension_numbers<[1], [0], [0], [1], [0, 0, 1, 1], [], []>} : vector<16x16xf32>, vector<16x8xf32>, vector<16x8xf32> -> vector<16x8xf32>
    %64 = vector.extract_strided_slice %12 {offsets = [8, 0], sizes = [8, 32], strides = [1, 1]} : vector<32x32xf32> to vector<8x32xf32>
    %cst_29 = arith.constant dense<0.000000e+00> : vector<16x32xf32>
    %65 = tpu.matmul %63, %64, %cst_29 {dimension_numbers = #tpu.dot_dimension_numbers<[1], [0], [0], [1], [0, 0, 1, 1], [], []>} : vector<16x8xf32>, vector<8x32xf32>, vector<16x32xf32> -> vector<16x32xf32>
    %66 = arith.addf %45, %65 : vector<16x32xf32>
    %67 = vector.extract_strided_slice %23 {offsets = [0, 16], sizes = [16, 8], strides = [1, 1]} : vector<16x96xf32> to vector<16x8xf32>
    %68 = vector.extract_strided_slice %23 {offsets = [0, 48], sizes = [16, 8], strides = [1, 1]} : vector<16x96xf32> to vector<16x8xf32>
    %69 = vector.extract_strided_slice %23 {offsets = [0, 80], sizes = [16, 8], strides = [1, 1]} : vector<16x96xf32> to vector<16x8xf32>
    %cst_30 = arith.constant dense<0.000000e+00> : vector<16x16xf32>
    %70 = tpu.matmul %67, %68, %cst_30 {dimension_numbers = #tpu.dot_dimension_numbers<[1], [1], [0], [0], [0, 0, 1, 0], [], []>} : vector<16x8xf32>, vector<16x8xf32>, vector<16x16xf32> -> vector<16x16xf32>
    %cst_31 = arith.constant 2.82842708 : f32
    %71 = vector.broadcast %cst_31 : f32 to vector<16x16xf32>
    %72 = arith.mulf %70, %71 : vector<16x16xf32>
    %73 = arith.addf %72, %10 : vector<16x16xf32>
    %cst_32 = arith.constant dense<0xFF800000> : vector<16xf32>
    %74 = vector.multi_reduction <maximumf>, %73, %cst_32 [1] : vector<16x16xf32> to vector<16xf32>
    %75 = vector.shape_cast %74 : vector<16xf32> to vector<16x1xf32>
    %76 = vector.broadcast %75 : vector<16x1xf32> to vector<16x16xf32>
    %77 = arith.subf %73, %76 : vector<16x16xf32>
    %78 = math.exp %77 : vector<16x16xf32>
    %cst_33 = arith.constant dense<0.000000e+00> : vector<16xf32>
    %79 = vector.multi_reduction <add>, %78, %cst_33 [1] : vector<16x16xf32> to vector<16xf32>
    %80 = vector.shape_cast %79 : vector<16xf32> to vector<16x1xf32>
    %81 = tpu.reciprocal %80 {approx = true} : vector<16x1xf32> -> vector<16x1xf32>
    %82 = vector.broadcast %81 : vector<16x1xf32> to vector<16x16xf32>
    %83 = arith.mulf %78, %82 : vector<16x16xf32>
    %cst_34 = arith.constant dense<0.000000e+00> : vector<16x8xf32>
    %84 = tpu.matmul %83, %69, %cst_34 {dimension_numbers = #tpu.dot_dimension_numbers<[1], [0], [0], [1], [0, 0, 1, 1], [], []>} : vector<16x16xf32>, vector<16x8xf32>, vector<16x8xf32> -> vector<16x8xf32>
    %85 = vector.extract_strided_slice %12 {offsets = [16, 0], sizes = [8, 32], strides = [1, 1]} : vector<32x32xf32> to vector<8x32xf32>
    %cst_35 = arith.constant dense<0.000000e+00> : vector<16x32xf32>
    %86 = tpu.matmul %84, %85, %cst_35 {dimension_numbers = #tpu.dot_dimension_numbers<[1], [0], [0], [1], [0, 0, 1, 1], [], []>} : vector<16x8xf32>, vector<8x32xf32>, vector<16x32xf32> -> vector<16x32xf32>
    %87 = arith.addf %66, %86 : vector<16x32xf32>
    %88 = vector.extract_strided_slice %23 {offsets = [0, 24], sizes = [16, 8], strides = [1, 1]} : vector<16x96xf32> to vector<16x8xf32>
    %89 = vector.extract_strided_slice %23 {offsets = [0, 56], sizes = [16, 8], strides = [1, 1]} : vector<16x96xf32> to vector<16x8xf32>
    %90 = vector.extract_strided_slice %23 {offsets = [0, 88], sizes = [16, 8], strides = [1, 1]} : vector<16x96xf32> to vector<16x8xf32>
    %cst_36 = arith.constant dense<0.000000e+00> : vector<16x16xf32>
    %91 = tpu.matmul %88, %89, %cst_36 {dimension_numbers = #tpu.dot_dimension_numbers<[1], [1], [0], [0], [0, 0, 1, 0], [], []>} : vector<16x8xf32>, vector<16x8xf32>, vector<16x16xf32> -> vector<16x16xf32>
    %cst_37 = arith.constant 2.82842708 : f32
    %92 = vector.broadcast %cst_37 : f32 to vector<16x16xf32>
    %93 = arith.mulf %91, %92 : vector<16x16xf32>
    %94 = arith.addf %93, %10 : vector<16x16xf32>
    %cst_38 = arith.constant dense<0xFF800000> : vector<16xf32>
    %95 = vector.multi_reduction <maximumf>, %94, %cst_38 [1] : vector<16x16xf32> to vector<16xf32>
    %96 = vector.shape_cast %95 : vector<16xf32> to vector<16x1xf32>
    %97 = vector.broadcast %96 : vector<16x1xf32> to vector<16x16xf32>
    %98 = arith.subf %94, %97 : vector<16x16xf32>
    %99 = math.exp %98 : vector<16x16xf32>
    %cst_39 = arith.constant dense<0.000000e+00> : vector<16xf32>
    %100 = vector.multi_reduction <add>, %99, %cst_39 [1] : vector<16x16xf32> to vector<16xf32>
    %101 = vector.shape_cast %100 : vector<16xf32> to vector<16x1xf32>
    %102 = tpu.reciprocal %101 {approx = true} : vector<16x1xf32> -> vector<16x1xf32>
    %103 = vector.broadcast %102 : vector<16x1xf32> to vector<16x16xf32>
    %104 = arith.mulf %99, %103 : vector<16x16xf32>
    %cst_40 = arith.constant dense<0.000000e+00> : vector<16x8xf32>
    %105 = tpu.matmul %104, %90, %cst_40 {dimension_numbers = #tpu.dot_dimension_numbers<[1], [0], [0], [1], [0, 0, 1, 1], [], []>} : vector<16x16xf32>, vector<16x8xf32>, vector<16x8xf32> -> vector<16x8xf32>
    %106 = vector.extract_strided_slice %12 {offsets = [24, 0], sizes = [8, 32], strides = [1, 1]} : vector<32x32xf32> to vector<8x32xf32>
    %cst_41 = arith.constant dense<0.000000e+00> : vector<16x32xf32>
    %107 = tpu.matmul %105, %106, %cst_41 {dimension_numbers = #tpu.dot_dimension_numbers<[1], [0], [0], [1], [0, 0, 1, 1], [], []>} : vector<16x8xf32>, vector<8x32xf32>, vector<16x32xf32> -> vector<16x32xf32>
    %108 = arith.addf %87, %107 : vector<16x32xf32>
    %109 = vector.broadcast %15 : vector<1x32xf32> to vector<16x32xf32>
    %110 = arith.addf %108, %109 : vector<16x32xf32>
    %111 = arith.addf %9, %110 : vector<16x32xf32>
    %cst_42 = arith.constant dense<0.000000e+00> : vector<16xf32>
    %112 = vector.multi_reduction <add>, %111, %cst_42 [1] : vector<16x32xf32> to vector<16xf32>
    %113 = vector.shape_cast %112 : vector<16xf32> to vector<16x1xf32>
    %cst_43 = arith.constant 3.200000e+01 : f32
    %114 = vector.broadcast %cst_43 : f32 to vector<16x1xf32>
    %115 = arith.divf %113, %114 : vector<16x1xf32>
    %116 = vector.broadcast %115 : vector<16x1xf32> to vector<16x32xf32>
    %117 = arith.subf %111, %116 : vector<16x32xf32>
    %118 = arith.mulf %117, %117 : vector<16x32xf32>
    %cst_44 = arith.constant dense<0.000000e+00> : vector<16xf32>
    %119 = vector.multi_reduction <add>, %118, %cst_44 [1] : vector<16x32xf32> to vector<16xf32>
    %120 = vector.shape_cast %119 : vector<16xf32> to vector<16x1xf32>
    %cst_45 = arith.constant 3.200000e+01 : f32
    %121 = vector.broadcast %cst_45 : f32 to vector<16x1xf32>
    %122 = arith.divf %120, %121 : vector<16x1xf32>
    %123 = vector.broadcast %115 : vector<16x1xf32> to vector<16x32xf32>
    %124 = arith.subf %111, %123 : vector<16x32xf32>
    %cst_46 = arith.constant 9.99999974E-6 : f32
    %125 = vector.broadcast %cst_46 : f32 to vector<16x1xf32>
    %126 = arith.addf %122, %125 : vector<16x1xf32>
    %127 = math.rsqrt %126 : vector<16x1xf32>
    %128 = vector.broadcast %127 : vector<16x1xf32> to vector<16x32xf32>
    %129 = arith.mulf %124, %128 : vector<16x32xf32>
    %130 = vector.broadcast %17 : vector<1x32xf32> to vector<16x32xf32>
    %131 = arith.mulf %129, %130 : vector<16x32xf32>
    %132 = vector.broadcast %18 : vector<1x32xf32> to vector<16x32xf32>
    %133 = arith.addf %131, %132 : vector<16x32xf32>
    %c0_47 = arith.constant 0 : index
    %c0_48 = arith.constant 0 : index
    %c0_49 = arith.constant 0 : index
    %134 = vector.load %arg6[%c0_47, %c0_48, %c0_49] : memref<2x32x128xf32, #tpu.memory_space<vmem>>, vector<1x32x128xf32>
    %135 = vector.shape_cast %134 : vector<1x32x128xf32> to vector<32x128xf32>
    %cst_50 = arith.constant dense<0.000000e+00> : vector<16x128xf32>
    %136 = tpu.matmul %133, %135, %cst_50 {dimension_numbers = #tpu.dot_dimension_numbers<[1], [0], [0], [1], [0, 0, 1, 1], [], []>} : vector<16x32xf32>, vector<32x128xf32>, vector<16x128xf32> -> vector<16x128xf32>
    %c0_51 = arith.constant 0 : index
    %c0_52 = arith.constant 0 : index
    %c0_53 = arith.constant 0 : index
    %137 = vector.load %arg7[%c0_51, %c0_52, %c0_53] : memref<2x1x128xf32, #tpu.memory_space<vmem>>, vector<1x1x128xf32>
    %138 = vector.shape_cast %137 : vector<1x1x128xf32> to vector<1x128xf32>
    %139 = vector.broadcast %138 : vector<1x128xf32> to vector<16x128xf32>
    %140 = arith.addf %136, %139 : vector<16x128xf32>
    %cst_54 = arith.constant 0.000000e+00 : f32
    %141 = vector.broadcast %cst_54 : f32 to vector<16x128xf32>
    %142 = arith.maximumf %140, %141 : vector<16x128xf32>
    %c0_55 = arith.constant 0 : index
    %c0_56 = arith.constant 0 : index
    %c0_57 = arith.constant 0 : index
    %143 = vector.load %arg8[%c0_55, %c0_56, %c0_57] : memref<2x128x32xf32, #tpu.memory_space<vmem>>, vector<1x128x32xf32>
    %144 = vector.shape_cast %143 : vector<1x128x32xf32> to vector<128x32xf32>
    %cst_58 = arith.constant dense<0.000000e+00> : vector<16x32xf32>
    %145 = tpu.matmul %142, %144, %cst_58 {dimension_numbers = #tpu.dot_dimension_numbers<[1], [0], [0], [1], [0, 0, 1, 1], [], []>} : vector<16x128xf32>, vector<128x32xf32>, vector<16x32xf32> -> vector<16x32xf32>
    %146 = vector.broadcast %16 : vector<1x32xf32> to vector<16x32xf32>
    %147 = arith.addf %145, %146 : vector<16x32xf32>
    %148 = arith.addf %133, %147 : vector<16x32xf32>
    %cst_59 = arith.constant dense<0.000000e+00> : vector<16xf32>
    %149 = vector.multi_reduction <add>, %148, %cst_59 [1] : vector<16x32xf32> to vector<16xf32>
    %150 = vector.shape_cast %149 : vector<16xf32> to vector<16x1xf32>
    %cst_60 = arith.constant 3.200000e+01 : f32
    %151 = vector.broadcast %cst_60 : f32 to vector<16x1xf32>
    %152 = arith.divf %150, %151 : vector<16x1xf32>
    %153 = vector.broadcast %152 : vector<16x1xf32> to vector<16x32xf32>
    %154 = arith.subf %148, %153 : vector<16x32xf32>
    %155 = arith.mulf %154, %154 : vector<16x32xf32>
    %cst_61 = arith.constant dense<0.000000e+00> : vector<16xf32>
    %156 = vector.multi_reduction <add>, %155, %cst_61 [1] : vector<16x32xf32> to vector<16xf32>
    %157 = vector.shape_cast %156 : vector<16xf32> to vector<16x1xf32>
    %cst_62 = arith.constant 3.200000e+01 : f32
    %158 = vector.broadcast %cst_62 : f32 to vector<16x1xf32>
    %159 = arith.divf %157, %158 : vector<16x1xf32>
    %160 = vector.broadcast %152 : vector<16x1xf32> to vector<16x32xf32>
    %161 = arith.subf %148, %160 : vector<16x32xf32>
    %cst_63 = arith.constant 9.99999974E-6 : f32
    %162 = vector.broadcast %cst_63 : f32 to vector<16x1xf32>
    %163 = arith.addf %159, %162 : vector<16x1xf32>
    %164 = math.rsqrt %163 : vector<16x1xf32>
    %165 = vector.broadcast %164 : vector<16x1xf32> to vector<16x32xf32>
    %166 = arith.mulf %161, %165 : vector<16x32xf32>
    %167 = vector.broadcast %19 : vector<1x32xf32> to vector<16x32xf32>
    %168 = arith.mulf %166, %167 : vector<16x32xf32>
    %169 = vector.broadcast %20 : vector<1x32xf32> to vector<16x32xf32>
    %170 = arith.addf %168, %169 : vector<16x32xf32>
    %c1 = arith.constant 1 : index
    %c0_64 = arith.constant 0 : index
    %c0_65 = arith.constant 0 : index
    %171 = vector.load %arg5[%c1, %c0_64, %c0_65] : memref<2x32x32xf32, #tpu.memory_space<vmem>>, vector<1x32x32xf32>
    %172 = vector.shape_cast %171 : vector<1x32x32xf32> to vector<32x32xf32>
    %c1_66 = arith.constant 1 : index
    %c0_67 = arith.constant 0 : index
    %c0_68 = arith.constant 0 : index
    %173 = vector.load %arg9[%c1_66, %c0_67, %c0_68] : memref<2x6x32xf32, #tpu.memory_space<vmem>>, vector<1x6x32xf32>
    %174 = vector.shape_cast %173 : vector<1x6x32xf32> to vector<6x32xf32>
    %175 = vector.extract_strided_slice %174 {offsets = [0, 0], sizes = [1, 32], strides = [1, 1]} : vector<6x32xf32> to vector<1x32xf32>
    %176 = vector.extract_strided_slice %174 {offsets = [1, 0], sizes = [1, 32], strides = [1, 1]} : vector<6x32xf32> to vector<1x32xf32>
    %177 = vector.extract_strided_slice %174 {offsets = [2, 0], sizes = [1, 32], strides = [1, 1]} : vector<6x32xf32> to vector<1x32xf32>
    %178 = vector.extract_strided_slice %174 {offsets = [3, 0], sizes = [1, 32], strides = [1, 1]} : vector<6x32xf32> to vector<1x32xf32>
    %179 = vector.extract_strided_slice %174 {offsets = [4, 0], sizes = [1, 32], strides = [1, 1]} : vector<6x32xf32> to vector<1x32xf32>
    %180 = vector.extract_strided_slice %174 {offsets = [5, 0], sizes = [1, 32], strides = [1, 1]} : vector<6x32xf32> to vector<1x32xf32>
    %c1_69 = arith.constant 1 : index
    %c0_70 = arith.constant 0 : index
    %c0_71 = arith.constant 0 : index
    %181 = vector.load %arg4[%c1_69, %c0_70, %c0_71] : memref<2x32x96xf32, #tpu.memory_space<vmem>>, vector<1x32x96xf32>
    %182 = vector.shape_cast %181 : vector<1x32x96xf32> to vector<32x96xf32>
    %cst_72 = arith.constant dense<0.000000e+00> : vector<16x96xf32>
    %183 = tpu.matmul %170, %182, %cst_72 {dimension_numbers = #tpu.dot_dimension_numbers<[1], [0], [0], [1], [0, 0, 1, 1], [], []>} : vector<16x32xf32>, vector<32x96xf32>, vector<16x96xf32> -> vector<16x96xf32>
    %cst_73 = arith.constant 0.000000e+00 : f32
    %184 = vector.broadcast %cst_73 : f32 to vector<16x32xf32>
    %185 = vector.extract_strided_slice %183 {offsets = [0, 0], sizes = [16, 8], strides = [1, 1]} : vector<16x96xf32> to vector<16x8xf32>
    %186 = vector.extract_strided_slice %183 {offsets = [0, 32], sizes = [16, 8], strides = [1, 1]} : vector<16x96xf32> to vector<16x8xf32>
    %187 = vector.extract_strided_slice %183 {offsets = [0, 64], sizes = [16, 8], strides = [1, 1]} : vector<16x96xf32> to vector<16x8xf32>
    %cst_74 = arith.constant dense<0.000000e+00> : vector<16x16xf32>
    %188 = tpu.matmul %185, %186, %cst_74 {dimension_numbers = #tpu.dot_dimension_numbers<[1], [1], [0], [0], [0, 0, 1, 0], [], []>} : vector<16x8xf32>, vector<16x8xf32>, vector<16x16xf32> -> vector<16x16xf32>
    %cst_75 = arith.constant 2.82842708 : f32
    %189 = vector.broadcast %cst_75 : f32 to vector<16x16xf32>
    %190 = arith.mulf %188, %189 : vector<16x16xf32>
    %191 = arith.addf %190, %10 : vector<16x16xf32>
    %cst_76 = arith.constant dense<0xFF800000> : vector<16xf32>
    %192 = vector.multi_reduction <maximumf>, %191, %cst_76 [1] : vector<16x16xf32> to vector<16xf32>
    %193 = vector.shape_cast %192 : vector<16xf32> to vector<16x1xf32>
    %194 = vector.broadcast %193 : vector<16x1xf32> to vector<16x16xf32>
    %195 = arith.subf %191, %194 : vector<16x16xf32>
    %196 = math.exp %195 : vector<16x16xf32>
    %cst_77 = arith.constant dense<0.000000e+00> : vector<16xf32>
    %197 = vector.multi_reduction <add>, %196, %cst_77 [1] : vector<16x16xf32> to vector<16xf32>
    %198 = vector.shape_cast %197 : vector<16xf32> to vector<16x1xf32>
    %199 = tpu.reciprocal %198 {approx = true} : vector<16x1xf32> -> vector<16x1xf32>
    %200 = vector.broadcast %199 : vector<16x1xf32> to vector<16x16xf32>
    %201 = arith.mulf %196, %200 : vector<16x16xf32>
    %cst_78 = arith.constant dense<0.000000e+00> : vector<16x8xf32>
    %202 = tpu.matmul %201, %187, %cst_78 {dimension_numbers = #tpu.dot_dimension_numbers<[1], [0], [0], [1], [0, 0, 1, 1], [], []>} : vector<16x16xf32>, vector<16x8xf32>, vector<16x8xf32> -> vector<16x8xf32>
    %203 = vector.extract_strided_slice %172 {offsets = [0, 0], sizes = [8, 32], strides = [1, 1]} : vector<32x32xf32> to vector<8x32xf32>
    %cst_79 = arith.constant dense<0.000000e+00> : vector<16x32xf32>
    %204 = tpu.matmul %202, %203, %cst_79 {dimension_numbers = #tpu.dot_dimension_numbers<[1], [0], [0], [1], [0, 0, 1, 1], [], []>} : vector<16x8xf32>, vector<8x32xf32>, vector<16x32xf32> -> vector<16x32xf32>
    %205 = arith.addf %184, %204 : vector<16x32xf32>
    %206 = vector.extract_strided_slice %183 {offsets = [0, 8], sizes = [16, 8], strides = [1, 1]} : vector<16x96xf32> to vector<16x8xf32>
    %207 = vector.extract_strided_slice %183 {offsets = [0, 40], sizes = [16, 8], strides = [1, 1]} : vector<16x96xf32> to vector<16x8xf32>
    %208 = vector.extract_strided_slice %183 {offsets = [0, 72], sizes = [16, 8], strides = [1, 1]} : vector<16x96xf32> to vector<16x8xf32>
    %cst_80 = arith.constant dense<0.000000e+00> : vector<16x16xf32>
    %209 = tpu.matmul %206, %207, %cst_80 {dimension_numbers = #tpu.dot_dimension_numbers<[1], [1], [0], [0], [0, 0, 1, 0], [], []>} : vector<16x8xf32>, vector<16x8xf32>, vector<16x16xf32> -> vector<16x16xf32>
    %cst_81 = arith.constant 2.82842708 : f32
    %210 = vector.broadcast %cst_81 : f32 to vector<16x16xf32>
    %211 = arith.mulf %209, %210 : vector<16x16xf32>
    %212 = arith.addf %211, %10 : vector<16x16xf32>
    %cst_82 = arith.constant dense<0xFF800000> : vector<16xf32>
    %213 = vector.multi_reduction <maximumf>, %212, %cst_82 [1] : vector<16x16xf32> to vector<16xf32>
    %214 = vector.shape_cast %213 : vector<16xf32> to vector<16x1xf32>
    %215 = vector.broadcast %214 : vector<16x1xf32> to vector<16x16xf32>
    %216 = arith.subf %212, %215 : vector<16x16xf32>
    %217 = math.exp %216 : vector<16x16xf32>
    %cst_83 = arith.constant dense<0.000000e+00> : vector<16xf32>
    %218 = vector.multi_reduction <add>, %217, %cst_83 [1] : vector<16x16xf32> to vector<16xf32>
    %219 = vector.shape_cast %218 : vector<16xf32> to vector<16x1xf32>
    %220 = tpu.reciprocal %219 {approx = true} : vector<16x1xf32> -> vector<16x1xf32>
    %221 = vector.broadcast %220 : vector<16x1xf32> to vector<16x16xf32>
    %222 = arith.mulf %217, %221 : vector<16x16xf32>
    %cst_84 = arith.constant dense<0.000000e+00> : vector<16x8xf32>
    %223 = tpu.matmul %222, %208, %cst_84 {dimension_numbers = #tpu.dot_dimension_numbers<[1], [0], [0], [1], [0, 0, 1, 1], [], []>} : vector<16x16xf32>, vector<16x8xf32>, vector<16x8xf32> -> vector<16x8xf32>
    %224 = vector.extract_strided_slice %172 {offsets = [8, 0], sizes = [8, 32], strides = [1, 1]} : vector<32x32xf32> to vector<8x32xf32>
    %cst_85 = arith.constant dense<0.000000e+00> : vector<16x32xf32>
    %225 = tpu.matmul %223, %224, %cst_85 {dimension_numbers = #tpu.dot_dimension_numbers<[1], [0], [0], [1], [0, 0, 1, 1], [], []>} : vector<16x8xf32>, vector<8x32xf32>, vector<16x32xf32> -> vector<16x32xf32>
    %226 = arith.addf %205, %225 : vector<16x32xf32>
    %227 = vector.extract_strided_slice %183 {offsets = [0, 16], sizes = [16, 8], strides = [1, 1]} : vector<16x96xf32> to vector<16x8xf32>
    %228 = vector.extract_strided_slice %183 {offsets = [0, 48], sizes = [16, 8], strides = [1, 1]} : vector<16x96xf32> to vector<16x8xf32>
    %229 = vector.extract_strided_slice %183 {offsets = [0, 80], sizes = [16, 8], strides = [1, 1]} : vector<16x96xf32> to vector<16x8xf32>
    %cst_86 = arith.constant dense<0.000000e+00> : vector<16x16xf32>
    %230 = tpu.matmul %227, %228, %cst_86 {dimension_numbers = #tpu.dot_dimension_numbers<[1], [1], [0], [0], [0, 0, 1, 0], [], []>} : vector<16x8xf32>, vector<16x8xf32>, vector<16x16xf32> -> vector<16x16xf32>
    %cst_87 = arith.constant 2.82842708 : f32
    %231 = vector.broadcast %cst_87 : f32 to vector<16x16xf32>
    %232 = arith.mulf %230, %231 : vector<16x16xf32>
    %233 = arith.addf %232, %10 : vector<16x16xf32>
    %cst_88 = arith.constant dense<0xFF800000> : vector<16xf32>
    %234 = vector.multi_reduction <maximumf>, %233, %cst_88 [1] : vector<16x16xf32> to vector<16xf32>
    %235 = vector.shape_cast %234 : vector<16xf32> to vector<16x1xf32>
    %236 = vector.broadcast %235 : vector<16x1xf32> to vector<16x16xf32>
    %237 = arith.subf %233, %236 : vector<16x16xf32>
    %238 = math.exp %237 : vector<16x16xf32>
    %cst_89 = arith.constant dense<0.000000e+00> : vector<16xf32>
    %239 = vector.multi_reduction <add>, %238, %cst_89 [1] : vector<16x16xf32> to vector<16xf32>
    %240 = vector.shape_cast %239 : vector<16xf32> to vector<16x1xf32>
    %241 = tpu.reciprocal %240 {approx = true} : vector<16x1xf32> -> vector<16x1xf32>
    %242 = vector.broadcast %241 : vector<16x1xf32> to vector<16x16xf32>
    %243 = arith.mulf %238, %242 : vector<16x16xf32>
    %cst_90 = arith.constant dense<0.000000e+00> : vector<16x8xf32>
    %244 = tpu.matmul %243, %229, %cst_90 {dimension_numbers = #tpu.dot_dimension_numbers<[1], [0], [0], [1], [0, 0, 1, 1], [], []>} : vector<16x16xf32>, vector<16x8xf32>, vector<16x8xf32> -> vector<16x8xf32>
    %245 = vector.extract_strided_slice %172 {offsets = [16, 0], sizes = [8, 32], strides = [1, 1]} : vector<32x32xf32> to vector<8x32xf32>
    %cst_91 = arith.constant dense<0.000000e+00> : vector<16x32xf32>
    %246 = tpu.matmul %244, %245, %cst_91 {dimension_numbers = #tpu.dot_dimension_numbers<[1], [0], [0], [1], [0, 0, 1, 1], [], []>} : vector<16x8xf32>, vector<8x32xf32>, vector<16x32xf32> -> vector<16x32xf32>
    %247 = arith.addf %226, %246 : vector<16x32xf32>
    %248 = vector.extract_strided_slice %183 {offsets = [0, 24], sizes = [16, 8], strides = [1, 1]} : vector<16x96xf32> to vector<16x8xf32>
    %249 = vector.extract_strided_slice %183 {offsets = [0, 56], sizes = [16, 8], strides = [1, 1]} : vector<16x96xf32> to vector<16x8xf32>
    %250 = vector.extract_strided_slice %183 {offsets = [0, 88], sizes = [16, 8], strides = [1, 1]} : vector<16x96xf32> to vector<16x8xf32>
    %cst_92 = arith.constant dense<0.000000e+00> : vector<16x16xf32>
    %251 = tpu.matmul %248, %249, %cst_92 {dimension_numbers = #tpu.dot_dimension_numbers<[1], [1], [0], [0], [0, 0, 1, 0], [], []>} : vector<16x8xf32>, vector<16x8xf32>, vector<16x16xf32> -> vector<16x16xf32>
    %cst_93 = arith.constant 2.82842708 : f32
    %252 = vector.broadcast %cst_93 : f32 to vector<16x16xf32>
    %253 = arith.mulf %251, %252 : vector<16x16xf32>
    %254 = arith.addf %253, %10 : vector<16x16xf32>
    %cst_94 = arith.constant dense<0xFF800000> : vector<16xf32>
    %255 = vector.multi_reduction <maximumf>, %254, %cst_94 [1] : vector<16x16xf32> to vector<16xf32>
    %256 = vector.shape_cast %255 : vector<16xf32> to vector<16x1xf32>
    %257 = vector.broadcast %256 : vector<16x1xf32> to vector<16x16xf32>
    %258 = arith.subf %254, %257 : vector<16x16xf32>
    %259 = math.exp %258 : vector<16x16xf32>
    %cst_95 = arith.constant dense<0.000000e+00> : vector<16xf32>
    %260 = vector.multi_reduction <add>, %259, %cst_95 [1] : vector<16x16xf32> to vector<16xf32>
    %261 = vector.shape_cast %260 : vector<16xf32> to vector<16x1xf32>
    %262 = tpu.reciprocal %261 {approx = true} : vector<16x1xf32> -> vector<16x1xf32>
    %263 = vector.broadcast %262 : vector<16x1xf32> to vector<16x16xf32>
    %264 = arith.mulf %259, %263 : vector<16x16xf32>
    %cst_96 = arith.constant dense<0.000000e+00> : vector<16x8xf32>
    %265 = tpu.matmul %264, %250, %cst_96 {dimension_numbers = #tpu.dot_dimension_numbers<[1], [0], [0], [1], [0, 0, 1, 1], [], []>} : vector<16x16xf32>, vector<16x8xf32>, vector<16x8xf32> -> vector<16x8xf32>
    %266 = vector.extract_strided_slice %172 {offsets = [24, 0], sizes = [8, 32], strides = [1, 1]} : vector<32x32xf32> to vector<8x32xf32>
    %cst_97 = arith.constant dense<0.000000e+00> : vector<16x32xf32>
    %267 = tpu.matmul %265, %266, %cst_97 {dimension_numbers = #tpu.dot_dimension_numbers<[1], [0], [0], [1], [0, 0, 1, 1], [], []>} : vector<16x8xf32>, vector<8x32xf32>, vector<16x32xf32> -> vector<16x32xf32>
    %268 = arith.addf %247, %267 : vector<16x32xf32>
    %269 = vector.broadcast %175 : vector<1x32xf32> to vector<16x32xf32>
    %270 = arith.addf %268, %269 : vector<16x32xf32>
    %271 = arith.addf %170, %270 : vector<16x32xf32>
    %cst_98 = arith.constant dense<0.000000e+00> : vector<16xf32>
    %272 = vector.multi_reduction <add>, %271, %cst_98 [1] : vector<16x32xf32> to vector<16xf32>
    %273 = vector.shape_cast %272 : vector<16xf32> to vector<16x1xf32>
    %cst_99 = arith.constant 3.200000e+01 : f32
    %274 = vector.broadcast %cst_99 : f32 to vector<16x1xf32>
    %275 = arith.divf %273, %274 : vector<16x1xf32>
    %276 = vector.broadcast %275 : vector<16x1xf32> to vector<16x32xf32>
    %277 = arith.subf %271, %276 : vector<16x32xf32>
    %278 = arith.mulf %277, %277 : vector<16x32xf32>
    %cst_100 = arith.constant dense<0.000000e+00> : vector<16xf32>
    %279 = vector.multi_reduction <add>, %278, %cst_100 [1] : vector<16x32xf32> to vector<16xf32>
    %280 = vector.shape_cast %279 : vector<16xf32> to vector<16x1xf32>
    %cst_101 = arith.constant 3.200000e+01 : f32
    %281 = vector.broadcast %cst_101 : f32 to vector<16x1xf32>
    %282 = arith.divf %280, %281 : vector<16x1xf32>
    %283 = vector.broadcast %275 : vector<16x1xf32> to vector<16x32xf32>
    %284 = arith.subf %271, %283 : vector<16x32xf32>
    %cst_102 = arith.constant 9.99999974E-6 : f32
    %285 = vector.broadcast %cst_102 : f32 to vector<16x1xf32>
    %286 = arith.addf %282, %285 : vector<16x1xf32>
    %287 = math.rsqrt %286 : vector<16x1xf32>
    %288 = vector.broadcast %287 : vector<16x1xf32> to vector<16x32xf32>
    %289 = arith.mulf %284, %288 : vector<16x32xf32>
    %290 = vector.broadcast %177 : vector<1x32xf32> to vector<16x32xf32>
    %291 = arith.mulf %289, %290 : vector<16x32xf32>
    %292 = vector.broadcast %178 : vector<1x32xf32> to vector<16x32xf32>
    %293 = arith.addf %291, %292 : vector<16x32xf32>
    %c1_103 = arith.constant 1 : index
    %c0_104 = arith.constant 0 : index
    %c0_105 = arith.constant 0 : index
    %294 = vector.load %arg6[%c1_103, %c0_104, %c0_105] : memref<2x32x128xf32, #tpu.memory_space<vmem>>, vector<1x32x128xf32>
    %295 = vector.shape_cast %294 : vector<1x32x128xf32> to vector<32x128xf32>
    %cst_106 = arith.constant dense<0.000000e+00> : vector<16x128xf32>
    %296 = tpu.matmul %293, %295, %cst_106 {dimension_numbers = #tpu.dot_dimension_numbers<[1], [0], [0], [1], [0, 0, 1, 1], [], []>} : vector<16x32xf32>, vector<32x128xf32>, vector<16x128xf32> -> vector<16x128xf32>
    %c1_107 = arith.constant 1 : index
    %c0_108 = arith.constant 0 : index
    %c0_109 = arith.constant 0 : index
    %297 = vector.load %arg7[%c1_107, %c0_108, %c0_109] : memref<2x1x128xf32, #tpu.memory_space<vmem>>, vector<1x1x128xf32>
    %298 = vector.shape_cast %297 : vector<1x1x128xf32> to vector<1x128xf32>
    %299 = vector.broadcast %298 : vector<1x128xf32> to vector<16x128xf32>
    %300 = arith.addf %296, %299 : vector<16x128xf32>
    %cst_110 = arith.constant 0.000000e+00 : f32
    %301 = vector.broadcast %cst_110 : f32 to vector<16x128xf32>
    %302 = arith.maximumf %300, %301 : vector<16x128xf32>
    %c1_111 = arith.constant 1 : index
    %c0_112 = arith.constant 0 : index
    %c0_113 = arith.constant 0 : index
    %303 = vector.load %arg8[%c1_111, %c0_112, %c0_113] : memref<2x128x32xf32, #tpu.memory_space<vmem>>, vector<1x128x32xf32>
    %304 = vector.shape_cast %303 : vector<1x128x32xf32> to vector<128x32xf32>
    %cst_114 = arith.constant dense<0.000000e+00> : vector<16x32xf32>
    %305 = tpu.matmul %302, %304, %cst_114 {dimension_numbers = #tpu.dot_dimension_numbers<[1], [0], [0], [1], [0, 0, 1, 1], [], []>} : vector<16x128xf32>, vector<128x32xf32>, vector<16x32xf32> -> vector<16x32xf32>
    %306 = vector.broadcast %176 : vector<1x32xf32> to vector<16x32xf32>
    %307 = arith.addf %305, %306 : vector<16x32xf32>
    %308 = arith.addf %293, %307 : vector<16x32xf32>
    %cst_115 = arith.constant dense<0.000000e+00> : vector<16xf32>
    %309 = vector.multi_reduction <add>, %308, %cst_115 [1] : vector<16x32xf32> to vector<16xf32>
    %310 = vector.shape_cast %309 : vector<16xf32> to vector<16x1xf32>
    %cst_116 = arith.constant 3.200000e+01 : f32
    %311 = vector.broadcast %cst_116 : f32 to vector<16x1xf32>
    %312 = arith.divf %310, %311 : vector<16x1xf32>
    %313 = vector.broadcast %312 : vector<16x1xf32> to vector<16x32xf32>
    %314 = arith.subf %308, %313 : vector<16x32xf32>
    %315 = arith.mulf %314, %314 : vector<16x32xf32>
    %cst_117 = arith.constant dense<0.000000e+00> : vector<16xf32>
    %316 = vector.multi_reduction <add>, %315, %cst_117 [1] : vector<16x32xf32> to vector<16xf32>
    %317 = vector.shape_cast %316 : vector<16xf32> to vector<16x1xf32>
    %cst_118 = arith.constant 3.200000e+01 : f32
    %318 = vector.broadcast %cst_118 : f32 to vector<16x1xf32>
    %319 = arith.divf %317, %318 : vector<16x1xf32>
    %320 = vector.broadcast %312 : vector<16x1xf32> to vector<16x32xf32>
    %321 = arith.subf %308, %320 : vector<16x32xf32>
    %cst_119 = arith.constant 9.99999974E-6 : f32
    %322 = vector.broadcast %cst_119 : f32 to vector<16x1xf32>
    %323 = arith.addf %319, %322 : vector<16x1xf32>
    %324 = math.rsqrt %323 : vector<16x1xf32>
    %325 = vector.broadcast %324 : vector<16x1xf32> to vector<16x32xf32>
    %326 = arith.mulf %321, %325 : vector<16x32xf32>
    %327 = vector.broadcast %179 : vector<1x32xf32> to vector<16x32xf32>
    %328 = arith.mulf %326, %327 : vector<16x32xf32>
    %329 = vector.broadcast %180 : vector<1x32xf32> to vector<16x32xf32>
    %330 = arith.addf %328, %329 : vector<16x32xf32>
    %c0_120 = arith.constant 0 : index
    %c0_121 = arith.constant 0 : index
    %331 = vector.load %arg10[%c0_120, %c0_121] : memref<2x32xf32, #tpu.memory_space<vmem>>, vector<1x32xf32>
    %c1_122 = arith.constant 1 : index
    %c0_123 = arith.constant 0 : index
    %332 = vector.load %arg10[%c1_122, %c0_123] : memref<2x32xf32, #tpu.memory_space<vmem>>, vector<1x32xf32>
    %cst_124 = arith.constant dense<0.000000e+00> : vector<16xf32>
    %333 = vector.multi_reduction <add>, %330, %cst_124 [1] : vector<16x32xf32> to vector<16xf32>
    %334 = vector.shape_cast %333 : vector<16xf32> to vector<16x1xf32>
    %cst_125 = arith.constant 3.200000e+01 : f32
    %335 = vector.broadcast %cst_125 : f32 to vector<16x1xf32>
    %336 = arith.divf %334, %335 : vector<16x1xf32>
    %337 = vector.broadcast %336 : vector<16x1xf32> to vector<16x32xf32>
    %338 = arith.subf %330, %337 : vector<16x32xf32>
    %339 = arith.mulf %338, %338 : vector<16x32xf32>
    %cst_126 = arith.constant dense<0.000000e+00> : vector<16xf32>
    %340 = vector.multi_reduction <add>, %339, %cst_126 [1] : vector<16x32xf32> to vector<16xf32>
    %341 = vector.shape_cast %340 : vector<16xf32> to vector<16x1xf32>
    %cst_127 = arith.constant 3.200000e+01 : f32
    %342 = vector.broadcast %cst_127 : f32 to vector<16x1xf32>
    %343 = arith.divf %341, %342 : vector<16x1xf32>
    %344 = vector.broadcast %336 : vector<16x1xf32> to vector<16x32xf32>
    %345 = arith.subf %330, %344 : vector<16x32xf32>
    %cst_128 = arith.constant 9.99999974E-6 : f32
    %346 = vector.broadcast %cst_128 : f32 to vector<16x1xf32>
    %347 = arith.addf %343, %346 : vector<16x1xf32>
    %348 = math.rsqrt %347 : vector<16x1xf32>
    %349 = vector.broadcast %348 : vector<16x1xf32> to vector<16x32xf32>
    %350 = arith.mulf %345, %349 : vector<16x32xf32>
    %351 = vector.broadcast %331 : vector<1x32xf32> to vector<16x32xf32>
    %352 = arith.mulf %350, %351 : vector<16x32xf32>
    %353 = vector.broadcast %332 : vector<1x32xf32> to vector<16x32xf32>
    %354 = arith.addf %352, %353 : vector<16x32xf32>
    %c0_129 = arith.constant 0 : index
    %c0_130 = arith.constant 0 : index
    %355 = vector.load %arg11[%c0_129, %c0_130] : memref<32x128xf32, #tpu.memory_space<vmem>>, vector<32x128xf32>
    %cst_131 = arith.constant dense<0.000000e+00> : vector<16x128xf32>
    %356 = tpu.matmul %354, %355, %cst_131 {dimension_numbers = #tpu.dot_dimension_numbers<[1], [0], [0], [1], [0, 0, 1, 1], [], []>} : vector<16x32xf32>, vector<32x128xf32>, vector<16x128xf32> -> vector<16x128xf32>
    %c0_132 = arith.constant 0 : index
    %c0_133 = arith.constant 0 : index
    %357 = vector.load %arg12[%c0_132, %c0_133] : memref<1x128xf32, #tpu.memory_space<vmem>>, vector<1x128xf32>
    %358 = vector.broadcast %357 : vector<1x128xf32> to vector<16x128xf32>
    %359 = arith.addf %356, %358 : vector<16x128xf32>
    %c0_134 = arith.constant 0 : index
    %c0_135 = arith.constant 0 : index
    %360 = vector.load %arg13[%c0_134, %c0_135] : memref<16x128xf32, #tpu.memory_space<vmem>>, vector<16x128xf32>
    tpu.vector_store %arg13[%c0_134, %c0_135], %359 {strides = array<i32>} : memref<16x128xf32, #tpu.memory_space<vmem>>, vector<16x128xf32>,
    return
  }
}

</mosaic_0001>

<llo_original>
// kernel: gpt_forward.1
$region0: #{gpt_forward.1}
  #allocation0 [shape = 'u32[]', space=smem, size = 0x4, offset = 0x4, fixed_abs, tag = 'smem constant byte address 0x4 - core index']
  #allocation1 [shape = 'u32[144,128]{1,0:T(1,128)}', space=vmem, size = 0x12000, scoped, tag = 'internal scratch']
  %s0 = inlined_call_operand.vmem [shape: s32[16,1], index: 0, kind: input, shape index: {}]
  %s1 = inlined_call_operand.vmem [shape: f32[32,32], index: 1, kind: input, shape index: {}]
  %s2 = inlined_call_operand.vmem [shape: f32[16,32], index: 2, kind: input, shape index: {}]
  %s3 = inlined_call_operand.vmem [shape: f32[16,16], index: 3, kind: input, shape index: {}]
  %s4 = inlined_call_operand.vmem [shape: f32[2,32,96], index: 4, kind: input, shape index: {}]
  %s5 = inlined_call_operand.vmem [shape: f32[2,32,32], index: 5, kind: input, shape index: {}]
  %s6 = inlined_call_operand.vmem [shape: f32[2,32,128], index: 6, kind: input, shape index: {}]
  %s7 = inlined_call_operand.vmem [shape: f32[2,1,128], index: 7, kind: input, shape index: {}]
  %s8 = inlined_call_operand.vmem [shape: f32[2,128,32], index: 8, kind: input, shape index: {}]
  %s9 = inlined_call_operand.vmem [shape: f32[2,6,32], index: 9, kind: input, shape index: {}]
  %s10 = inlined_call_operand.vmem [shape: f32[2,32], index: 10, kind: input, shape index: {}]
  %s11 = inlined_call_operand.vmem [shape: f32[32,128], index: 11, kind: input, shape index: {}]
  %s12 = inlined_call_operand.vmem [shape: f32[1,128], index: 12, kind: input, shape index: {}]
  %s13 = inlined_call_operand.vmem [shape: f32[16,128], index: 13, kind: output, shape index: {}]
  %s14 = sld [smem:[#allocation0]]
  $region62: #{gpt_forward.1} parent=0
    _
  %s16 = ssub.s32 1, %s14
  %s17 = scalar_select 0, %s16, %s14
  // Predicated region
  $region2: #{gpt_forward.1} parent=0 // pred_check
    _
  $region3: #{gpt_forward.1} parent=0 // pred_check_branch
    %19 = sbr.rel (0) target = $region5
  $region4: #{gpt_forward.1} parent=0 // pred_region
    _
  $region5: #{gpt_forward.1} parent=0 // pred_fallthru
    _
  // Predicated region
  $region6: #{gpt_forward.1} parent=0 // pred_check
    _
  $region7: #{gpt_forward.1} parent=0 // pred_check_branch
    %21 = sbr.rel (0) target = $region9
  $region8: #{gpt_forward.1} parent=0 // pred_region
    _
  $region9: #{gpt_forward.1} parent=0 // pred_fallthru
    _
  // Predicated region
  $region10: #{gpt_forward.1} parent=0 // pred_check
    _
  $region11: #{gpt_forward.1} parent=0 // pred_check_branch
    %23 = sbr.rel (0) target = $region13
  $region12: #{gpt_forward.1} parent=0 // pred_region
    _
  $region13: #{gpt_forward.1} parent=0 // pred_fallthru
    _
  // Predicated region
  $region14: #{gpt_forward.1} parent=0 // pred_check
    _
  $region15: #{gpt_forward.1} parent=0 // pred_check_branch
    %25 = sbr.rel (0) target = $region17
  $region16: #{gpt_forward.1} parent=0 // pred_region
    _
  $region17: #{gpt_forward.1} parent=0 // pred_fallthru
    _
  // Predicated region
  $region18: #{gpt_forward.1} parent=0 // pred_check
    _
  $region19: #{gpt_forward.1} parent=0 // pred_check_branch
    %27 = sbr.rel (0) target = $region21
  $region20: #{gpt_forward.1} parent=0 // pred_region
    _
  $region21: #{gpt_forward.1} parent=0 // pred_fallthru
    _
  // Predicated region
  $region22: #{gpt_forward.1} parent=0 // pred_check
    _
  $region23: #{gpt_forward.1} parent=0 // pred_check_branch
    %29 = sbr.rel (0) target = $region25
  $region24: #{gpt_forward.1} parent=0 // pred_region
    _
  $region25: #{gpt_forward.1} parent=0 // pred_fallthru
    _
  // Predicated region
  $region26: #{gpt_forward.1} parent=0 // pred_check
    _
  $region27: #{gpt_forward.1} parent=0 // pred_check_branch
    %31 = sbr.rel (0) target = $region29
  $region28: #{gpt_forward.1} parent=0 // pred_region
    _
  $region29: #{gpt_forward.1} parent=0 // pred_fallthru
    _
  // Predicated region
  $region30: #{gpt_forward.1} parent=0 // pred_check
    _
  $region31: #{gpt_forward.1} parent=0 // pred_check_branch
    %33 = sbr.rel (0) target = $region33
  $region32: #{gpt_forward.1} parent=0 // pred_region
    _
  $region33: #{gpt_forward.1} parent=0 // pred_fallthru
    _
  // Predicated region
  $region34: #{gpt_forward.1} parent=0 // pred_check
    _
  $region35: #{gpt_forward.1} parent=0 // pred_check_branch
    %35 = sbr.rel (0) target = $region37
  $region36: #{gpt_forward.1} parent=0 // pred_region
    _
  $region37: #{gpt_forward.1} parent=0 // pred_fallthru
    _
  // Predicated region
  $region38: #{gpt_forward.1} parent=0 // pred_check
    _
  $region39: #{gpt_forward.1} parent=0 // pred_check_branch
    %37 = sbr.rel (0) target = $region41
  $region40: #{gpt_forward.1} parent=0 // pred_region
    _
  $region41: #{gpt_forward.1} parent=0 // pred_fallthru
    _
  // Predicated region
  $region42: #{gpt_forward.1} parent=0 // pred_check
    _
  $region43: #{gpt_forward.1} parent=0 // pred_check_branch
    %39 = sbr.rel (0) target = $region45
  $region44: #{gpt_forward.1} parent=0 // pred_region
    _
  $region45: #{gpt_forward.1} parent=0 // pred_fallthru
    _
  // Predicated region
  $region46: #{gpt_forward.1} parent=0 // pred_check
    _
  $region47: #{gpt_forward.1} parent=0 // pred_check_branch
    %41 = sbr.rel (0) target = $region49
  $region48: #{gpt_forward.1} parent=0 // pred_region
    _
  $region49: #{gpt_forward.1} parent=0 // pred_fallthru
    _
  // Predicated region
  $region50: #{gpt_forward.1} parent=0 // pred_check
    _
  $region51: #{gpt_forward.1} parent=0 // pred_check_branch
    %43 = sbr.rel (0) target = $region53
  $region52: #{gpt_forward.1} parent=0 // pred_region
    _
  $region53: #{gpt_forward.1} parent=0 // pred_fallthru
    _
  %v44 = vld [vmem:[%s0] sm:$0xff]
  %v45 = vld [vmem:[%s0 + $0x8] sm:$0xff]
  %v46 = vlaneseq
  %v47 = vand.u32 %v46, 127
  %48 = vset.pattern.permute.xlu0 0
  %49 = vperm.xlu0 %48, %v44
  %v50 = vpop.permute.xlu0 %49
  %51 = vset.pattern.permute.xlu0 0
  %52 = vperm.xlu0 %51, %v45
  %v53 = vpop.permute.xlu0 %52
  %vm54 = vcmp.eq.s32.totalorder %v50, %v47
  %vm55 = vcmp.eq.s32.totalorder %v53, %v47
  %v56 = vsel %vm54, 1, 0
  %v57 = vsel %vm55, 1, 0
  %v58 = vcvt.s32.f32 %v56
  %v59 = vcvt.s32.f32 %v57
  %v60 = vld [vmem:[%s1] sm:$0xff]
  %v61 = vld [vmem:[%s1 + $0x8] sm:$0xff]
  %v62 = vld [vmem:[%s1 + $0x10] sm:$0xff]
  %v63 = vld [vmem:[%s1 + $0x18] sm:$0xff]
  %v64 = vld [vmem:[%s2] sm:$0xff]
  %v65 = vld [vmem:[%s2 + $0x8] sm:$0xff]
  %vm66 = vcmask 261120
  %v68 = vsel %vm66, %v58, 0
  %v71 = vsel %vm66, %v59, 0
  %73 = vmatprep.subr.mxu0 0.0
  %74 = vmatpush1.msra.mxu0 %v60
  %75 = vmatprep.subr.mxu0 0.0
  %76 = vmatpush1.msra.mxu0 %v61
  %77 = vmatprep.subr.mxu0 0.0
  %78 = vmatpush1.msra.mxu0 %v62
  %79 = vmatprep.subr.mxu0 0.0
  %80 = vmatpush1.msra.mxu0 %v63
  %81 = vmatprep.subr.mxu0 0.0
  %82 = vmatpush1.msra.mxu0 0.0
  %83 = vmatprep.subr.mxu0 0.0
  %84 = vmatpush1.msra.mxu0 0.0
  %85 = vmatprep.subr.mxu0 0.0
  %86 = vmatpush1.msra.mxu0 0.0
  %87 = vmatprep.subr.mxu0 0.0
  %88 = vmatpush1.msra.mxu0 0.0
  %89 = vmatprep.subr.mxu0 0.0
  %90 = vmatpush1.msra.mxu0 0.0
  %91 = vmatprep.subr.mxu0 0.0
  %92 = vmatpush1.msra.mxu0 0.0
  %93 = vmatprep.subr.mxu0 0.0
  %94 = vmatpush1.msra.mxu0 0.0
  %95 = vmatprep.subr.mxu0 0.0
  %96 = vmatpush1.msra.mxu0 0.0
  %97 = vmatprep.subr.mxu0 0.0
  %98 = vmatpush1.msra.mxu0 0.0
  %99 = vmatprep.subr.mxu0 0.0
  %100 = vmatpush1.msra.mxu0 0.0
  %101 = vmatprep.subr.mxu0 0.0
  %102 = vmatpush1.msra.mxu0 0.0
  %103 = vmatprep.subr.mxu0 0.0
  %104 = vmatpush1.msra.mxu0 0.0
  %105 = vmatprep.subr.mxu0 0.0
  %106 = vmatpush1.msra.mxu0 0.0
  %107 = vmatprep.subr.mxu0 0.0
  %108 = vmatpush1.msra.mxu0 0.0
  %109 = vmatprep.subr.mxu0 0.0
  %110 = vmatpush1.msra.mxu0 0.0
  %111 = vmatprep.subr.mxu0 0.0
  %112 = vmatpush1.msra.mxu0 0.0
  %113 = vmatprep.subr.mxu0 0.0
  %114 = vmatpush1.msra.mxu0 0.0
  %115 = vmatprep.subr.mxu0 0.0
  %116 = vmatpush1.msra.mxu0 0.0
  %117 = vmatprep.subr.mxu0 0.0
  %118 = vmatpush1.msra.mxu0 0.0
  %119 = vmatprep.subr.mxu0 0.0
  %120 = vmatpush1.msra.mxu0 0.0
  %121 = vmatprep.subr.mxu0 0.0
  %122 = vmatpush1.msra.mxu0 0.0
  %123 = vmatprep.subr.mxu0 0.0
  %124 = vmatpush1.msra.mxu0 0.0
  %125 = vmatprep.subr.mxu0 0.0
  %126 = vmatpush1.msra.mxu0 0.0
  %127 = vmatprep.subr.mxu0 0.0
  %128 = vmatpush1.msra.mxu0 0.0
  %129 = vmatprep.subr.mxu0 0.0
  %130 = vmatpush1.msra.mxu0 0.0
  %131 = vmatprep.subr.mxu0 0.0
  %132 = vmatpush1.msra.mxu0 0.0
  %133 = vmatprep.subr.mxu0 0.0
  %134 = vmatpush1.msra.mxu0 0.0
  %135 = vmatprep.subr.mxu0 0.0
  %136 = vmatpush1.msra.mxu0 0.0
  %137 = vmatprep.mubr.f32.mxu0 0.0
  %138 = vmatmul.mubr.f32.gmra.mrb[0].mxu0 %v68
  %v139 = vpop.f32.mrb[0].mxu0
  %v140 = vadd.f32 %v64, %v139
  %v141 = vpop.f32.mrb[0].mxu0
  %142 = vmatprep.mubr.f32.mxu0 0.0
  %143 = vmatmul.mubr.f32.gmra.mrb[0].mxu0 %v71
  %v144 = vpop.f32.mrb[0].mxu0
  %v145 = vadd.f32 %v65, %v144
  %v146 = vpop.f32.mrb[0].mxu0
  %147 = vdwg.mxu0
  %v148 = vld [vmem:[%s3] sm:$0xff]
  %v149 = vld [vmem:[%s3 + $0x8] sm:$0xff]
  %v150 = vld [vmem:[%s5] sm:$0xff]
  %v151 = vld [vmem:[%s5 + $0x8] sm:$0xff]
  %v152 = vld [vmem:[%s5 + $0x10] sm:$0xff]
  %v153 = vld [vmem:[%s5 + $0x18] sm:$0xff]
  %v154 = vld [vmem:[%s9] sm:$0x3f]
  %v155 = vld [vmem:[%s4] sm:$0xff]
  %v156 = vld [vmem:[%s4 + $0x8] sm:$0xff]
  %v157 = vld [vmem:[%s4 + $0x10] sm:$0xff]
  %v158 = vld [vmem:[%s4 + $0x18] sm:$0xff]
  %v160 = vsel %vm66, %v140, 0
  %v163 = vsel %vm66, %v145, 0
  %165 = vmatprep.subr.mxu0 0.0
  %166 = vmatpush1.msra.mxu0 %v155
  %167 = vmatprep.subr.mxu0 0.0
  %168 = vmatpush1.msra.mxu0 %v156
  %169 = vmatprep.subr.mxu0 0.0
  %170 = vmatpush1.msra.mxu0 %v157
  %171 = vmatprep.subr.mxu0 0.0
  %172 = vmatpush1.msra.mxu0 %v158
  %173 = vmatprep.subr.mxu0 0.0
  %174 = vmatpush1.msra.mxu0 0.0
  %175 = vmatprep.subr.mxu0 0.0
  %176 = vmatpush1.msra.mxu0 0.0
  %177 = vmatprep.subr.mxu0 0.0
  %178 = vmatpush1.msra.mxu0 0.0
  %179 = vmatprep.subr.mxu0 0.0
  %180 = vmatpush1.msra.mxu0 0.0
  %181 = vmatprep.subr.mxu0 0.0
  %182 = vmatpush1.msra.mxu0 0.0
  %183 = vmatprep.subr.mxu0 0.0
  %184 = vmatpush1.msra.mxu0 0.0
  %185 = vmatprep.subr.mxu0 0.0
  %186 = vmatpush1.msra.mxu0 0.0
  %187 = vmatprep.subr.mxu0 0.0
  %188 = vmatpush1.msra.mxu0 0.0
  %189 = vmatprep.subr.mxu0 0.0
  %190 = vmatpush1.msra.mxu0 0.0
  %191 = vmatprep.subr.mxu0 0.0
  %192 = vmatpush1.msra.mxu0 0.0
  %193 = vmatprep.subr.mxu0 0.0
  %194 = vmatpush1.msra.mxu0 0.0
  %195 = vmatprep.subr.mxu0 0.0
  %196 = vmatpush1.msra.mxu0 0.0
  %197 = vmatprep.subr.mxu0 0.0
  %198 = vmatpush1.msra.mxu0 0.0
  %199 = vmatprep.subr.mxu0 0.0
  %200 = vmatpush1.msra.mxu0 0.0
  %201 = vmatprep.subr.mxu0 0.0
  %202 = vmatpush1.msra.mxu0 0.0
  %203 = vmatprep.subr.mxu0 0.0
  %204 = vmatpush1.msra.mxu0 0.0
  %205 = vmatprep.subr.mxu0 0.0
  %206 = vmatpush1.msra.mxu0 0.0
  %207 = vmatprep.subr.mxu0 0.0
  %208 = vmatpush1.msra.mxu0 0.0
  %209 = vmatprep.subr.mxu0 0.0
  %210 = vmatpush1.msra.mxu0 0.0
  %211 = vmatprep.subr.mxu0 0.0
  %212 = vmatpush1.msra.mxu0 0.0
  %213 = vmatprep.subr.mxu0 0.0
  %214 = vmatpush1.msra.mxu0 0.0
  %215 = vmatprep.subr.mxu0 0.0
  %216 = vmatpush1.msra.mxu0 0.0
  %217 = vmatprep.subr.mxu0 0.0
  %218 = vmatpush1.msra.mxu0 0.0
  %219 = vmatprep.subr.mxu0 0.0
  %220 = vmatpush1.msra.mxu0 0.0
  %221 = vmatprep.subr.mxu0 0.0
  %222 = vmatpush1.msra.mxu0 0.0
  %223 = vmatprep.subr.mxu0 0.0
  %224 = vmatpush1.msra.mxu0 0.0
  %225 = vmatprep.subr.mxu0 0.0
  %226 = vmatpush1.msra.mxu0 0.0
  %227 = vmatprep.subr.mxu0 0.0
  %228 = vmatpush1.msra.mxu0 0.0
  %229 = vmatprep.mubr.f32.mxu0 0.0
  %230 = vmatmul.mubr.f32.gmra.mrb[0].mxu0 %v160
  %v231 = vpop.f32.mrb[0].mxu0
  %v232 = vadd.f32 0.0, %v231
  %v233 = vpop.f32.mrb[0].mxu0
  %234 = vmatprep.mubr.f32.mxu0 0.0
  %235 = vmatmul.mubr.f32.gmra.mrb[0].mxu0 %v163
  %v236 = vpop.f32.mrb[0].mxu0
  %v237 = vadd.f32 0.0, %v236
  %v238 = vpop.f32.mrb[0].mxu0
  %239 = vdwg.mxu0
  %242 = vrot.lane.b32.xlu0 %v232, 96
  %v243 = vpop.permute.xlu0 %242
  %244 = vrot.lane.b32.xlu0 %v237, 96
  %v245 = vpop.permute.xlu0 %244
  %vm246 = vcmask 64512
  %v247 = vsel %vm246, %v232, 0
  %v249 = vsel %vm246, %v237, 0
  %v251 = vsel %vm246, %v243, 0
  %v253 = vsel %vm246, %v245, 0
  %255 = vmatprep.subr.mxu0 0.0
  %256 = vmatpush1.xpose.msra.mxu0 %v251
  %257 = vmatprep.subr.mxu0 0.0
  %258 = vmatpush1.xpose.msra.mxu0 %v253
  %259 = vmatprep.subr.mxu0 0.0
  %260 = vmatpush1.xpose.msra.mxu0 0.0
  %261 = vmatprep.subr.mxu0 0.0
  %262 = vmatpush1.xpose.msra.mxu0 0.0
  %263 = vmatprep.subr.mxu0 0.0
  %264 = vmatpush1.xpose.msra.mxu0 0.0
  %265 = vmatprep.subr.mxu0 0.0
  %266 = vmatpush1.xpose.msra.mxu0 0.0
  %267 = vmatprep.subr.mxu0 0.0
  %268 = vmatpush1.xpose.msra.mxu0 0.0
  %269 = vmatprep.subr.mxu0 0.0
  %270 = vmatpush1.xpose.msra.mxu0 0.0
  %271 = vmatprep.subr.mxu0 0.0
  %272 = vmatpush1.xpose.msra.mxu0 0.0
  %273 = vmatprep.subr.mxu0 0.0
  %274 = vmatpush1.xpose.msra.mxu0 0.0
  %275 = vmatprep.subr.mxu0 0.0
  %276 = vmatpush1.xpose.msra.mxu0 0.0
  %277 = vmatprep.subr.mxu0 0.0
  %278 = vmatpush1.xpose.msra.mxu0 0.0
  %279 = vmatprep.subr.mxu0 0.0
  %280 = vmatpush1.xpose.msra.mxu0 0.0
  %281 = vmatprep.subr.mxu0 0.0
  %282 = vmatpush1.xpose.msra.mxu0 0.0
  %283 = vmatprep.subr.mxu0 0.0
  %284 = vmatpush1.xpose.msra.mxu0 0.0
  %285 = vmatprep.subr.mxu0 0.0
  %286 = vmatpush1.xpose.msra.mxu0 0.0
  %287 = vmatprep.subr.mxu0 0.0
  %288 = vmatpush1.xpose.msra.mxu0 0.0
  %289 = vmatprep.subr.mxu0 0.0
  %290 = vmatpush1.xpose.msra.mxu0 0.0
  %291 = vmatprep.subr.mxu0 0.0
  %292 = vmatpush1.xpose.msra.mxu0 0.0
  %293 = vmatprep.subr.mxu0 0.0
  %294 = vmatpush1.xpose.msra.mxu0 0.0
  %295 = vmatprep.subr.mxu0 0.0
  %296 = vmatpush1.xpose.msra.mxu0 0.0
  %297 = vmatprep.subr.mxu0 0.0
  %298 = vmatpush1.xpose.msra.mxu0 0.0
  %299 = vmatprep.subr.mxu0 0.0
  %300 = vmatpush1.xpose.msra.mxu0 0.0
  %301 = vmatprep.subr.mxu0 0.0
  %302 = vmatpush1.xpose.msra.mxu0 0.0
  %303 = vmatprep.subr.mxu0 0.0
  %304 = vmatpush1.xpose.msra.mxu0 0.0
  %305 = vmatprep.subr.mxu0 0.0
  %306 = vmatpush1.xpose.msra.mxu0 0.0
  %307 = vmatprep.subr.mxu0 0.0
  %308 = vmatpush1.xpose.msra.mxu0 0.0
  %309 = vmatprep.subr.mxu0 0.0
  %310 = vmatpush1.xpose.msra.mxu0 0.0
  %311 = vmatprep.subr.mxu0 0.0
  %312 = vmatpush1.xpose.msra.mxu0 0.0
  %313 = vmatprep.subr.mxu0 0.0
  %314 = vmatpush1.xpose.msra.mxu0 0.0
  %315 = vmatprep.subr.mxu0 0.0
  %316 = vmatpush1.xpose.msra.mxu0 0.0
  %317 = vmatprep.subr.mxu0 0.0
  %318 = vmatpush1.xpose.msra.mxu0 0.0
  %319 = vmatprep.mubr.f32.mxu0 0.0
  %320 = vmatmul.mubr.f32.gmra.mrb[0].mxu0 %v247
  %v321 = vpop.f32.mrb[0].mxu0
  %v322 = vadd.f32 0.0, %v321
  %v323 = vpop.f32.mrb[0].mxu0
  %324 = vmatprep.mubr.f32.mxu0 0.0
  %325 = vmatmul.mubr.f32.gmra.mrb[0].mxu0 %v249
  %v326 = vpop.f32.mrb[0].mxu0
  %v327 = vadd.f32 0.0, %v326
  %v328 = vpop.f32.mrb[0].mxu0
  %329 = vdwg.mxu0
  %v330 = vmul.f32 %v322, 2.828427
  %v331 = vmul.f32 %v327, 2.828427
  %v332 = vadd.f32 %v330, %v148
  %v333 = vadd.f32 %v331, %v149
  %vm334 = vcmask 130048
  %v335 = vsel %vm334, %v332, -inf
  %336 = vmax.xlane.f32.xlu0 %v335
  %v337 = vpop.xlane.xlu0 %336
  %v338 = vsel %vm334, %v333, -inf
  %339 = vmax.xlane.f32.xlu0 %v338
  %v340 = vpop.xlane.xlu0 %339
  %v341 = vsub.f32 %v332, %v337
  %v342 = vsub.f32 %v333, %v340
  %v343 = vmul.f32 %v341, 1.442695
  %v344 = vpow.pop %v343
  %v345 = vmul.f32 %v342, 1.442695
  %v346 = vpow.pop %v345
  %v347 = vsel %vm334, %v344, 0.0
  %348 = vadd.xlane.f32.xlu0 %v347
  %v349 = vpop.xlane.xlu0 %348
  %v350 = vsel %vm334, %v346, 0.0
  %351 = vadd.xlane.f32.xlu0 %v350
  %v352 = vpop.xlane.xlu0 %351
  %v353 = vrcp.pop %v349
  %v354 = vrcp.pop %v352
  %v355 = vmul.f32 %v344, %v353
  %v356 = vmul.f32 %v346, %v354
  %357 = vrot.lane.b32.xlu0 %v232, 64
  %v358 = vpop.permute.xlu0 %357
  %359 = vrot.lane.b32.xlu0 %v237, 64
  %v360 = vpop.permute.xlu0 %359
  %v364 = vsel %vm334, %v355, 0
  %v367 = vsel %vm334, %v356, 0
  %369 = vmatprep.subr.mxu0 0.0
  %370 = vmatpush1.msra.mxu0 %v358
  %371 = vmatprep.subr.mxu0 0.0
  %372 = vmatpush1.msra.mxu0 %v360
  %373 = vmatprep.subr.mxu0 0.0
  %374 = vmatpush1.msra.mxu0 0.0
  %375 = vmatprep.subr.mxu0 0.0
  %376 = vmatpush1.msra.mxu0 0.0
  %377 = vmatprep.subr.mxu0 0.0
  %378 = vmatpush1.msra.mxu0 0.0
  %379 = vmatprep.subr.mxu0 0.0
  %380 = vmatpush1.msra.mxu0 0.0
  %381 = vmatprep.subr.mxu0 0.0
  %382 = vmatpush1.msra.mxu0 0.0
  %383 = vmatprep.subr.mxu0 0.0
  %384 = vmatpush1.msra.mxu0 0.0
  %385 = vmatprep.subr.mxu0 0.0
  %386 = vmatpush1.msra.mxu0 0.0
  %387 = vmatprep.subr.mxu0 0.0
  %388 = vmatpush1.msra.mxu0 0.0
  %389 = vmatprep.subr.mxu0 0.0
  %390 = vmatpush1.msra.mxu0 0.0
  %391 = vmatprep.subr.mxu0 0.0
  %392 = vmatpush1.msra.mxu0 0.0
  %393 = vmatprep.subr.mxu0 0.0
  %394 = vmatpush1.msra.mxu0 0.0
  %395 = vmatprep.subr.mxu0 0.0
  %396 = vmatpush1.msra.mxu0 0.0
  %397 = vmatprep.subr.mxu0 0.0
  %398 = vmatpush1.msra.mxu0 0.0
  %399 = vmatprep.subr.mxu0 0.0
  %400 = vmatpush1.msra.mxu0 0.0
  %401 = vmatprep.subr.mxu0 0.0
  %402 = vmatpush1.msra.mxu0 0.0
  %403 = vmatprep.subr.mxu0 0.0
  %404 = vmatpush1.msra.mxu0 0.0
  %405 = vmatprep.subr.mxu0 0.0
  %406 = vmatpush1.msra.mxu0 0.0
  %407 = vmatprep.subr.mxu0 0.0
  %408 = vmatpush1.msra.mxu0 0.0
  %409 = vmatprep.subr.mxu0 0.0
  %410 = vmatpush1.msra.mxu0 0.0
  %411 = vmatprep.subr.mxu0 0.0
  %412 = vmatpush1.msra.mxu0 0.0
  %413 = vmatprep.subr.mxu0 0.0
  %414 = vmatpush1.msra.mxu0 0.0
  %415 = vmatprep.subr.mxu0 0.0
  %416 = vmatpush1.msra.mxu0 0.0
  %417 = vmatprep.subr.mxu0 0.0
  %418 = vmatpush1.msra.mxu0 0.0
  %419 = vmatprep.subr.mxu0 0.0
  %420 = vmatpush1.msra.mxu0 0.0
  %421 = vmatprep.subr.mxu0 0.0
  %422 = vmatpush1.msra.mxu0 0.0
  %423 = vmatprep.subr.mxu0 0.0
  %424 = vmatpush1.msra.mxu0 0.0
  %425 = vmatprep.subr.mxu0 0.0
  %426 = vmatpush1.msra.mxu0 0.0
  %427 = vmatprep.subr.mxu0 0.0
  %428 = vmatpush1.msra.mxu0 0.0
  %429 = vmatprep.subr.mxu0 0.0
  %430 = vmatpush1.msra.mxu0 0.0
  %431 = vmatprep.subr.mxu0 0.0
  %432 = vmatpush1.msra.mxu0 0.0
  %433 = vmatprep.mubr.f32.mxu0 0.0
  %434 = vmatmul.mubr.f32.gmra.mrb[0].mxu0 %v364
  %v435 = vpop.f32.mrb[0].mxu0
  %v436 = vadd.f32 0.0, %v435
  %v437 = vpop.f32.mrb[0].mxu0
  %438 = vmatprep.mubr.f32.mxu0 0.0
  %439 = vmatmul.mubr.f32.gmra.mrb[0].mxu0 %v367
  %v440 = vpop.f32.mrb[0].mxu0
  %v441 = vadd.f32 0.0, %v440
  %v442 = vpop.f32.mrb[0].mxu0
  %443 = vdwg.mxu0
  %444 = vrot.lane.b32.xlu0 %v232, 120
  %v445 = vpop.permute.xlu0 %444
  %446 = vrot.lane.b32.xlu0 %v237, 120
  %v447 = vpop.permute.xlu0 %446
  %448 = vrot.lane.b32.xlu0 %v232, 88
  %v449 = vpop.permute.xlu0 %448
  %450 = vrot.lane.b32.xlu0 %v237, 88
  %v451 = vpop.permute.xlu0 %450
  %v452 = vsel %vm246, %v445, 0
  %v454 = vsel %vm246, %v447, 0
  %v456 = vsel %vm246, %v449, 0
  %v458 = vsel %vm246, %v451, 0
  %460 = vmatprep.subr.mxu0 0.0
  %461 = vmatpush1.xpose.msra.mxu0 %v456
  %462 = vmatprep.subr.mxu0 0.0
  %463 = vmatpush1.xpose.msra.mxu0 %v458
  %464 = vmatprep.subr.mxu0 0.0
  %465 = vmatpush1.xpose.msra.mxu0 0.0
  %466 = vmatprep.subr.mxu0 0.0
  %467 = vmatpush1.xpose.msra.mxu0 0.0
  %468 = vmatprep.subr.mxu0 0.0
  %469 = vmatpush1.xpose.msra.mxu0 0.0
  %470 = vmatprep.subr.mxu0 0.0
  %471 = vmatpush1.xpose.msra.mxu0 0.0
  %472 = vmatprep.subr.mxu0 0.0
  %473 = vmatpush1.xpose.msra.mxu0 0.0
  %474 = vmatprep.subr.mxu0 0.0
  %475 = vmatpush1.xpose.msra.mxu0 0.0
  %476 = vmatprep.subr.mxu0 0.0
  %477 = vmatpush1.xpose.msra.mxu0 0.0
  %478 = vmatprep.subr.mxu0 0.0
  %479 = vmatpush1.xpose.msra.mxu0 0.0
  %480 = vmatprep.subr.mxu0 0.0
  %481 = vmatpush1.xpose.msra.mxu0 0.0
  %482 = vmatprep.subr.mxu0 0.0
  %483 = vmatpush1.xpose.msra.mxu0 0.0
  %484 = vmatprep.subr.mxu0 0.0
  %485 = vmatpush1.xpose.msra.mxu0 0.0
  %486 = vmatprep.subr.mxu0 0.0
  %487 = vmatpush1.xpose.msra.mxu0 0.0
  %488 = vmatprep.subr.mxu0 0.0
  %489 = vmatpush1.xpose.msra.mxu0 0.0
  %490 = vmatprep.subr.mxu0 0.0
  %491 = vmatpush1.xpose.msra.mxu0 0.0
  %492 = vmatprep.subr.mxu0 0.0
  %493 = vmatpush1.xpose.msra.mxu0 0.0
  %494 = vmatprep.subr.mxu0 0.0
  %495 = vmatpush1.xpose.msra.mxu0 0.0
  %496 = vmatprep.subr.mxu0 0.0
  %497 = vmatpush1.xpose.msra.mxu0 0.0
  %498 = vmatprep.subr.mxu0 0.0
  %499 = vmatpush1.xpose.msra.mxu0 0.0
  %500 = vmatprep.subr.mxu0 0.0
  %501 = vmatpush1.xpose.msra.mxu0 0.0
  %502 = vmatprep.subr.mxu0 0.0
  %503 = vmatpush1.xpose.msra.mxu0 0.0
  %504 = vmatprep.subr.mxu0 0.0
  %505 = vmatpush1.xpose.msra.mxu0 0.0
  %506 = vmatprep.subr.mxu0 0.0
  %507 = vmatpush1.xpose.msra.mxu0 0.0
  %508 = vmatprep.subr.mxu0 0.0
  %509 = vmatpush1.xpose.msra.mxu0 0.0
  %510 = vmatprep.subr.mxu0 0.0
  %511 = vmatpush1.xpose.msra.mxu0 0.0
  %512 = vmatprep.subr.mxu0 0.0
  %513 = vmatpush1.xpose.msra.mxu0 0.0
  %514 = vmatprep.subr.mxu0 0.0
  %515 = vmatpush1.xpose.msra.mxu0 0.0
  %516 = vmatprep.subr.mxu0 0.0
  %517 = vmatpush1.xpose.msra.mxu0 0.0
  %518 = vmatprep.subr.mxu0 0.0
  %519 = vmatpush1.xpose.msra.mxu0 0.0
  %520 = vmatprep.subr.mxu0 0.0
  %521 = vmatpush1.xpose.msra.mxu0 0.0
  %522 = vmatprep.subr.mxu0 0.0
  %523 = vmatpush1.xpose.msra.mxu0 0.0
  %524 = vmatprep.mubr.f32.mxu0 0.0
  %525 = vmatmul.mubr.f32.gmra.mrb[0].mxu0 %v452
  %v526 = vpop.f32.mrb[0].mxu0
  %v527 = vadd.f32 0.0, %v526
  %v528 = vpop.f32.mrb[0].mxu0
  %529 = vmatprep.mubr.f32.mxu0 0.0
  %530 = vmatmul.mubr.f32.gmra.mrb[0].mxu0 %v454
  %v531 = vpop.f32.mrb[0].mxu0
  %v532 = vadd.f32 0.0, %v531
  %v533 = vpop.f32.mrb[0].mxu0
  %534 = vdwg.mxu0
  %v535 = vmul.f32 %v527, 2.828427
  %v536 = vmul.f32 %v532, 2.828427
  %v537 = vadd.f32 %v535, %v148
  %v538 = vadd.f32 %v536, %v149
  %v539 = vsel %vm334, %v537, -inf
  %540 = vmax.xlane.f32.xlu0 %v539
  %v541 = vpop.xlane.xlu0 %540
  %v542 = vsel %vm334, %v538, -inf
  %543 = vmax.xlane.f32.xlu0 %v542
  %v544 = vpop.xlane.xlu0 %543
  %v545 = vsub.f32 %v537, %v541
  %v546 = vsub.f32 %v538, %v544
  %v547 = vmul.f32 %v545, 1.442695
  %v548 = vpow.pop %v547
  %v549 = vmul.f32 %v546, 1.442695
  %v550 = vpow.pop %v549
  %v551 = vsel %vm334, %v548, 0.0
  %552 = vadd.xlane.f32.xlu0 %v551
  %v553 = vpop.xlane.xlu0 %552
  %v554 = vsel %vm334, %v550, 0.0
  %555 = vadd.xlane.f32.xlu0 %v554
  %v556 = vpop.xlane.xlu0 %555
  %v557 = vrcp.pop %v553
  %v558 = vrcp.pop %v556
  %v559 = vmul.f32 %v548, %v557
  %v560 = vmul.f32 %v550, %v558
  %561 = vrot.lane.b32.xlu0 %v232, 56
  %v562 = vpop.permute.xlu0 %561
  %563 = vrot.lane.b32.xlu0 %v237, 56
  %v564 = vpop.permute.xlu0 %563
  %v568 = vsel %vm334, %v559, 0
  %v571 = vsel %vm334, %v560, 0
  %573 = vmatprep.subr.mxu0 0.0
  %574 = vmatpush1.msra.mxu0 %v562
  %575 = vmatprep.subr.mxu0 0.0
  %576 = vmatpush1.msra.mxu0 %v564
  %577 = vmatprep.subr.mxu0 0.0
  %578 = vmatpush1.msra.mxu0 0.0
  %579 = vmatprep.subr.mxu0 0.0
  %580 = vmatpush1.msra.mxu0 0.0
  %581 = vmatprep.subr.mxu0 0.0
  %582 = vmatpush1.msra.mxu0 0.0
  %583 = vmatprep.subr.mxu0 0.0
  %584 = vmatpush1.msra.mxu0 0.0
  %585 = vmatprep.subr.mxu0 0.0
  %586 = vmatpush1.msra.mxu0 0.0
  %587 = vmatprep.subr.mxu0 0.0
  %588 = vmatpush1.msra.mxu0 0.0
  %589 = vmatprep.subr.mxu0 0.0
  %590 = vmatpush1.msra.mxu0 0.0
  %591 = vmatprep.subr.mxu0 0.0
  %592 = vmatpush1.msra.mxu0 0.0
  %593 = vmatprep.subr.mxu0 0.0
  %594 = vmatpush1.msra.mxu0 0.0
  %595 = vmatprep.subr.mxu0 0.0
  %596 = vmatpush1.msra.mxu0 0.0
  %597 = vmatprep.subr.mxu0 0.0
  %598 = vmatpush1.msra.mxu0 0.0
  %599 = vmatprep.subr.mxu0 0.0
  %600 = vmatpush1.msra.mxu0 0.0
  %601 = vmatprep.subr.mxu0 0.0
  %602 = vmatpush1.msra.mxu0 0.0
  %603 = vmatprep.subr.mxu0 0.0
  %604 = vmatpush1.msra.mxu0 0.0
  %605 = vmatprep.subr.mxu0 0.0
  %606 = vmatpush1.msra.mxu0 0.0
  %607 = vmatprep.subr.mxu0 0.0
  %608 = vmatpush1.msra.mxu0 0.0
  %609 = vmatprep.subr.mxu0 0.0
  %610 = vmatpush1.msra.mxu0 0.0
  %611 = vmatprep.subr.mxu0 0.0
  %612 = vmatpush1.msra.mxu0 0.0
  %613 = vmatprep.subr.mxu0 0.0
  %614 = vmatpush1.msra.mxu0 0.0
  %615 = vmatprep.subr.mxu0 0.0
  %616 = vmatpush1.msra.mxu0 0.0
  %617 = vmatprep.subr.mxu0 0.0
  %618 = vmatpush1.msra.mxu0 0.0
  %619 = vmatprep.subr.mxu0 0.0
  %620 = vmatpush1.msra.mxu0 0.0
  %621 = vmatprep.subr.mxu0 0.0
  %622 = vmatpush1.msra.mxu0 0.0
  %623 = vmatprep.subr.mxu0 0.0
  %624 = vmatpush1.msra.mxu0 0.0
  %625 = vmatprep.subr.mxu0 0.0
  %626 = vmatpush1.msra.mxu0 0.0
  %627 = vmatprep.subr.mxu0 0.0
  %628 = vmatpush1.msra.mxu0 0.0
  %629 = vmatprep.subr.mxu0 0.0
  %630 = vmatpush1.msra.mxu0 0.0
  %631 = vmatprep.subr.mxu0 0.0
  %632 = vmatpush1.msra.mxu0 0.0
  %633 = vmatprep.subr.mxu0 0.0
  %634 = vmatpush1.msra.mxu0 0.0
  %635 = vmatprep.subr.mxu0 0.0
  %636 = vmatpush1.msra.mxu0 0.0
  %637 = vmatprep.mubr.f32.mxu0 0.0
  %638 = vmatmul.mubr.f32.gmra.mrb[0].mxu0 %v568
  %v639 = vpop.f32.mrb[0].mxu0
  %v640 = vadd.f32 0.0, %v639
  %v641 = vpop.f32.mrb[0].mxu0
  %642 = vmatprep.mubr.f32.mxu0 0.0
  %643 = vmatmul.mubr.f32.gmra.mrb[0].mxu0 %v571
  %v644 = vpop.f32.mrb[0].mxu0
  %v645 = vadd.f32 0.0, %v644
  %v646 = vpop.f32.mrb[0].mxu0
  %647 = vdwg.mxu0
  %v649 = vsel %vm246, %v640, 0
  %v652 = vsel %vm246, %v645, 0
  %654 = vmatprep.subr.mxu0 0.0
  %655 = vmatpush1.msra.mxu0 %v151
  %656 = vmatprep.subr.mxu0 0.0
  %657 = vmatpush1.msra.mxu0 0.0
  %658 = vmatprep.subr.mxu0 0.0
  %659 = vmatpush1.msra.mxu0 0.0
  %660 = vmatprep.subr.mxu0 0.0
  %661 = vmatpush1.msra.mxu0 0.0
  %662 = vmatprep.subr.mxu0 0.0
  %663 = vmatpush1.msra.mxu0 0.0
  %664 = vmatprep.subr.mxu0 0.0
  %665 = vmatpush1.msra.mxu0 0.0
  %666 = vmatprep.subr.mxu0 0.0
  %667 = vmatpush1.msra.mxu0 0.0
  %668 = vmatprep.subr.mxu0 0.0
  %669 = vmatpush1.msra.mxu0 0.0
  %670 = vmatprep.subr.mxu0 0.0
  %671 = vmatpush1.msra.mxu0 0.0
  %672 = vmatprep.subr.mxu0 0.0
  %673 = vmatpush1.msra.mxu0 0.0
  %674 = vmatprep.subr.mxu0 0.0
  %675 = vmatpush1.msra.mxu0 0.0
  %676 = vmatprep.subr.mxu0 0.0
  %677 = vmatpush1.msra.mxu0 0.0
  %678 = vmatprep.subr.mxu0 0.0
  %679 = vmatpush1.msra.mxu0 0.0
  %680 = vmatprep.subr.mxu0 0.0
  %681 = vmatpush1.msra.mxu0 0.0
  %682 = vmatprep.subr.mxu0 0.0
  %683 = vmatpush1.msra.mxu0 0.0
  %684 = vmatprep.subr.mxu0 0.0
  %685 = vmatpush1.msra.mxu0 0.0
  %686 = vmatprep.subr.mxu0 0.0
  %687 = vmatpush1.msra.mxu0 0.0
  %688 = vmatprep.subr.mxu0 0.0
  %689 = vmatpush1.msra.mxu0 0.0
  %690 = vmatprep.subr.mxu0 0.0
  %691 = vmatpush1.msra.mxu0 0.0
  %692 = vmatprep.subr.mxu0 0.0
  %693 = vmatpush1.msra.mxu0 0.0
  %694 = vmatprep.subr.mxu0 0.0
  %695 = vmatpush1.msra.mxu0 0.0
  %696 = vmatprep.subr.mxu0 0.0
  %697 = vmatpush1.msra.mxu0 0.0
  %698 = vmatprep.subr.mxu0 0.0
  %699 = vmatpush1.msra.mxu0 0.0
  %700 = vmatprep.subr.mxu0 0.0
  %701 = vmatpush1.msra.mxu0 0.0
  %702 = vmatprep.subr.mxu0 0.0
  %703 = vmatpush1.msra.mxu0 0.0
  %704 = vmatprep.subr.mxu0 0.0
  %705 = vmatpush1.msra.mxu0 0.0
  %706 = vmatprep.subr.mxu0 0.0
  %707 = vmatpush1.msra.mxu0 0.0
  %708 = vmatprep.subr.mxu0 0.0
  %709 = vmatpush1.msra.mxu0 0.0
  %710 = vmatprep.subr.mxu0 0.0
  %711 = vmatpush1.msra.mxu0 0.0
  %712 = vmatprep.subr.mxu0 0.0
  %713 = vmatpush1.msra.mxu0 0.0
  %714 = vmatprep.subr.mxu0 0.0
  %715 = vmatpush1.msra.mxu0 0.0
  %716 = vmatprep.subr.mxu0 0.0
  %717 = vmatpush1.msra.mxu0 0.0
  %718 = vmatprep.mubr.f32.mxu0 0.0
  %719 = vmatmul.mubr.f32.gmra.mrb[0].mxu0 %v649
  %v720 = vpop.f32.mrb[0].mxu0
  %v721 = vadd.f32 0.0, %v720
  %v722 = vpop.f32.mrb[0].mxu0
  %723 = vmatprep.mubr.f32.mxu0 0.0
  %724 = vmatmul.mubr.f32.gmra.mrb[0].mxu0 %v652
  %v725 = vpop.f32.mrb[0].mxu0
  %v726 = vadd.f32 0.0, %v725
  %v727 = vpop.f32.mrb[0].mxu0
  %728 = vdwg.mxu0
  %v730 = vsel %vm246, %v436, 0
  %v733 = vsel %vm246, %v441, 0
  %735 = vmatprep.subr.mxu0 0.0
  %736 = vmatpush1.msra.mxu0 %v150
  %737 = vmatprep.subr.mxu0 0.0
  %738 = vmatpush1.msra.mxu0 0.0
  %739 = vmatprep.subr.mxu0 0.0
  %740 = vmatpush1.msra.mxu0 0.0
  %741 = vmatprep.subr.mxu0 0.0
  %742 = vmatpush1.msra.mxu0 0.0
  %743 = vmatprep.subr.mxu0 0.0
  %744 = vmatpush1.msra.mxu0 0.0
  %745 = vmatprep.subr.mxu0 0.0
  %746 = vmatpush1.msra.mxu0 0.0
  %747 = vmatprep.subr.mxu0 0.0
  %748 = vmatpush1.msra.mxu0 0.0
  %749 = vmatprep.subr.mxu0 0.0
  %750 = vmatpush1.msra.mxu0 0.0
  %751 = vmatprep.subr.mxu0 0.0
  %752 = vmatpush1.msra.mxu0 0.0
  %753 = vmatprep.subr.mxu0 0.0
  %754 = vmatpush1.msra.mxu0 0.0
  %755 = vmatprep.subr.mxu0 0.0
  %756 = vmatpush1.msra.mxu0 0.0
  %757 = vmatprep.subr.mxu0 0.0
  %758 = vmatpush1.msra.mxu0 0.0
  %759 = vmatprep.subr.mxu0 0.0
  %760 = vmatpush1.msra.mxu0 0.0
  %761 = vmatprep.subr.mxu0 0.0
  %762 = vmatpush1.msra.mxu0 0.0
  %763 = vmatprep.subr.mxu0 0.0
  %764 = vmatpush1.msra.mxu0 0.0
  %765 = vmatprep.subr.mxu0 0.0
  %766 = vmatpush1.msra.mxu0 0.0
  %767 = vmatprep.subr.mxu0 0.0
  %768 = vmatpush1.msra.mxu0 0.0
  %769 = vmatprep.subr.mxu0 0.0
  %770 = vmatpush1.msra.mxu0 0.0
  %771 = vmatprep.subr.mxu0 0.0
  %772 = vmatpush1.msra.mxu0 0.0
  %773 = vmatprep.subr.mxu0 0.0
  %774 = vmatpush1.msra.mxu0 0.0
  %775 = vmatprep.subr.mxu0 0.0
  %776 = vmatpush1.msra.mxu0 0.0
  %777 = vmatprep.subr.mxu0 0.0
  %778 = vmatpush1.msra.mxu0 0.0
  %779 = vmatprep.subr.mxu0 0.0
  %780 = vmatpush1.msra.mxu0 0.0
  %781 = vmatprep.subr.mxu0 0.0
  %782 = vmatpush1.msra.mxu0 0.0
  %783 = vmatprep.subr.mxu0 0.0
  %784 = vmatpush1.msra.mxu0 0.0
  %785 = vmatprep.subr.mxu0 0.0
  %786 = vmatpush1.msra.mxu0 0.0
  %787 = vmatprep.subr.mxu0 0.0
  %788 = vmatpush1.msra.mxu0 0.0
  %789 = vmatprep.subr.mxu0 0.0
  %790 = vmatpush1.msra.mxu0 0.0
  %791 = vmatprep.subr.mxu0 0.0
  %792 = vmatpush1.msra.mxu0 0.0
  %793 = vmatprep.subr.mxu0 0.0
  %794 = vmatpush1.msra.mxu0 0.0
  %795 = vmatprep.subr.mxu0 0.0
  %796 = vmatpush1.msra.mxu0 0.0
  %797 = vmatprep.subr.mxu0 0.0
  %798 = vmatpush1.msra.mxu0 0.0
  %799 = vmatprep.mubr.f32.mxu0 0.0
  %800 = vmatmul.mubr.f32.gmra.mrb[0].mxu0 %v730
  %v801 = vpop.f32.mrb[0].mxu0
  %v802 = vadd.f32 %v721, %v801
  %v803 = vpop.f32.mrb[0].mxu0
  %804 = vmatprep.mubr.f32.mxu0 0.0
  %805 = vmatmul.mubr.f32.gmra.mrb[0].mxu0 %v733
  %v806 = vpop.f32.mrb[0].mxu0
  %v807 = vadd.f32 %v726, %v806
  %v808 = vpop.f32.mrb[0].mxu0
  %809 = vdwg.mxu0
  %810 = vrot.lane.b32.xlu0 %v232, 112
  %v811 = vpop.permute.xlu0 %810
  %812 = vrot.lane.b32.xlu0 %v237, 112
  %v813 = vpop.permute.xlu0 %812
  %814 = vrot.lane.b32.xlu0 %v232, 80
  %v815 = vpop.permute.xlu0 %814
  %816 = vrot.lane.b32.xlu0 %v237, 80
  %v817 = vpop.permute.xlu0 %816
  %v818 = vsel %vm246, %v811, 0
  %v820 = vsel %vm246, %v813, 0
  %v822 = vsel %vm246, %v815, 0
  %v824 = vsel %vm246, %v817, 0
  %826 = vmatprep.subr.mxu0 0.0
  %827 = vmatpush1.xpose.msra.mxu0 %v822
  %828 = vmatprep.subr.mxu0 0.0
  %829 = vmatpush1.xpose.msra.mxu0 %v824
  %830 = vmatprep.subr.mxu0 0.0
  %831 = vmatpush1.xpose.msra.mxu0 0.0
  %832 = vmatprep.subr.mxu0 0.0
  %833 = vmatpush1.xpose.msra.mxu0 0.0
  %834 = vmatprep.subr.mxu0 0.0
  %835 = vmatpush1.xpose.msra.mxu0 0.0
  %836 = vmatprep.subr.mxu0 0.0
  %837 = vmatpush1.xpose.msra.mxu0 0.0
  %838 = vmatprep.subr.mxu0 0.0
  %839 = vmatpush1.xpose.msra.mxu0 0.0
  %840 = vmatprep.subr.mxu0 0.0
  %841 = vmatpush1.xpose.msra.mxu0 0.0
  %842 = vmatprep.subr.mxu0 0.0
  %843 = vmatpush1.xpose.msra.mxu0 0.0
  %844 = vmatprep.subr.mxu0 0.0
  %845 = vmatpush1.xpose.msra.mxu0 0.0
  %846 = vmatprep.subr.mxu0 0.0
  %847 = vmatpush1.xpose.msra.mxu0 0.0
  %848 = vmatprep.subr.mxu0 0.0
  %849 = vmatpush1.xpose.msra.mxu0 0.0
  %850 = vmatprep.subr.mxu0 0.0
  %851 = vmatpush1.xpose.msra.mxu0 0.0
  %852 = vmatprep.subr.mxu0 0.0
  %853 = vmatpush1.xpose.msra.mxu0 0.0
  %854 = vmatprep.subr.mxu0 0.0
  %855 = vmatpush1.xpose.msra.mxu0 0.0
  %856 = vmatprep.subr.mxu0 0.0
  %857 = vmatpush1.xpose.msra.mxu0 0.0
  %858 = vmatprep.subr.mxu0 0.0
  %859 = vmatpush1.xpose.msra.mxu0 0.0
  %860 = vmatprep.subr.mxu0 0.0
  %861 = vmatpush1.xpose.msra.mxu0 0.0
  %862 = vmatprep.subr.mxu0 0.0
  %863 = vmatpush1.xpose.msra.mxu0 0.0
  %864 = vmatprep.subr.mxu0 0.0
  %865 = vmatpush1.xpose.msra.mxu0 0.0
  %866 = vmatprep.subr.mxu0 0.0
  %867 = vmatpush1.xpose.msra.mxu0 0.0
  %868 = vmatprep.subr.mxu0 0.0
  %869 = vmatpush1.xpose.msra.mxu0 0.0
  %870 = vmatprep.subr.mxu0 0.0
  %871 = vmatpush1.xpose.msra.mxu0 0.0
  %872 = vmatprep.subr.mxu0 0.0
  %873 = vmatpush1.xpose.msra.mxu0 0.0
  %874 = vmatprep.subr.mxu0 0.0
  %875 = vmatpush1.xpose.msra.mxu0 0.0
  %876 = vmatprep.subr.mxu0 0.0
  %877 = vmatpush1.xpose.msra.mxu0 0.0
  %878 = vmatprep.subr.mxu0 0.0
  %879 = vmatpush1.xpose.msra.mxu0 0.0
  %880 = vmatprep.subr.mxu0 0.0
  %881 = vmatpush1.xpose.msra.mxu0 0.0
  %882 = vmatprep.subr.mxu0 0.0
  %883 = vmatpush1.xpose.msra.mxu0 0.0
  %884 = vmatprep.subr.mxu0 0.0
  %885 = vmatpush1.xpose.msra.mxu0 0.0
  %886 = vmatprep.subr.mxu0 0.0
  %887 = vmatpush1.xpose.msra.mxu0 0.0
  %888 = vmatprep.subr.mxu0 0.0
  %889 = vmatpush1.xpose.msra.mxu0 0.0
  %890 = vmatprep.mubr.f32.mxu0 0.0
  %891 = vmatmul.mubr.f32.gmra.mrb[0].mxu0 %v818
  %v892 = vpop.f32.mrb[0].mxu0
  %v893 = vadd.f32 0.0, %v892
  %v894 = vpop.f32.mrb[0].mxu0
  %895 = vmatprep.mubr.f32.mxu0 0.0
  %896 = vmatmul.mubr.f32.gmra.mrb[0].mxu0 %v820
  %v897 = vpop.f32.mrb[0].mxu0
  %v898 = vadd.f32 0.0, %v897
  %v899 = vpop.f32.mrb[0].mxu0
  %900 = vdwg.mxu0
  %v901 = vmul.f32 %v893, 2.828427
  %v902 = vmul.f32 %v898, 2.828427
  %v903 = vadd.f32 %v901, %v148
  %v904 = vadd.f32 %v902, %v149
  %v905 = vsel %vm334, %v903, -inf
  %906 = vmax.xlane.f32.xlu0 %v905
  %v907 = vpop.xlane.xlu0 %906
  %v908 = vsel %vm334, %v904, -inf
  %909 = vmax.xlane.f32.xlu0 %v908
  %v910 = vpop.xlane.xlu0 %909
  %v911 = vsub.f32 %v903, %v907
  %v912 = vsub.f32 %v904, %v910
  %v913 = vmul.f32 %v911, 1.442695
  %v914 = vpow.pop %v913
  %v915 = vmul.f32 %v912, 1.442695
  %v916 = vpow.pop %v915
  %v917 = vsel %vm334, %v914, 0.0
  %918 = vadd.xlane.f32.xlu0 %v917
  %v919 = vpop.xlane.xlu0 %918
  %v920 = vsel %vm334, %v916, 0.0
  %921 = vadd.xlane.f32.xlu0 %v920
  %v922 = vpop.xlane.xlu0 %921
  %v923 = vrcp.pop %v919
  %v924 = vrcp.pop %v922
  %v925 = vmul.f32 %v914, %v923
  %v926 = vmul.f32 %v916, %v924
  %927 = vrot.lane.b32.xlu0 %v232, 48
  %v928 = vpop.permute.xlu0 %927
  %929 = vrot.lane.b32.xlu0 %v237, 48
  %v930 = vpop.permute.xlu0 %929
  %v934 = vsel %vm334, %v925, 0
  %v937 = vsel %vm334, %v926, 0
  %939 = vmatprep.subr.mxu0 0.0
  %940 = vmatpush1.msra.mxu0 %v928
  %941 = vmatprep.subr.mxu0 0.0
  %942 = vmatpush1.msra.mxu0 %v930
  %943 = vmatprep.subr.mxu0 0.0
  %944 = vmatpush1.msra.mxu0 0.0
  %945 = vmatprep.subr.mxu0 0.0
  %946 = vmatpush1.msra.mxu0 0.0
  %947 = vmatprep.subr.mxu0 0.0
  %948 = vmatpush1.msra.mxu0 0.0
  %949 = vmatprep.subr.mxu0 0.0
  %950 = vmatpush1.msra.mxu0 0.0
  %951 = vmatprep.subr.mxu0 0.0
  %952 = vmatpush1.msra.mxu0 0.0
  %953 = vmatprep.subr.mxu0 0.0
  %954 = vmatpush1.msra.mxu0 0.0
  %955 = vmatprep.subr.mxu0 0.0
  %956 = vmatpush1.msra.mxu0 0.0
  %957 = vmatprep.subr.mxu0 0.0
  %958 = vmatpush1.msra.mxu0 0.0
  %959 = vmatprep.subr.mxu0 0.0
  %960 = vmatpush1.msra.mxu0 0.0
  %961 = vmatprep.subr.mxu0 0.0
  %962 = vmatpush1.msra.mxu0 0.0
  %963 = vmatprep.subr.mxu0 0.0
  %964 = vmatpush1.msra.mxu0 0.0
  %965 = vmatprep.subr.mxu0 0.0
  %966 = vmatpush1.msra.mxu0 0.0
  %967 = vmatprep.subr.mxu0 0.0
  %968 = vmatpush1.msra.mxu0 0.0
  %969 = vmatprep.subr.mxu0 0.0
  %970 = vmatpush1.msra.mxu0 0.0
  %971 = vmatprep.subr.mxu0 0.0
  %972 = vmatpush1.msra.mxu0 0.0
  %973 = vmatprep.subr.mxu0 0.0
  %974 = vmatpush1.msra.mxu0 0.0
  %975 = vmatprep.subr.mxu0 0.0
  %976 = vmatpush1.msra.mxu0 0.0
  %977 = vmatprep.subr.mxu0 0.0
  %978 = vmatpush1.msra.mxu0 0.0
  %979 = vmatprep.subr.mxu0 0.0
  %980 = vmatpush1.msra.mxu0 0.0
  %981 = vmatprep.subr.mxu0 0.0
  %982 = vmatpush1.msra.mxu0 0.0
  %983 = vmatprep.subr.mxu0 0.0
  %984 = vmatpush1.msra.mxu0 0.0
  %985 = vmatprep.subr.mxu0 0.0
  %986 = vmatpush1.msra.mxu0 0.0
  %987 = vmatprep.subr.mxu0 0.0
  %988 = vmatpush1.msra.mxu0 0.0
  %989 = vmatprep.subr.mxu0 0.0
  %990 = vmatpush1.msra.mxu0 0.0
  %991 = vmatprep.subr.mxu0 0.0
  %992 = vmatpush1.msra.mxu0 0.0
  %993 = vmatprep.subr.mxu0 0.0
  %994 = vmatpush1.msra.mxu0 0.0
  %995 = vmatprep.subr.mxu0 0.0
  %996 = vmatpush1.msra.mxu0 0.0
  %997 = vmatprep.subr.mxu0 0.0
  %998 = vmatpush1.msra.mxu0 0.0
  %999 = vmatprep.subr.mxu0 0.0
  %1000 = vmatpush1.msra.mxu0 0.0
  %1001 = vmatprep.subr.mxu0 0.0
  %1002 = vmatpush1.msra.mxu0 0.0
  %1003 = vmatprep.mubr.f32.mxu0 0.0
  %1004 = vmatmul.mubr.f32.gmra.mrb[0].mxu0 %v934
  %v1005 = vpop.f32.mrb[0].mxu0
  %v1006 = vadd.f32 0.0, %v1005
  %v1007 = vpop.f32.mrb[0].mxu0
  %1008 = vmatprep.mubr.f32.mxu0 0.0
  %1009 = vmatmul.mubr.f32.gmra.mrb[0].mxu0 %v937
  %v1010 = vpop.f32.mrb[0].mxu0
  %v1011 = vadd.f32 0.0, %v1010
  %v1012 = vpop.f32.mrb[0].mxu0
  %1013 = vdwg.mxu0
  %v1015 = vsel %vm246, %v1006, 0
  %v1018 = vsel %vm246, %v1011, 0
  %1020 = vmatprep.subr.mxu0 0.0
  %1021 = vmatpush1.msra.mxu0 %v152
  %1022 = vmatprep.subr.mxu0 0.0
  %1023 = vmatpush1.msra.mxu0 0.0
  %1024 = vmatprep.subr.mxu0 0.0
  %1025 = vmatpush1.msra.mxu0 0.0
  %1026 = vmatprep.subr.mxu0 0.0
  %1027 = vmatpush1.msra.mxu0 0.0
  %1028 = vmatprep.subr.mxu0 0.0
  %1029 = vmatpush1.msra.mxu0 0.0
  %1030 = vmatprep.subr.mxu0 0.0
  %1031 = vmatpush1.msra.mxu0 0.0
  %1032 = vmatprep.subr.mxu0 0.0
  %1033 = vmatpush1.msra.mxu0 0.0
  %1034 = vmatprep.subr.mxu0 0.0
  %1035 = vmatpush1.msra.mxu0 0.0
  %1036 = vmatprep.subr.mxu0 0.0
  %1037 = vmatpush1.msra.mxu0 0.0
  %1038 = vmatprep.subr.mxu0 0.0
  %1039 = vmatpush1.msra.mxu0 0.0
  %1040 = vmatprep.subr.mxu0 0.0
  %1041 = vmatpush1.msra.mxu0 0.0
  %1042 = vmatprep.subr.mxu0 0.0
  %1043 = vmatpush1.msra.mxu0 0.0
  %1044 = vmatprep.subr.mxu0 0.0
  %1045 = vmatpush1.msra.mxu0 0.0
  %1046 = vmatprep.subr.mxu0 0.0
  %1047 = vmatpush1.msra.mxu0 0.0
  %1048 = vmatprep.subr.mxu0 0.0
  %1049 = vmatpush1.msra.mxu0 0.0
  %1050 = vmatprep.subr.mxu0 0.0
  %1051 = vmatpush1.msra.mxu0 0.0
  %1052 = vmatprep.subr.mxu0 0.0
  %1053 = vmatpush1.msra.mxu0 0.0
  %1054 = vmatprep.subr.mxu0 0.0
  %1055 = vmatpush1.msra.mxu0 0.0
  %1056 = vmatprep.subr.mxu0 0.0
  %1057 = vmatpush1.msra.mxu0 0.0
  %1058 = vmatprep.subr.mxu0 0.0
  %1059 = vmatpush1.msra.mxu0 0.0
  %1060 = vmatprep.subr.mxu0 0.0
  %1061 = vmatpush1.msra.mxu0 0.0
  %1062 = vmatprep.subr.mxu0 0.0
  %1063 = vmatpush1.msra.mxu0 0.0
  %1064 = vmatprep.subr.mxu0 0.0
  %1065 = vmatpush1.msra.mxu0 0.0
  %1066 = vmatprep.subr.mxu0 0.0
  %1067 = vmatpush1.msra.mxu0 0.0
  %1068 = vmatprep.subr.mxu0 0.0
  %1069 = vmatpush1.msra.mxu0 0.0
  %1070 = vmatprep.subr.mxu0 0.0
  %1071 = vmatpush1.msra.mxu0 0.0
  %1072 = vmatprep.subr.mxu0 0.0
  %1073 = vmatpush1.msra.mxu0 0.0
  %1074 = vmatprep.subr.mxu0 0.0
  %1075 = vmatpush1.msra.mxu0 0.0
  %1076 = vmatprep.subr.mxu0 0.0
  %1077 = vmatpush1.msra.mxu0 0.0
  %1078 = vmatprep.subr.mxu0 0.0
  %1079 = vmatpush1.msra.mxu0 0.0
  %1080 = vmatprep.subr.mxu0 0.0
  %1081 = vmatpush1.msra.mxu0 0.0
  %1082 = vmatprep.subr.mxu0 0.0
  %1083 = vmatpush1.msra.mxu0 0.0
  %1084 = vmatprep.mubr.f32.mxu0 0.0
  %1085 = vmatmul.mubr.f32.gmra.mrb[0].mxu0 %v1015
  %v1086 = vpop.f32.mrb[0].mxu0
  %v1087 = vadd.f32 0.0, %v1086
  %v1088 = vpop.f32.mrb[0].mxu0
  %1089 = vmatprep.mubr.f32.mxu0 0.0
  %1090 = vmatmul.mubr.f32.gmra.mrb[0].mxu0 %v1018
  %v1091 = vpop.f32.mrb[0].mxu0
  %v1092 = vadd.f32 0.0, %v1091
  %v1093 = vpop.f32.mrb[0].mxu0
  %1094 = vdwg.mxu0
  %v1095 = vadd.f32 %v802, %v1087
  %v1096 = vadd.f32 %v807, %v1092
  %1097 = vrot.lane.b32.xlu0 %v232, 104
  %v1098 = vpop.permute.xlu0 %1097
  %1099 = vrot.lane.b32.xlu0 %v237, 104
  %v1100 = vpop.permute.xlu0 %1099
  %1101 = vrot.lane.b32.xlu0 %v232, 72
  %v1102 = vpop.permute.xlu0 %1101
  %1103 = vrot.lane.b32.xlu0 %v237, 72
  %v1104 = vpop.permute.xlu0 %1103
  %v1105 = vsel %vm246, %v1098, 0
  %v1107 = vsel %vm246, %v1100, 0
  %v1109 = vsel %vm246, %v1102, 0
  %v1111 = vsel %vm246, %v1104, 0
  %1113 = vmatprep.subr.mxu0 0.0
  %1114 = vmatpush1.xpose.msra.mxu0 %v1109
  %1115 = vmatprep.subr.mxu0 0.0
  %1116 = vmatpush1.xpose.msra.mxu0 %v1111
  %1117 = vmatprep.subr.mxu0 0.0
  %1118 = vmatpush1.xpose.msra.mxu0 0.0
  %1119 = vmatprep.subr.mxu0 0.0
  %1120 = vmatpush1.xpose.msra.mxu0 0.0
  %1121 = vmatprep.subr.mxu0 0.0
  %1122 = vmatpush1.xpose.msra.mxu0 0.0
  %1123 = vmatprep.subr.mxu0 0.0
  %1124 = vmatpush1.xpose.msra.mxu0 0.0
  %1125 = vmatprep.subr.mxu0 0.0
  %1126 = vmatpush1.xpose.msra.mxu0 0.0
  %1127 = vmatprep.subr.mxu0 0.0
  %1128 = vmatpush1.xpose.msra.mxu0 0.0
  %1129 = vmatprep.subr.mxu0 0.0
  %1130 = vmatpush1.xpose.msra.mxu0 0.0
  %1131 = vmatprep.subr.mxu0 0.0
  %1132 = vmatpush1.xpose.msra.mxu0 0.0
  %1133 = vmatprep.subr.mxu0 0.0
  %1134 = vmatpush1.xpose.msra.mxu0 0.0
  %1135 = vmatprep.subr.mxu0 0.0
  %1136 = vmatpush1.xpose.msra.mxu0 0.0
  %1137 = vmatprep.subr.mxu0 0.0
  %1138 = vmatpush1.xpose.msra.mxu0 0.0
  %1139 = vmatprep.subr.mxu0 0.0
  %1140 = vmatpush1.xpose.msra.mxu0 0.0
  %1141 = vmatprep.subr.mxu0 0.0
  %1142 = vmatpush1.xpose.msra.mxu0 0.0
  %1143 = vmatprep.subr.mxu0 0.0
  %1144 = vmatpush1.xpose.msra.mxu0 0.0
  %1145 = vmatprep.subr.mxu0 0.0
  %1146 = vmatpush1.xpose.msra.mxu0 0.0
  %1147 = vmatprep.subr.mxu0 0.0
  %1148 = vmatpush1.xpose.msra.mxu0 0.0
  %1149 = vmatprep.subr.mxu0 0.0
  %1150 = vmatpush1.xpose.msra.mxu0 0.0
  %1151 = vmatprep.subr.mxu0 0.0
  %1152 = vmatpush1.xpose.msra.mxu0 0.0
  %1153 = vmatprep.subr.mxu0 0.0
  %1154 = vmatpush1.xpose.msra.mxu0 0.0
  %1155 = vmatprep.subr.mxu0 0.0
  %1156 = vmatpush1.xpose.msra.mxu0 0.0
  %1157 = vmatprep.subr.mxu0 0.0
  %1158 = vmatpush1.xpose.msra.mxu0 0.0
  %1159 = vmatprep.subr.mxu0 0.0
  %1160 = vmatpush1.xpose.msra.mxu0 0.0
  %1161 = vmatprep.subr.mxu0 0.0
  %1162 = vmatpush1.xpose.msra.mxu0 0.0
  %1163 = vmatprep.subr.mxu0 0.0
  %1164 = vmatpush1.xpose.msra.mxu0 0.0
  %1165 = vmatprep.subr.mxu0 0.0
  %1166 = vmatpush1.xpose.msra.mxu0 0.0
  %1167 = vmatprep.subr.mxu0 0.0
  %1168 = vmatpush1.xpose.msra.mxu0 0.0
  %1169 = vmatprep.subr.mxu0 0.0
  %1170 = vmatpush1.xpose.msra.mxu0 0.0
  %1171 = vmatprep.subr.mxu0 0.0
  %1172 = vmatpush1.xpose.msra.mxu0 0.0
  %1173 = vmatprep.subr.mxu0 0.0
  %1174 = vmatpush1.xpose.msra.mxu0 0.0
  %1175 = vmatprep.subr.mxu0 0.0
  %1176 = vmatpush1.xpose.msra.mxu0 0.0
  %1177 = vmatprep.mubr.f32.mxu0 0.0
  %1178 = vmatmul.mubr.f32.gmra.mrb[0].mxu0 %v1105
  %v1179 = vpop.f32.mrb[0].mxu0
  %v1180 = vadd.f32 0.0, %v1179
  %v1181 = vpop.f32.mrb[0].mxu0
  %1182 = vmatprep.mubr.f32.mxu0 0.0
  %1183 = vmatmul.mubr.f32.gmra.mrb[0].mxu0 %v1107
  %v1184 = vpop.f32.mrb[0].mxu0
  %v1185 = vadd.f32 0.0, %v1184
  %v1186 = vpop.f32.mrb[0].mxu0
  %1187 = vdwg.mxu0
  %v1188 = vmul.f32 %v1180, 2.828427
  %v1189 = vmul.f32 %v1185, 2.828427
  %v1190 = vadd.f32 %v1188, %v148
  %v1191 = vadd.f32 %v1189, %v149
  %v1192 = vsel %vm334, %v1190, -inf
  %1193 = vmax.xlane.f32.xlu0 %v1192
  %v1194 = vpop.xlane.xlu0 %1193
  %v1195 = vsel %vm334, %v1191, -inf
  %1196 = vmax.xlane.f32.xlu0 %v1195
  %v1197 = vpop.xlane.xlu0 %1196
  %v1198 = vsub.f32 %v1190, %v1194
  %v1199 = vsub.f32 %v1191, %v1197
  %v1200 = vmul.f32 %v1198, 1.442695
  %v1201 = vpow.pop %v1200
  %v1202 = vmul.f32 %v1199, 1.442695
  %v1203 = vpow.pop %v1202
  %v1204 = vsel %vm334, %v1201, 0.0
  %1205 = vadd.xlane.f32.xlu0 %v1204
  %v1206 = vpop.xlane.xlu0 %1205
  %v1207 = vsel %vm334, %v1203, 0.0
  %1208 = vadd.xlane.f32.xlu0 %v1207
  %v1209 = vpop.xlane.xlu0 %1208
  %v1210 = vrcp.pop %v1206
  %v1211 = vrcp.pop %v1209
  %v1212 = vmul.f32 %v1201, %v1210
  %v1213 = vmul.f32 %v1203, %v1211
  %1214 = vrot.lane.b32.xlu0 %v232, 40
  %v1215 = vpop.permute.xlu0 %1214
  %1216 = vrot.lane.b32.xlu0 %v237, 40
  %v1217 = vpop.permute.xlu0 %1216
  %v1221 = vsel %vm334, %v1212, 0
  %v1224 = vsel %vm334, %v1213, 0
  %1226 = vmatprep.subr.mxu0 0.0
  %1227 = vmatpush1.msra.mxu0 %v1215
  %1228 = vmatprep.subr.mxu0 0.0
  %1229 = vmatpush1.msra.mxu0 %v1217
  %1230 = vmatprep.subr.mxu0 0.0
  %1231 = vmatpush1.msra.mxu0 0.0
  %1232 = vmatprep.subr.mxu0 0.0
  %1233 = vmatpush1.msra.mxu0 0.0
  %1234 = vmatprep.subr.mxu0 0.0
  %1235 = vmatpush1.msra.mxu0 0.0
  %1236 = vmatprep.subr.mxu0 0.0
  %1237 = vmatpush1.msra.mxu0 0.0
  %1238 = vmatprep.subr.mxu0 0.0
  %1239 = vmatpush1.msra.mxu0 0.0
  %1240 = vmatprep.subr.mxu0 0.0
  %1241 = vmatpush1.msra.mxu0 0.0
  %1242 = vmatprep.subr.mxu0 0.0
  %1243 = vmatpush1.msra.mxu0 0.0
  %1244 = vmatprep.subr.mxu0 0.0
  %1245 = vmatpush1.msra.mxu0 0.0
  %1246 = vmatprep.subr.mxu0 0.0
  %1247 = vmatpush1.msra.mxu0 0.0
  %1248 = vmatprep.subr.mxu0 0.0
  %1249 = vmatpush1.msra.mxu0 0.0
  %1250 = vmatprep.subr.mxu0 0.0
  %1251 = vmatpush1.msra.mxu0 0.0
  %1252 = vmatprep.subr.mxu0 0.0
  %1253 = vmatpush1.msra.mxu0 0.0
  %1254 = vmatprep.subr.mxu0 0.0
  %1255 = vmatpush1.msra.mxu0 0.0
  %1256 = vmatprep.subr.mxu0 0.0
  %1257 = vmatpush1.msra.mxu0 0.0
  %1258 = vmatprep.subr.mxu0 0.0
  %1259 = vmatpush1.msra.mxu0 0.0
  %1260 = vmatprep.subr.mxu0 0.0
  %1261 = vmatpush1.msra.mxu0 0.0
  %1262 = vmatprep.subr.mxu0 0.0
  %1263 = vmatpush1.msra.mxu0 0.0
  %1264 = vmatprep.subr.mxu0 0.0
  %1265 = vmatpush1.msra.mxu0 0.0
  %1266 = vmatprep.subr.mxu0 0.0
  %1267 = vmatpush1.msra.mxu0 0.0
  %1268 = vmatprep.subr.mxu0 0.0
  %1269 = vmatpush1.msra.mxu0 0.0
  %1270 = vmatprep.subr.mxu0 0.0
  %1271 = vmatpush1.msra.mxu0 0.0
  %1272 = vmatprep.subr.mxu0 0.0
  %1273 = vmatpush1.msra.mxu0 0.0
  %1274 = vmatprep.subr.mxu0 0.0
  %1275 = vmatpush1.msra.mxu0 0.0
  %1276 = vmatprep.subr.mxu0 0.0
  %1277 = vmatpush1.msra.mxu0 0.0
  %1278 = vmatprep.subr.mxu0 0.0
  %1279 = vmatpush1.msra.mxu0 0.0
  %1280 = vmatprep.subr.mxu0 0.0
  %1281 = vmatpush1.msra.mxu0 0.0
  %1282 = vmatprep.subr.mxu0 0.0
  %1283 = vmatpush1.msra.mxu0 0.0
  %1284 = vmatprep.subr.mxu0 0.0
  %1285 = vmatpush1.msra.mxu0 0.0
  %1286 = vmatprep.subr.mxu0 0.0
  %1287 = vmatpush1.msra.mxu0 0.0
  %1288 = vmatprep.subr.mxu0 0.0
  %1289 = vmatpush1.msra.mxu0 0.0
  %1290 = vmatprep.mubr.f32.mxu0 0.0
  %1291 = vmatmul.mubr.f32.gmra.mrb[0].mxu0 %v1221
  %v1292 = vpop.f32.mrb[0].mxu0
  %v1293 = vadd.f32 0.0, %v1292
  %v1294 = vpop.f32.mrb[0].mxu0
  %1295 = vmatprep.mubr.f32.mxu0 0.0
  %1296 = vmatmul.mubr.f32.gmra.mrb[0].mxu0 %v1224
  %v1297 = vpop.f32.mrb[0].mxu0
  %v1298 = vadd.f32 0.0, %v1297
  %v1299 = vpop.f32.mrb[0].mxu0
  %1300 = vdwg.mxu0
  %v1302 = vsel %vm246, %v1293, 0
  %v1305 = vsel %vm246, %v1298, 0
  %1307 = vmatprep.subr.mxu0 0.0
  %1308 = vmatpush1.msra.mxu0 %v153
  %1309 = vmatprep.subr.mxu0 0.0
  %1310 = vmatpush1.msra.mxu0 0.0
  %1311 = vmatprep.subr.mxu0 0.0
  %1312 = vmatpush1.msra.mxu0 0.0
  %1313 = vmatprep.subr.mxu0 0.0
  %1314 = vmatpush1.msra.mxu0 0.0
  %1315 = vmatprep.subr.mxu0 0.0
  %1316 = vmatpush1.msra.mxu0 0.0
  %1317 = vmatprep.subr.mxu0 0.0
  %1318 = vmatpush1.msra.mxu0 0.0
  %1319 = vmatprep.subr.mxu0 0.0
  %1320 = vmatpush1.msra.mxu0 0.0
  %1321 = vmatprep.subr.mxu0 0.0
  %1322 = vmatpush1.msra.mxu0 0.0
  %1323 = vmatprep.subr.mxu0 0.0
  %1324 = vmatpush1.msra.mxu0 0.0
  %1325 = vmatprep.subr.mxu0 0.0
  %1326 = vmatpush1.msra.mxu0 0.0
  %1327 = vmatprep.subr.mxu0 0.0
  %1328 = vmatpush1.msra.mxu0 0.0
  %1329 = vmatprep.subr.mxu0 0.0
  %1330 = vmatpush1.msra.mxu0 0.0
  %1331 = vmatprep.subr.mxu0 0.0
  %1332 = vmatpush1.msra.mxu0 0.0
  %1333 = vmatprep.subr.mxu0 0.0
  %1334 = vmatpush1.msra.mxu0 0.0
  %1335 = vmatprep.subr.mxu0 0.0
  %1336 = vmatpush1.msra.mxu0 0.0
  %1337 = vmatprep.subr.mxu0 0.0
  %1338 = vmatpush1.msra.mxu0 0.0
  %1339 = vmatprep.subr.mxu0 0.0
  %1340 = vmatpush1.msra.mxu0 0.0
  %1341 = vmatprep.subr.mxu0 0.0
  %1342 = vmatpush1.msra.mxu0 0.0
  %1343 = vmatprep.subr.mxu0 0.0
  %1344 = vmatpush1.msra.mxu0 0.0
  %1345 = vmatprep.subr.mxu0 0.0
  %1346 = vmatpush1.msra.mxu0 0.0
  %1347 = vmatprep.subr.mxu0 0.0
  %1348 = vmatpush1.msra.mxu0 0.0
  %1349 = vmatprep.subr.mxu0 0.0
  %1350 = vmatpush1.msra.mxu0 0.0
  %1351 = vmatprep.subr.mxu0 0.0
  %1352 = vmatpush1.msra.mxu0 0.0
  %1353 = vmatprep.subr.mxu0 0.0
  %1354 = vmatpush1.msra.mxu0 0.0
  %1355 = vmatprep.subr.mxu0 0.0
  %1356 = vmatpush1.msra.mxu0 0.0
  %1357 = vmatprep.subr.mxu0 0.0
  %1358 = vmatpush1.msra.mxu0 0.0
  %1359 = vmatprep.subr.mxu0 0.0
  %1360 = vmatpush1.msra.mxu0 0.0
  %1361 = vmatprep.subr.mxu0 0.0
  %1362 = vmatpush1.msra.mxu0 0.0
  %1363 = vmatprep.subr.mxu0 0.0
  %1364 = vmatpush1.msra.mxu0 0.0
  %1365 = vmatprep.subr.mxu0 0.0
  %1366 = vmatpush1.msra.mxu0 0.0
  %1367 = vmatprep.subr.mxu0 0.0
  %1368 = vmatpush1.msra.mxu0 0.0
  %1369 = vmatprep.subr.mxu0 0.0
  %1370 = vmatpush1.msra.mxu0 0.0
  %1371 = vmatprep.mubr.f32.mxu0 0.0
  %1372 = vmatmul.mubr.f32.gmra.mrb[0].mxu0 %v1302
  %v1373 = vpop.f32.mrb[0].mxu0
  %v1374 = vadd.f32 0.0, %v1373
  %v1375 = vpop.f32.mrb[0].mxu0
  %1376 = vmatprep.mubr.f32.mxu0 0.0
  %1377 = vmatmul.mubr.f32.gmra.mrb[0].mxu0 %v1305
  %v1378 = vpop.f32.mrb[0].mxu0
  %v1379 = vadd.f32 0.0, %v1378
  %v1380 = vpop.f32.mrb[0].mxu0
  %1381 = vdwg.mxu0
  %v1382 = vadd.f32 %v1095, %v1374
  %v1383 = vadd.f32 %v1096, %v1379
  %v1384 = vlaneseq
  %v1385 = vshrl.u32 %v1384, 7
  %v1386 = vsub.s32 0, %v1385
  %v1387 = vrot.slane %v154, %v1386
  %v1388 = vadd.f32 %v1382, %v1387
  %v1389 = vadd.f32 %v1383, %v1387
  %v1390 = vadd.f32 %v140, %v1388
  %v1391 = vadd.f32 %v145, %v1389
  %v1392 = vsel %vm66, %v1390, 0.0
  %1393 = vadd.xlane.f32.xlu0 %v1392
  %v1394 = vpop.xlane.xlu0 %1393
  %v1395 = vsel %vm66, %v1391, 0.0
  %1396 = vadd.xlane.f32.xlu0 %v1395
  %v1397 = vpop.xlane.xlu0 %1396
  %v1398 = vrcp.pop 32.0
  %v1399 = vmul.f32 %v1394, %v1398
  %v1400 = vmul.f32 %v1397, %v1398
  %v1401 = vsub.f32 %v1390, %v1399
  %v1402 = vsub.f32 %v1391, %v1400
  %v1403 = vmul.f32 %v1401, %v1401
  %v1404 = vmul.f32 %v1402, %v1402
  %v1405 = vsel %vm66, %v1403, 0.0
  %1406 = vadd.xlane.f32.xlu0 %v1405
  %v1407 = vpop.xlane.xlu0 %1406
  %v1408 = vsel %vm66, %v1404, 0.0
  %1409 = vadd.xlane.f32.xlu0 %v1408
  %v1410 = vpop.xlane.xlu0 %1409
  %v1411 = vmul.f32 %v1407, %v1398
  %v1412 = vmul.f32 %v1410, %v1398
  %v1413 = vadd.f32 %v1411, 1e-05
  %v1414 = vadd.f32 %v1412, 1e-05
  %v1415 = vrsqrt.pop %v1413
  %v1416 = vrsqrt.pop %v1414
  %v1417 = vmul.f32 %v1401, %v1415
  %v1418 = vmul.f32 %v1402, %v1416
  %v1419 = vlaneseq
  %v1420 = vshrl.u32 %v1419, 7
  %v1421 = vsub.s32 2, %v1420
  %v1422 = vrot.slane %v154, %v1421
  %v1423 = vmul.f32 %v1417, %v1422
  %v1424 = vmul.f32 %v1418, %v1422
  %v1425 = vlaneseq
  %v1426 = vshrl.u32 %v1425, 7
  %v1427 = vsub.s32 3, %v1426
  %v1428 = vrot.slane %v154, %v1427
  %v1429 = vadd.f32 %v1423, %v1428
  %v1430 = vadd.f32 %v1424, %v1428
  %v1431 = vld [vmem:[%s6] sm:$0xff]
  %v1432 = vld [vmem:[%s6 + $0x8] sm:$0xff]
  %v1433 = vld [vmem:[%s6 + $0x10] sm:$0xff]
  %v1434 = vld [vmem:[%s6 + $0x18] sm:$0xff]
  %v1435 = vld [vmem:[%s7] sm:$0x1]
  %v1437 = vlaneseq
  %v1438 = vshrl.u32 %v1437, 7
  %v1439 = vsub.s32 0, %v1438
  %v1440 = vrot.slane %v1435, %v1439
  %v1443 = vsel %vm66, %v1429, 0
  %v1446 = vsel %vm66, %v1430, 0
  %1448 = vmatprep.subr.mxu0 0.0
  %1449 = vmatpush1.msra.mxu0 %v1431
  %1450 = vmatprep.subr.mxu0 0.0
  %1451 = vmatpush1.msra.mxu0 %v1432
  %1452 = vmatprep.subr.mxu0 0.0
  %1453 = vmatpush1.msra.mxu0 %v1433
  %1454 = vmatprep.subr.mxu0 0.0
  %1455 = vmatpush1.msra.mxu0 %v1434
  %1456 = vmatprep.subr.mxu0 0.0
  %1457 = vmatpush1.msra.mxu0 0.0
  %1458 = vmatprep.subr.mxu0 0.0
  %1459 = vmatpush1.msra.mxu0 0.0
  %1460 = vmatprep.subr.mxu0 0.0
  %1461 = vmatpush1.msra.mxu0 0.0
  %1462 = vmatprep.subr.mxu0 0.0
  %1463 = vmatpush1.msra.mxu0 0.0
  %1464 = vmatprep.subr.mxu0 0.0
  %1465 = vmatpush1.msra.mxu0 0.0
  %1466 = vmatprep.subr.mxu0 0.0
  %1467 = vmatpush1.msra.mxu0 0.0
  %1468 = vmatprep.subr.mxu0 0.0
  %1469 = vmatpush1.msra.mxu0 0.0
  %1470 = vmatprep.subr.mxu0 0.0
  %1471 = vmatpush1.msra.mxu0 0.0
  %1472 = vmatprep.subr.mxu0 0.0
  %1473 = vmatpush1.msra.mxu0 0.0
  %1474 = vmatprep.subr.mxu0 0.0
  %1475 = vmatpush1.msra.mxu0 0.0
  %1476 = vmatprep.subr.mxu0 0.0
  %1477 = vmatpush1.msra.mxu0 0.0
  %1478 = vmatprep.subr.mxu0 0.0
  %1479 = vmatpush1.msra.mxu0 0.0
  %1480 = vmatprep.subr.mxu0 0.0
  %1481 = vmatpush1.msra.mxu0 0.0
  %1482 = vmatprep.subr.mxu0 0.0
  %1483 = vmatpush1.msra.mxu0 0.0
  %1484 = vmatprep.subr.mxu0 0.0
  %1485 = vmatpush1.msra.mxu0 0.0
  %1486 = vmatprep.subr.mxu0 0.0
  %1487 = vmatpush1.msra.mxu0 0.0
  %1488 = vmatprep.subr.mxu0 0.0
  %1489 = vmatpush1.msra.mxu0 0.0
  %1490 = vmatprep.subr.mxu0 0.0
  %1491 = vmatpush1.msra.mxu0 0.0
  %1492 = vmatprep.subr.mxu0 0.0
  %1493 = vmatpush1.msra.mxu0 0.0
  %1494 = vmatprep.subr.mxu0 0.0
  %1495 = vmatpush1.msra.mxu0 0.0
  %1496 = vmatprep.subr.mxu0 0.0
  %1497 = vmatpush1.msra.mxu0 0.0
  %1498 = vmatprep.subr.mxu0 0.0
  %1499 = vmatpush1.msra.mxu0 0.0
  %1500 = vmatprep.subr.mxu0 0.0
  %1501 = vmatpush1.msra.mxu0 0.0
  %1502 = vmatprep.subr.mxu0 0.0
  %1503 = vmatpush1.msra.mxu0 0.0
  %1504 = vmatprep.subr.mxu0 0.0
  %1505 = vmatpush1.msra.mxu0 0.0
  %1506 = vmatprep.subr.mxu0 0.0
  %1507 = vmatpush1.msra.mxu0 0.0
  %1508 = vmatprep.subr.mxu0 0.0
  %1509 = vmatpush1.msra.mxu0 0.0
  %1510 = vmatprep.subr.mxu0 0.0
  %1511 = vmatpush1.msra.mxu0 0.0
  %1512 = vmatprep.mubr.f32.mxu0 0.0
  %1513 = vmatmul.mubr.f32.gmra.mrb[0].mxu0 %v1443
  %v1514 = vpop.f32.mrb[0].mxu0
  %v1515 = vadd.f32 %v1440, %v1514
  %v1516 = vpop.f32.mrb[0].mxu0
  %1517 = vmatprep.mubr.f32.mxu0 0.0
  %1518 = vmatmul.mubr.f32.gmra.mrb[0].mxu0 %v1446
  %v1519 = vpop.f32.mrb[0].mxu0
  %v1520 = vadd.f32 %v1440, %v1519
  %v1521 = vpop.f32.mrb[0].mxu0
  %1522 = vdwg.mxu0
  %v1523 = vmax.f32 %v1515, 0.0
  %v1524 = vmax.f32 %v1520, 0.0
  %v1525 = vld [vmem:[%s8] sm:$0xff]
  %v1526 = vld [vmem:[%s8 + $0x8] sm:$0xff]
  %v1527 = vld [vmem:[%s8 + $0x10] sm:$0xff]
  %v1528 = vld [vmem:[%s8 + $0x18] sm:$0xff]
  %v1529 = vld [vmem:[%s8 + $0x20] sm:$0xff]
  %v1530 = vld [vmem:[%s8 + $0x28] sm:$0xff]
  %v1531 = vld [vmem:[%s8 + $0x30] sm:$0xff]
  %v1532 = vld [vmem:[%s8 + $0x38] sm:$0xff]
  %v1533 = vld [vmem:[%s8 + $0x40] sm:$0xff]
  %v1534 = vld [vmem:[%s8 + $0x48] sm:$0xff]
  %v1535 = vld [vmem:[%s8 + $0x50] sm:$0xff]
  %v1536 = vld [vmem:[%s8 + $0x58] sm:$0xff]
  %v1537 = vld [vmem:[%s8 + $0x60] sm:$0xff]
  %v1538 = vld [vmem:[%s8 + $0x68] sm:$0xff]
  %v1539 = vld [vmem:[%s8 + $0x70] sm:$0xff]
  %v1540 = vld [vmem:[%s8 + $0x78] sm:$0xff]
  %v1541 = vlaneseq
  %v1542 = vshrl.u32 %v1541, 7
  %v1543 = vsub.s32 1, %v1542
  %v1544 = vrot.slane %v154, %v1543
  %1545 = vmatprep.subr.mxu0 0.0
  %1546 = vmatpush1.msra.mxu0 %v1525
  %1547 = vmatprep.subr.mxu0 0.0
  %1548 = vmatpush1.msra.mxu0 %v1526
  %1549 = vmatprep.subr.mxu0 0.0
  %1550 = vmatpush1.msra.mxu0 %v1527
  %1551 = vmatprep.subr.mxu0 0.0
  %1552 = vmatpush1.msra.mxu0 %v1528
  %1553 = vmatprep.subr.mxu0 0.0
  %1554 = vmatpush1.msra.mxu0 %v1529
  %1555 = vmatprep.subr.mxu0 0.0
  %1556 = vmatpush1.msra.mxu0 %v1530
  %1557 = vmatprep.subr.mxu0 0.0
  %1558 = vmatpush1.msra.mxu0 %v1531
  %1559 = vmatprep.subr.mxu0 0.0
  %1560 = vmatpush1.msra.mxu0 %v1532
  %1561 = vmatprep.subr.mxu0 0.0
  %1562 = vmatpush1.msra.mxu0 %v1533
  %1563 = vmatprep.subr.mxu0 0.0
  %1564 = vmatpush1.msra.mxu0 %v1534
  %1565 = vmatprep.subr.mxu0 0.0
  %1566 = vmatpush1.msra.mxu0 %v1535
  %1567 = vmatprep.subr.mxu0 0.0
  %1568 = vmatpush1.msra.mxu0 %v1536
  %1569 = vmatprep.subr.mxu0 0.0
  %1570 = vmatpush1.msra.mxu0 %v1537
  %1571 = vmatprep.subr.mxu0 0.0
  %1572 = vmatpush1.msra.mxu0 %v1538
  %1573 = vmatprep.subr.mxu0 0.0
  %1574 = vmatpush1.msra.mxu0 %v1539
  %1575 = vmatprep.subr.mxu0 0.0
  %1576 = vmatpush1.msra.mxu0 %v1540
  %1577 = vmatprep.subr.mxu0 0.0
  %1578 = vmatpush1.msra.mxu0 0.0
  %1579 = vmatprep.subr.mxu0 0.0
  %1580 = vmatpush1.msra.mxu0 0.0
  %1581 = vmatprep.subr.mxu0 0.0
  %1582 = vmatpush1.msra.mxu0 0.0
  %1583 = vmatprep.subr.mxu0 0.0
  %1584 = vmatpush1.msra.mxu0 0.0
  %1585 = vmatprep.subr.mxu0 0.0
  %1586 = vmatpush1.msra.mxu0 0.0
  %1587 = vmatprep.subr.mxu0 0.0
  %1588 = vmatpush1.msra.mxu0 0.0
  %1589 = vmatprep.subr.mxu0 0.0
  %1590 = vmatpush1.msra.mxu0 0.0
  %1591 = vmatprep.subr.mxu0 0.0
  %1592 = vmatpush1.msra.mxu0 0.0
  %1593 = vmatprep.subr.mxu0 0.0
  %1594 = vmatpush1.msra.mxu0 0.0
  %1595 = vmatprep.subr.mxu0 0.0
  %1596 = vmatpush1.msra.mxu0 0.0
  %1597 = vmatprep.subr.mxu0 0.0
  %1598 = vmatpush1.msra.mxu0 0.0
  %1599 = vmatprep.subr.mxu0 0.0
  %1600 = vmatpush1.msra.mxu0 0.0
  %1601 = vmatprep.subr.mxu0 0.0
  %1602 = vmatpush1.msra.mxu0 0.0
  %1603 = vmatprep.subr.mxu0 0.0
  %1604 = vmatpush1.msra.mxu0 0.0
  %1605 = vmatprep.subr.mxu0 0.0
  %1606 = vmatpush1.msra.mxu0 0.0
  %1607 = vmatprep.subr.mxu0 0.0
  %1608 = vmatpush1.msra.mxu0 0.0
  %1609 = vmatprep.mubr.f32.mxu0 0.0
  %1610 = vmatmul.mubr.f32.gmra.mrb[0].mxu0 %v1523
  %v1611 = vpop.f32.mrb[0].mxu0
  %v1612 = vadd.f32 %v1544, %v1611
  %v1613 = vpop.f32.mrb[0].mxu0
  %1614 = vmatprep.mubr.f32.mxu0 0.0
  %1615 = vmatmul.mubr.f32.gmra.mrb[0].mxu0 %v1524
  %v1616 = vpop.f32.mrb[0].mxu0
  %v1617 = vadd.f32 %v1544, %v1616
  %v1618 = vpop.f32.mrb[0].mxu0
  %1619 = vdwg.mxu0
  %v1620 = vadd.f32 %v1429, %v1612
  %v1621 = vadd.f32 %v1430, %v1617
  %v1622 = vsel %vm66, %v1620, 0.0
  %1623 = vadd.xlane.f32.xlu0 %v1622
  %v1624 = vpop.xlane.xlu0 %1623
  %v1625 = vsel %vm66, %v1621, 0.0
  %1626 = vadd.xlane.f32.xlu0 %v1625
  %v1627 = vpop.xlane.xlu0 %1626
  %v1628 = vmul.f32 %v1624, %v1398
  %v1629 = vmul.f32 %v1627, %v1398
  %v1630 = vsub.f32 %v1620, %v1628
  %v1631 = vsub.f32 %v1621, %v1629
  %v1632 = vmul.f32 %v1630, %v1630
  %v1633 = vmul.f32 %v1631, %v1631
  %v1634 = vsel %vm66, %v1632, 0.0
  %1635 = vadd.xlane.f32.xlu0 %v1634
  %v1636 = vpop.xlane.xlu0 %1635
  %v1637 = vsel %vm66, %v1633, 0.0
  %1638 = vadd.xlane.f32.xlu0 %v1637
  %v1639 = vpop.xlane.xlu0 %1638
  %v1640 = vmul.f32 %v1636, %v1398
  %v1641 = vmul.f32 %v1639, %v1398
  %v1642 = vadd.f32 %v1640, 1e-05
  %v1643 = vadd.f32 %v1641, 1e-05
  %v1644 = vrsqrt.pop %v1642
  %v1645 = vrsqrt.pop %v1643
  %v1646 = vmul.f32 %v1630, %v1644
  %v1647 = vmul.f32 %v1631, %v1645
  %v1648 = vlaneseq
  %v1649 = vshrl.u32 %v1648, 7
  %v1650 = vsub.s32 4, %v1649
  %v1651 = vrot.slane %v154, %v1650
  %v1652 = vmul.f32 %v1646, %v1651
  %v1653 = vmul.f32 %v1647, %v1651
  %v1654 = vlaneseq
  %v1655 = vshrl.u32 %v1654, 7
  %v1656 = vsub.s32 5, %v1655
  %v1657 = vrot.slane %v154, %v1656
  %v1658 = vadd.f32 %v1652, %v1657
  %v1659 = vadd.f32 %v1653, %v1657
  %s1660 = scalar_lea.vmem %s5, 32
  %v1661 = vld [vmem:[%s1660] sm:$0xff]
  %v1662 = vld [vmem:[%s1660 + $0x8] sm:$0xff]
  %v1663 = vld [vmem:[%s1660 + $0x10] sm:$0xff]
  %v1664 = vld [vmem:[%s1660 + $0x18] sm:$0xff]
  %s1665 = scalar_lea.vmem %s9, 8
  %v1666 = vld [vmem:[%s1665] sm:$0x3f]
  %s1667 = scalar_lea.vmem %s4, 32
  %v1668 = vld [vmem:[%s1667] sm:$0xff]
  %v1669 = vld [vmem:[%s1667 + $0x8] sm:$0xff]
  %v1670 = vld [vmem:[%s1667 + $0x10] sm:$0xff]
  %v1671 = vld [vmem:[%s1667 + $0x18] sm:$0xff]
  %v1673 = vsel %vm66, %v1658, 0
  %v1676 = vsel %vm66, %v1659, 0
  %1678 = vmatprep.subr.mxu0 0.0
  %1679 = vmatpush1.msra.mxu0 %v1668
  %1680 = vmatprep.subr.mxu0 0.0
  %1681 = vmatpush1.msra.mxu0 %v1669
  %1682 = vmatprep.subr.mxu0 0.0
  %1683 = vmatpush1.msra.mxu0 %v1670
  %1684 = vmatprep.subr.mxu0 0.0
  %1685 = vmatpush1.msra.mxu0 %v1671
  %1686 = vmatprep.subr.mxu0 0.0
  %1687 = vmatpush1.msra.mxu0 0.0
  %1688 = vmatprep.subr.mxu0 0.0
  %1689 = vmatpush1.msra.mxu0 0.0
  %1690 = vmatprep.subr.mxu0 0.0
  %1691 = vmatpush1.msra.mxu0 0.0
  %1692 = vmatprep.subr.mxu0 0.0
  %1693 = vmatpush1.msra.mxu0 0.0
  %1694 = vmatprep.subr.mxu0 0.0
  %1695 = vmatpush1.msra.mxu0 0.0
  %1696 = vmatprep.subr.mxu0 0.0
  %1697 = vmatpush1.msra.mxu0 0.0
  %1698 = vmatprep.subr.mxu0 0.0
  %1699 = vmatpush1.msra.mxu0 0.0
  %1700 = vmatprep.subr.mxu0 0.0
  %1701 = vmatpush1.msra.mxu0 0.0
  %1702 = vmatprep.subr.mxu0 0.0
  %1703 = vmatpush1.msra.mxu0 0.0
  %1704 = vmatprep.subr.mxu0 0.0
  %1705 = vmatpush1.msra.mxu0 0.0
  %1706 = vmatprep.subr.mxu0 0.0
  %1707 = vmatpush1.msra.mxu0 0.0
  %1708 = vmatprep.subr.mxu0 0.0
  %1709 = vmatpush1.msra.mxu0 0.0
  %1710 = vmatprep.subr.mxu0 0.0
  %1711 = vmatpush1.msra.mxu0 0.0
  %1712 = vmatprep.subr.mxu0 0.0
  %1713 = vmatpush1.msra.mxu0 0.0
  %1714 = vmatprep.subr.mxu0 0.0
  %1715 = vmatpush1.msra.mxu0 0.0
  %1716 = vmatprep.subr.mxu0 0.0
  %1717 = vmatpush1.msra.mxu0 0.0
  %1718 = vmatprep.subr.mxu0 0.0
  %1719 = vmatpush1.msra.mxu0 0.0
  %1720 = vmatprep.subr.mxu0 0.0
  %1721 = vmatpush1.msra.mxu0 0.0
  %1722 = vmatprep.subr.mxu0 0.0
  %1723 = vmatpush1.msra.mxu0 0.0
  %1724 = vmatprep.subr.mxu0 0.0
  %1725 = vmatpush1.msra.mxu0 0.0
  %1726 = vmatprep.subr.mxu0 0.0
  %1727 = vmatpush1.msra.mxu0 0.0
  %1728 = vmatprep.subr.mxu0 0.0
  %1729 = vmatpush1.msra.mxu0 0.0
  %1730 = vmatprep.subr.mxu0 0.0
  %1731 = vmatpush1.msra.mxu0 0.0
  %1732 = vmatprep.subr.mxu0 0.0
  %1733 = vmatpush1.msra.mxu0 0.0
  %1734 = vmatprep.subr.mxu0 0.0
  %1735 = vmatpush1.msra.mxu0 0.0
  %1736 = vmatprep.subr.mxu0 0.0
  %1737 = vmatpush1.msra.mxu0 0.0
  %1738 = vmatprep.subr.mxu0 0.0
  %1739 = vmatpush1.msra.mxu0 0.0
  %1740 = vmatprep.subr.mxu0 0.0
  %1741 = vmatpush1.msra.mxu0 0.0
  %1742 = vmatprep.mubr.f32.mxu0 0.0
  %1743 = vmatmul.mubr.f32.gmra.mrb[0].mxu0 %v1673
  %v1744 = vpop.f32.mrb[0].mxu0
  %v1745 = vadd.f32 0.0, %v1744
  %v1746 = vpop.f32.mrb[0].mxu0
  %1747 = vmatprep.mubr.f32.mxu0 0.0
  %1748 = vmatmul.mubr.f32.gmra.mrb[0].mxu0 %v1676
  %v1749 = vpop.f32.mrb[0].mxu0
  %v1750 = vadd.f32 0.0, %v1749
  %v1751 = vpop.f32.mrb[0].mxu0
  %1752 = vdwg.mxu0
  %1755 = vrot.lane.b32.xlu0 %v1745, 96
  %v1756 = vpop.permute.xlu0 %1755
  %1757 = vrot.lane.b32.xlu0 %v1750, 96
  %v1758 = vpop.permute.xlu0 %1757
  %v1759 = vsel %vm246, %v1745, 0
  %v1761 = vsel %vm246, %v1750, 0
  %v1763 = vsel %vm246, %v1756, 0
  %v1765 = vsel %vm246, %v1758, 0
  %1767 = vmatprep.subr.mxu0 0.0
  %1768 = vmatpush1.xpose.msra.mxu0 %v1763
  %1769 = vmatprep.subr.mxu0 0.0
  %1770 = vmatpush1.xpose.msra.mxu0 %v1765
  %1771 = vmatprep.subr.mxu0 0.0
  %1772 = vmatpush1.xpose.msra.mxu0 0.0
  %1773 = vmatprep.subr.mxu0 0.0
  %1774 = vmatpush1.xpose.msra.mxu0 0.0
  %1775 = vmatprep.subr.mxu0 0.0
  %1776 = vmatpush1.xpose.msra.mxu0 0.0
  %1777 = vmatprep.subr.mxu0 0.0
  %1778 = vmatpush1.xpose.msra.mxu0 0.0
  %1779 = vmatprep.subr.mxu0 0.0
  %1780 = vmatpush1.xpose.msra.mxu0 0.0
  %1781 = vmatprep.subr.mxu0 0.0
  %1782 = vmatpush1.xpose.msra.mxu0 0.0
  %1783 = vmatprep.subr.mxu0 0.0
  %1784 = vmatpush1.xpose.msra.mxu0 0.0
  %1785 = vmatprep.subr.mxu0 0.0
  %1786 = vmatpush1.xpose.msra.mxu0 0.0
  %1787 = vmatprep.subr.mxu0 0.0
  %1788 = vmatpush1.xpose.msra.mxu0 0.0
  %1789 = vmatprep.subr.mxu0 0.0
  %1790 = vmatpush1.xpose.msra.mxu0 0.0
  %1791 = vmatprep.subr.mxu0 0.0
  %1792 = vmatpush1.xpose.msra.mxu0 0.0
  %1793 = vmatprep.subr.mxu0 0.0
  %1794 = vmatpush1.xpose.msra.mxu0 0.0
  %1795 = vmatprep.subr.mxu0 0.0
  %1796 = vmatpush1.xpose.msra.mxu0 0.0
  %1797 = vmatprep.subr.mxu0 0.0
  %1798 = vmatpush1.xpose.msra.mxu0 0.0
  %1799 = vmatprep.subr.mxu0 0.0
  %1800 = vmatpush1.xpose.msra.mxu0 0.0
  %1801 = vmatprep.subr.mxu0 0.0
  %1802 = vmatpush1.xpose.msra.mxu0 0.0
  %1803 = vmatprep.subr.mxu0 0.0
  %1804 = vmatpush1.xpose.msra.mxu0 0.0
  %1805 = vmatprep.subr.mxu0 0.0
  %1806 = vmatpush1.xpose.msra.mxu0 0.0
  %1807 = vmatprep.subr.mxu0 0.0
  %1808 = vmatpush1.xpose.msra.mxu0 0.0
  %1809 = vmatprep.subr.mxu0 0.0
  %1810 = vmatpush1.xpose.msra.mxu0 0.0
  %1811 = vmatprep.subr.mxu0 0.0
  %1812 = vmatpush1.xpose.msra.mxu0 0.0
  %1813 = vmatprep.subr.mxu0 0.0
  %1814 = vmatpush1.xpose.msra.mxu0 0.0
  %1815 = vmatprep.subr.mxu0 0.0
  %1816 = vmatpush1.xpose.msra.mxu0 0.0
  %1817 = vmatprep.subr.mxu0 0.0
  %1818 = vmatpush1.xpose.msra.mxu0 0.0
  %1819 = vmatprep.subr.mxu0 0.0
  %1820 = vmatpush1.xpose.msra.mxu0 0.0
  %1821 = vmatprep.subr.mxu0 0.0
  %1822 = vmatpush1.xpose.msra.mxu0 0.0
  %1823 = vmatprep.subr.mxu0 0.0
  %1824 = vmatpush1.xpose.msra.mxu0 0.0
  %1825 = vmatprep.subr.mxu0 0.0
  %1826 = vmatpush1.xpose.msra.mxu0 0.0
  %1827 = vmatprep.subr.mxu0 0.0
  %1828 = vmatpush1.xpose.msra.mxu0 0.0
  %1829 = vmatprep.subr.mxu0 0.0
  %1830 = vmatpush1.xpose.msra.mxu0 0.0
  %1831 = vmatprep.mubr.f32.mxu0 0.0
  %1832 = vmatmul.mubr.f32.gmra.mrb[0].mxu0 %v1759
  %v1833 = vpop.f32.mrb[0].mxu0
  %v1834 = vadd.f32 0.0, %v1833
  %v1835 = vpop.f32.mrb[0].mxu0
  %1836 = vmatprep.mubr.f32.mxu0 0.0
  %1837 = vmatmul.mubr.f32.gmra.mrb[0].mxu0 %v1761
  %v1838 = vpop.f32.mrb[0].mxu0
  %v1839 = vadd.f32 0.0, %v1838
  %v1840 = vpop.f32.mrb[0].mxu0
  %1841 = vdwg.mxu0
  %v1842 = vmul.f32 %v1834, 2.828427
  %v1843 = vmul.f32 %v1839, 2.828427
  %v1844 = vadd.f32 %v1842, %v148
  %v1845 = vadd.f32 %v1843, %v149
  %v1846 = vsel %vm334, %v1844, -inf
  %1847 = vmax.xlane.f32.xlu0 %v1846
  %v1848 = vpop.xlane.xlu0 %1847
  %v1849 = vsel %vm334, %v1845, -inf
  %1850 = vmax.xlane.f32.xlu0 %v1849
  %v1851 = vpop.xlane.xlu0 %1850
  %v1852 = vsub.f32 %v1844, %v1848
  %v1853 = vsub.f32 %v1845, %v1851
  %v1854 = vmul.f32 %v1852, 1.442695
  %v1855 = vpow.pop %v1854
  %v1856 = vmul.f32 %v1853, 1.442695
  %v1857 = vpow.pop %v1856
  %v1858 = vsel %vm334, %v1855, 0.0
  %1859 = vadd.xlane.f32.xlu0 %v1858
  %v1860 = vpop.xlane.xlu0 %1859
  %v1861 = vsel %vm334, %v1857, 0.0
  %1862 = vadd.xlane.f32.xlu0 %v1861
  %v1863 = vpop.xlane.xlu0 %1862
  %v1864 = vrcp.pop %v1860
  %v1865 = vrcp.pop %v1863
  %v1866 = vmul.f32 %v1855, %v1864
  %v1867 = vmul.f32 %v1857, %v1865
  %1868 = vrot.lane.b32.xlu0 %v1745, 64
  %v1869 = vpop.permute.xlu0 %1868
  %1870 = vrot.lane.b32.xlu0 %v1750, 64
  %v1871 = vpop.permute.xlu0 %1870
  %v1875 = vsel %vm334, %v1866, 0
  %v1878 = vsel %vm334, %v1867, 0
  %1880 = vmatprep.subr.mxu0 0.0
  %1881 = vmatpush1.msra.mxu0 %v1869
  %1882 = vmatprep.subr.mxu0 0.0
  %1883 = vmatpush1.msra.mxu0 %v1871
  %1884 = vmatprep.subr.mxu0 0.0
  %1885 = vmatpush1.msra.mxu0 0.0
  %1886 = vmatprep.subr.mxu0 0.0
  %1887 = vmatpush1.msra.mxu0 0.0
  %1888 = vmatprep.subr.mxu0 0.0
  %1889 = vmatpush1.msra.mxu0 0.0
  %1890 = vmatprep.subr.mxu0 0.0
  %1891 = vmatpush1.msra.mxu0 0.0
  %1892 = vmatprep.subr.mxu0 0.0
  %1893 = vmatpush1.msra.mxu0 0.0
  %1894 = vmatprep.subr.mxu0 0.0
  %1895 = vmatpush1.msra.mxu0 0.0
  %1896 = vmatprep.subr.mxu0 0.0
  %1897 = vmatpush1.msra.mxu0 0.0
  %1898 = vmatprep.subr.mxu0 0.0
  %1899 = vmatpush1.msra.mxu0 0.0
  %1900 = vmatprep.subr.mxu0 0.0
  %1901 = vmatpush1.msra.mxu0 0.0
  %1902 = vmatprep.subr.mxu0 0.0
  %1903 = vmatpush1.msra.mxu0 0.0
  %1904 = vmatprep.subr.mxu0 0.0
  %1905 = vmatpush1.msra.mxu0 0.0
  %1906 = vmatprep.subr.mxu0 0.0
  %1907 = vmatpush1.msra.mxu0 0.0
  %1908 = vmatprep.subr.mxu0 0.0
  %1909 = vmatpush1.msra.mxu0 0.0
  %1910 = vmatprep.subr.mxu0 0.0
  %1911 = vmatpush1.msra.mxu0 0.0
  %1912 = vmatprep.subr.mxu0 0.0
  %1913 = vmatpush1.msra.mxu0 0.0
  %1914 = vmatprep.subr.mxu0 0.0
  %1915 = vmatpush1.msra.mxu0 0.0
  %1916 = vmatprep.subr.mxu0 0.0
  %1917 = vmatpush1.msra.mxu0 0.0
  %1918 = vmatprep.subr.mxu0 0.0
  %1919 = vmatpush1.msra.mxu0 0.0
  %1920 = vmatprep.subr.mxu0 0.0
  %1921 = vmatpush1.msra.mxu0 0.0
  %1922 = vmatprep.subr.mxu0 0.0
  %1923 = vmatpush1.msra.mxu0 0.0
  %1924 = vmatprep.subr.mxu0 0.0
  %1925 = vmatpush1.msra.mxu0 0.0
  %1926 = vmatprep.subr.mxu0 0.0
  %1927 = vmatpush1.msra.mxu0 0.0
  %1928 = vmatprep.subr.mxu0 0.0
  %1929 = vmatpush1.msra.mxu0 0.0
  %1930 = vmatprep.subr.mxu0 0.0
  %1931 = vmatpush1.msra.mxu0 0.0
  %1932 = vmatprep.subr.mxu0 0.0
  %1933 = vmatpush1.msra.mxu0 0.0
  %1934 = vmatprep.subr.mxu0 0.0
  %1935 = vmatpush1.msra.mxu0 0.0
  %1936 = vmatprep.subr.mxu0 0.0
  %1937 = vmatpush1.msra.mxu0 0.0
  %1938 = vmatprep.subr.mxu0 0.0
  %1939 = vmatpush1.msra.mxu0 0.0
  %1940 = vmatprep.subr.mxu0 0.0
  %1941 = vmatpush1.msra.mxu0 0.0
  %1942 = vmatprep.subr.mxu0 0.0
  %1943 = vmatpush1.msra.mxu0 0.0
  %1944 = vmatprep.mubr.f32.mxu0 0.0
  %1945 = vmatmul.mubr.f32.gmra.mrb[0].mxu0 %v1875
  %v1946 = vpop.f32.mrb[0].mxu0
  %v1947 = vadd.f32 0.0, %v1946
  %v1948 = vpop.f32.mrb[0].mxu0
  %1949 = vmatprep.mubr.f32.mxu0 0.0
  %1950 = vmatmul.mubr.f32.gmra.mrb[0].mxu0 %v1878
  %v1951 = vpop.f32.mrb[0].mxu0
  %v1952 = vadd.f32 0.0, %v1951
  %v1953 = vpop.f32.mrb[0].mxu0
  %1954 = vdwg.mxu0
  %1955 = vrot.lane.b32.xlu0 %v1745, 120
  %v1956 = vpop.permute.xlu0 %1955
  %1957 = vrot.lane.b32.xlu0 %v1750, 120
  %v1958 = vpop.permute.xlu0 %1957
  %1959 = vrot.lane.b32.xlu0 %v1745, 88
  %v1960 = vpop.permute.xlu0 %1959
  %1961 = vrot.lane.b32.xlu0 %v1750, 88
  %v1962 = vpop.permute.xlu0 %1961
  %v1963 = vsel %vm246, %v1956, 0
  %v1965 = vsel %vm246, %v1958, 0
  %v1967 = vsel %vm246, %v1960, 0
  %v1969 = vsel %vm246, %v1962, 0
  %1971 = vmatprep.subr.mxu0 0.0
  %1972 = vmatpush1.xpose.msra.mxu0 %v1967
  %1973 = vmatprep.subr.mxu0 0.0
  %1974 = vmatpush1.xpose.msra.mxu0 %v1969
  %1975 = vmatprep.subr.mxu0 0.0
  %1976 = vmatpush1.xpose.msra.mxu0 0.0
  %1977 = vmatprep.subr.mxu0 0.0
  %1978 = vmatpush1.xpose.msra.mxu0 0.0
  %1979 = vmatprep.subr.mxu0 0.0
  %1980 = vmatpush1.xpose.msra.mxu0 0.0
  %1981 = vmatprep.subr.mxu0 0.0
  %1982 = vmatpush1.xpose.msra.mxu0 0.0
  %1983 = vmatprep.subr.mxu0 0.0
  %1984 = vmatpush1.xpose.msra.mxu0 0.0
  %1985 = vmatprep.subr.mxu0 0.0
  %1986 = vmatpush1.xpose.msra.mxu0 0.0
  %1987 = vmatprep.subr.mxu0 0.0
  %1988 = vmatpush1.xpose.msra.mxu0 0.0
  %1989 = vmatprep.subr.mxu0 0.0
  %1990 = vmatpush1.xpose.msra.mxu0 0.0
  %1991 = vmatprep.subr.mxu0 0.0
  %1992 = vmatpush1.xpose.msra.mxu0 0.0
  %1993 = vmatprep.subr.mxu0 0.0
  %1994 = vmatpush1.xpose.msra.mxu0 0.0
  %1995 = vmatprep.subr.mxu0 0.0
  %1996 = vmatpush1.xpose.msra.mxu0 0.0
  %1997 = vmatprep.subr.mxu0 0.0
  %1998 = vmatpush1.xpose.msra.mxu0 0.0
  %1999 = vmatprep.subr.mxu0 0.0
  %2000 = vmatpush1.xpose.msra.mxu0 0.0
  %2001 = vmatprep.subr.mxu0 0.0
  %2002 = vmatpush1.xpose.msra.mxu0 0.0
  %2003 = vmatprep.subr.mxu0 0.0
  %2004 = vmatpush1.xpose.msra.mxu0 0.0
  %2005 = vmatprep.subr.mxu0 0.0
  %2006 = vmatpush1.xpose.msra.mxu0 0.0
  %2007 = vmatprep.subr.mxu0 0.0
  %2008 = vmatpush1.xpose.msra.mxu0 0.0
  %2009 = vmatprep.subr.mxu0 0.0
  %2010 = vmatpush1.xpose.msra.mxu0 0.0
  %2011 = vmatprep.subr.mxu0 0.0
  %2012 = vmatpush1.xpose.msra.mxu0 0.0
  %2013 = vmatprep.subr.mxu0 0.0
  %2014 = vmatpush1.xpose.msra.mxu0 0.0
  %2015 = vmatprep.subr.mxu0 0.0
  %2016 = vmatpush1.xpose.msra.mxu0 0.0
  %2017 = vmatprep.subr.mxu0 0.0
  %2018 = vmatpush1.xpose.msra.mxu0 0.0
  %2019 = vmatprep.subr.mxu0 0.0
  %2020 = vmatpush1.xpose.msra.mxu0 0.0
  %2021 = vmatprep.subr.mxu0 0.0
  %2022 = vmatpush1.xpose.msra.mxu0 0.0
  %2023 = vmatprep.subr.mxu0 0.0
  %2024 = vmatpush1.xpose.msra.mxu0 0.0
  %2025 = vmatprep.subr.mxu0 0.0
  %2026 = vmatpush1.xpose.msra.mxu0 0.0
  %2027 = vmatprep.subr.mxu0 0.0
  %2028 = vmatpush1.xpose.msra.mxu0 0.0
  %2029 = vmatprep.subr.mxu0 0.0
  %2030 = vmatpush1.xpose.msra.mxu0 0.0
  %2031 = vmatprep.subr.mxu0 0.0
  %2032 = vmatpush1.xpose.msra.mxu0 0.0
  %2033 = vmatprep.subr.mxu0 0.0
  %2034 = vmatpush1.xpose.msra.mxu0 0.0
  %2035 = vmatprep.mubr.f32.mxu0 0.0
  %2036 = vmatmul.mubr.f32.gmra.mrb[0].mxu0 %v1963
  %v2037 = vpop.f32.mrb[0].mxu0
  %v2038 = vadd.f32 0.0, %v2037
  %v2039 = vpop.f32.mrb[0].mxu0
  %2040 = vmatprep.mubr.f32.mxu0 0.0
  %2041 = vmatmul.mubr.f32.gmra.mrb[0].mxu0 %v1965
  %v2042 = vpop.f32.mrb[0].mxu0
  %v2043 = vadd.f32 0.0, %v2042
  %v2044 = vpop.f32.mrb[0].mxu0
  %2045 = vdwg.mxu0
  %v2046 = vmul.f32 %v2038, 2.828427
  %v2047 = vmul.f32 %v2043, 2.828427
  %v2048 = vadd.f32 %v2046, %v148
  %v2049 = vadd.f32 %v2047, %v149
  %v2050 = vsel %vm334, %v2048, -inf
  %2051 = vmax.xlane.f32.xlu0 %v2050
  %v2052 = vpop.xlane.xlu0 %2051
  %v2053 = vsel %vm334, %v2049, -inf
  %2054 = vmax.xlane.f32.xlu0 %v2053
  %v2055 = vpop.xlane.xlu0 %2054
  %v2056 = vsub.f32 %v2048, %v2052
  %v2057 = vsub.f32 %v2049, %v2055
  %v2058 = vmul.f32 %v2056, 1.442695
  %v2059 = vpow.pop %v2058
  %v2060 = vmul.f32 %v2057, 1.442695
  %v2061 = vpow.pop %v2060
  %v2062 = vsel %vm334, %v2059, 0.0
  %2063 = vadd.xlane.f32.xlu0 %v2062
  %v2064 = vpop.xlane.xlu0 %2063
  %v2065 = vsel %vm334, %v2061, 0.0
  %2066 = vadd.xlane.f32.xlu0 %v2065
  %v2067 = vpop.xlane.xlu0 %2066
  %v2068 = vrcp.pop %v2064
  %v2069 = vrcp.pop %v2067
  %v2070 = vmul.f32 %v2059, %v2068
  %v2071 = vmul.f32 %v2061, %v2069
  %2072 = vrot.lane.b32.xlu0 %v1745, 56
  %v2073 = vpop.permute.xlu0 %2072
  %2074 = vrot.lane.b32.xlu0 %v1750, 56
  %v2075 = vpop.permute.xlu0 %2074
  %v2079 = vsel %vm334, %v2070, 0
  %v2082 = vsel %vm334, %v2071, 0
  %2084 = vmatprep.subr.mxu0 0.0
  %2085 = vmatpush1.msra.mxu0 %v2073
  %2086 = vmatprep.subr.mxu0 0.0
  %2087 = vmatpush1.msra.mxu0 %v2075
  %2088 = vmatprep.subr.mxu0 0.0
  %2089 = vmatpush1.msra.mxu0 0.0
  %2090 = vmatprep.subr.mxu0 0.0
  %2091 = vmatpush1.msra.mxu0 0.0
  %2092 = vmatprep.subr.mxu0 0.0
  %2093 = vmatpush1.msra.mxu0 0.0
  %2094 = vmatprep.subr.mxu0 0.0
  %2095 = vmatpush1.msra.mxu0 0.0
  %2096 = vmatprep.subr.mxu0 0.0
  %2097 = vmatpush1.msra.mxu0 0.0
  %2098 = vmatprep.subr.mxu0 0.0
  %2099 = vmatpush1.msra.mxu0 0.0
  %2100 = vmatprep.subr.mxu0 0.0
  %2101 = vmatpush1.msra.mxu0 0.0
  %2102 = vmatprep.subr.mxu0 0.0
  %2103 = vmatpush1.msra.mxu0 0.0
  %2104 = vmatprep.subr.mxu0 0.0
  %2105 = vmatpush1.msra.mxu0 0.0
  %2106 = vmatprep.subr.mxu0 0.0
  %2107 = vmatpush1.msra.mxu0 0.0
  %2108 = vmatprep.subr.mxu0 0.0
  %2109 = vmatpush1.msra.mxu0 0.0
  %2110 = vmatprep.subr.mxu0 0.0
  %2111 = vmatpush1.msra.mxu0 0.0
  %2112 = vmatprep.subr.mxu0 0.0
  %2113 = vmatpush1.msra.mxu0 0.0
  %2114 = vmatprep.subr.mxu0 0.0
  %2115 = vmatpush1.msra.mxu0 0.0
  %2116 = vmatprep.subr.mxu0 0.0
  %2117 = vmatpush1.msra.mxu0 0.0
  %2118 = vmatprep.subr.mxu0 0.0
  %2119 = vmatpush1.msra.mxu0 0.0
  %2120 = vmatprep.subr.mxu0 0.0
  %2121 = vmatpush1.msra.mxu0 0.0
  %2122 = vmatprep.subr.mxu0 0.0
  %2123 = vmatpush1.msra.mxu0 0.0
  %2124 = vmatprep.subr.mxu0 0.0
  %2125 = vmatpush1.msra.mxu0 0.0
  %2126 = vmatprep.subr.mxu0 0.0
  %2127 = vmatpush1.msra.mxu0 0.0
  %2128 = vmatprep.subr.mxu0 0.0
  %2129 = vmatpush1.msra.mxu0 0.0
  %2130 = vmatprep.subr.mxu0 0.0
  %2131 = vmatpush1.msra.mxu0 0.0
  %2132 = vmatprep.subr.mxu0 0.0
  %2133 = vmatpush1.msra.mxu0 0.0
  %2134 = vmatprep.subr.mxu0 0.0
  %2135 = vmatpush1.msra.mxu0 0.0
  %2136 = vmatprep.subr.mxu0 0.0
  %2137 = vmatpush1.msra.mxu0 0.0
  %2138 = vmatprep.subr.mxu0 0.0
  %2139 = vmatpush1.msra.mxu0 0.0
  %2140 = vmatprep.subr.mxu0 0.0
  %2141 = vmatpush1.msra.mxu0 0.0
  %2142 = vmatprep.subr.mxu0 0.0
  %2143 = vmatpush1.msra.mxu0 0.0
  %2144 = vmatprep.subr.mxu0 0.0
  %2145 = vmatpush1.msra.mxu0 0.0
  %2146 = vmatprep.subr.mxu0 0.0
  %2147 = vmatpush1.msra.mxu0 0.0
  %2148 = vmatprep.mubr.f32.mxu0 0.0
  %2149 = vmatmul.mubr.f32.gmra.mrb[0].mxu0 %v2079
  %v2150 = vpop.f32.mrb[0].mxu0
  %v2151 = vadd.f32 0.0, %v2150
  %v2152 = vpop.f32.mrb[0].mxu0
  %2153 = vmatprep.mubr.f32.mxu0 0.0
  %2154 = vmatmul.mubr.f32.gmra.mrb[0].mxu0 %v2082
  %v2155 = vpop.f32.mrb[0].mxu0
  %v2156 = vadd.f32 0.0, %v2155
  %v2157 = vpop.f32.mrb[0].mxu0
  %2158 = vdwg.mxu0
  %v2160 = vsel %vm246, %v2151, 0
  %v2163 = vsel %vm246, %v2156, 0
  %2165 = vmatprep.subr.mxu0 0.0
  %2166 = vmatpush1.msra.mxu0 %v1662
  %2167 = vmatprep.subr.mxu0 0.0
  %2168 = vmatpush1.msra.mxu0 0.0
  %2169 = vmatprep.subr.mxu0 0.0
  %2170 = vmatpush1.msra.mxu0 0.0
  %2171 = vmatprep.subr.mxu0 0.0
  %2172 = vmatpush1.msra.mxu0 0.0
  %2173 = vmatprep.subr.mxu0 0.0
  %2174 = vmatpush1.msra.mxu0 0.0
  %2175 = vmatprep.subr.mxu0 0.0
  %2176 = vmatpush1.msra.mxu0 0.0
  %2177 = vmatprep.subr.mxu0 0.0
  %2178 = vmatpush1.msra.mxu0 0.0
  %2179 = vmatprep.subr.mxu0 0.0
  %2180 = vmatpush1.msra.mxu0 0.0
  %2181 = vmatprep.subr.mxu0 0.0
  %2182 = vmatpush1.msra.mxu0 0.0
  %2183 = vmatprep.subr.mxu0 0.0
  %2184 = vmatpush1.msra.mxu0 0.0
  %2185 = vmatprep.subr.mxu0 0.0
  %2186 = vmatpush1.msra.mxu0 0.0
  %2187 = vmatprep.subr.mxu0 0.0
  %2188 = vmatpush1.msra.mxu0 0.0
  %2189 = vmatprep.subr.mxu0 0.0
  %2190 = vmatpush1.msra.mxu0 0.0
  %2191 = vmatprep.subr.mxu0 0.0
  %2192 = vmatpush1.msra.mxu0 0.0
  %2193 = vmatprep.subr.mxu0 0.0
  %2194 = vmatpush1.msra.mxu0 0.0
  %2195 = vmatprep.subr.mxu0 0.0
  %2196 = vmatpush1.msra.mxu0 0.0
  %2197 = vmatprep.subr.mxu0 0.0
  %2198 = vmatpush1.msra.mxu0 0.0
  %2199 = vmatprep.subr.mxu0 0.0
  %2200 = vmatpush1.msra.mxu0 0.0
  %2201 = vmatprep.subr.mxu0 0.0
  %2202 = vmatpush1.msra.mxu0 0.0
  %2203 = vmatprep.subr.mxu0 0.0
  %2204 = vmatpush1.msra.mxu0 0.0
  %2205 = vmatprep.subr.mxu0 0.0
  %2206 = vmatpush1.msra.mxu0 0.0
  %2207 = vmatprep.subr.mxu0 0.0
  %2208 = vmatpush1.msra.mxu0 0.0
  %2209 = vmatprep.subr.mxu0 0.0
  %2210 = vmatpush1.msra.mxu0 0.0
  %2211 = vmatprep.subr.mxu0 0.0
  %2212 = vmatpush1.msra.mxu0 0.0
  %2213 = vmatprep.subr.mxu0 0.0
  %2214 = vmatpush1.msra.mxu0 0.0
  %2215 = vmatprep.subr.mxu0 0.0
  %2216 = vmatpush1.msra.mxu0 0.0
  %2217 = vmatprep.subr.mxu0 0.0
  %2218 = vmatpush1.msra.mxu0 0.0
  %2219 = vmatprep.subr.mxu0 0.0
  %2220 = vmatpush1.msra.mxu0 0.0
  %2221 = vmatprep.subr.mxu0 0.0
  %2222 = vmatpush1.msra.mxu0 0.0
  %2223 = vmatprep.subr.mxu0 0.0
  %2224 = vmatpush1.msra.mxu0 0.0
  %2225 = vmatprep.subr.mxu0 0.0
  %2226 = vmatpush1.msra.mxu0 0.0
  %2227 = vmatprep.subr.mxu0 0.0
  %2228 = vmatpush1.msra.mxu0 0.0
  %2229 = vmatprep.mubr.f32.mxu0 0.0
  %2230 = vmatmul.mubr.f32.gmra.mrb[0].mxu0 %v2160
  %v2231 = vpop.f32.mrb[0].mxu0
  %v2232 = vadd.f32 0.0, %v2231
  %v2233 = vpop.f32.mrb[0].mxu0
  %2234 = vmatprep.mubr.f32.mxu0 0.0
  %2235 = vmatmul.mubr.f32.gmra.mrb[0].mxu0 %v2163
  %v2236 = vpop.f32.mrb[0].mxu0
  %v2237 = vadd.f32 0.0, %v2236
  %v2238 = vpop.f32.mrb[0].mxu0
  %2239 = vdwg.mxu0
  %v2241 = vsel %vm246, %v1947, 0
  %v2244 = vsel %vm246, %v1952, 0
  %2246 = vmatprep.subr.mxu0 0.0
  %2247 = vmatpush1.msra.mxu0 %v1661
  %2248 = vmatprep.subr.mxu0 0.0
  %2249 = vmatpush1.msra.mxu0 0.0
  %2250 = vmatprep.subr.mxu0 0.0
  %2251 = vmatpush1.msra.mxu0 0.0
  %2252 = vmatprep.subr.mxu0 0.0
  %2253 = vmatpush1.msra.mxu0 0.0
  %2254 = vmatprep.subr.mxu0 0.0
  %2255 = vmatpush1.msra.mxu0 0.0
  %2256 = vmatprep.subr.mxu0 0.0
  %2257 = vmatpush1.msra.mxu0 0.0
  %2258 = vmatprep.subr.mxu0 0.0
  %2259 = vmatpush1.msra.mxu0 0.0
  %2260 = vmatprep.subr.mxu0 0.0
  %2261 = vmatpush1.msra.mxu0 0.0
  %2262 = vmatprep.subr.mxu0 0.0
  %2263 = vmatpush1.msra.mxu0 0.0
  %2264 = vmatprep.subr.mxu0 0.0
  %2265 = vmatpush1.msra.mxu0 0.0
  %2266 = vmatprep.subr.mxu0 0.0
  %2267 = vmatpush1.msra.mxu0 0.0
  %2268 = vmatprep.subr.mxu0 0.0
  %2269 = vmatpush1.msra.mxu0 0.0
  %2270 = vmatprep.subr.mxu0 0.0
  %2271 = vmatpush1.msra.mxu0 0.0
  %2272 = vmatprep.subr.mxu0 0.0
  %2273 = vmatpush1.msra.mxu0 0.0
  %2274 = vmatprep.subr.mxu0 0.0
  %2275 = vmatpush1.msra.mxu0 0.0
  %2276 = vmatprep.subr.mxu0 0.0
  %2277 = vmatpush1.msra.mxu0 0.0
  %2278 = vmatprep.subr.mxu0 0.0
  %2279 = vmatpush1.msra.mxu0 0.0
  %2280 = vmatprep.subr.mxu0 0.0
  %2281 = vmatpush1.msra.mxu0 0.0
  %2282 = vmatprep.subr.mxu0 0.0
  %2283 = vmatpush1.msra.mxu0 0.0
  %2284 = vmatprep.subr.mxu0 0.0
  %2285 = vmatpush1.msra.mxu0 0.0
  %2286 = vmatprep.subr.mxu0 0.0
  %2287 = vmatpush1.msra.mxu0 0.0
  %2288 = vmatprep.subr.mxu0 0.0
  %2289 = vmatpush1.msra.mxu0 0.0
  %2290 = vmatprep.subr.mxu0 0.0
  %2291 = vmatpush1.msra.mxu0 0.0
  %2292 = vmatprep.subr.mxu0 0.0
  %2293 = vmatpush1.msra.mxu0 0.0
  %2294 = vmatprep.subr.mxu0 0.0
  %2295 = vmatpush1.msra.mxu0 0.0
  %2296 = vmatprep.subr.mxu0 0.0
  %2297 = vmatpush1.msra.mxu0 0.0
  %2298 = vmatprep.subr.mxu0 0.0
  %2299 = vmatpush1.msra.mxu0 0.0
  %2300 = vmatprep.subr.mxu0 0.0
  %2301 = vmatpush1.msra.mxu0 0.0
  %2302 = vmatprep.subr.mxu0 0.0
  %2303 = vmatpush1.msra.mxu0 0.0
  %2304 = vmatprep.subr.mxu0 0.0
  %2305 = vmatpush1.msra.mxu0 0.0
  %2306 = vmatprep.subr.mxu0 0.0
  %2307 = vmatpush1.msra.mxu0 0.0
  %2308 = vmatprep.subr.mxu0 0.0
  %2309 = vmatpush1.msra.mxu0 0.0
  %2310 = vmatprep.mubr.f32.mxu0 0.0
  %2311 = vmatmul.mubr.f32.gmra.mrb[0].mxu0 %v2241
  %v2312 = vpop.f32.mrb[0].mxu0
  %v2313 = vadd.f32 %v2232, %v2312
  %v2314 = vpop.f32.mrb[0].mxu0
  %2315 = vmatprep.mubr.f32.mxu0 0.0
  %2316 = vmatmul.mubr.f32.gmra.mrb[0].mxu0 %v2244
  %v2317 = vpop.f32.mrb[0].mxu0
  %v2318 = vadd.f32 %v2237, %v2317
  %v2319 = vpop.f32.mrb[0].mxu0
  %2320 = vdwg.mxu0
  %2321 = vrot.lane.b32.xlu0 %v1745, 112
  %v2322 = vpop.permute.xlu0 %2321
  %2323 = vrot.lane.b32.xlu0 %v1750, 112
  %v2324 = vpop.permute.xlu0 %2323
  %2325 = vrot.lane.b32.xlu0 %v1745, 80
  %v2326 = vpop.permute.xlu0 %2325
  %2327 = vrot.lane.b32.xlu0 %v1750, 80
  %v2328 = vpop.permute.xlu0 %2327
  %v2329 = vsel %vm246, %v2322, 0
  %v2331 = vsel %vm246, %v2324, 0
  %v2333 = vsel %vm246, %v2326, 0
  %v2335 = vsel %vm246, %v2328, 0
  %2337 = vmatprep.subr.mxu0 0.0
  %2338 = vmatpush1.xpose.msra.mxu0 %v2333
  %2339 = vmatprep.subr.mxu0 0.0
  %2340 = vmatpush1.xpose.msra.mxu0 %v2335
  %2341 = vmatprep.subr.mxu0 0.0
  %2342 = vmatpush1.xpose.msra.mxu0 0.0
  %2343 = vmatprep.subr.mxu0 0.0
  %2344 = vmatpush1.xpose.msra.mxu0 0.0
  %2345 = vmatprep.subr.mxu0 0.0
  %2346 = vmatpush1.xpose.msra.mxu0 0.0
  %2347 = vmatprep.subr.mxu0 0.0
  %2348 = vmatpush1.xpose.msra.mxu0 0.0
  %2349 = vmatprep.subr.mxu0 0.0
  %2350 = vmatpush1.xpose.msra.mxu0 0.0
  %2351 = vmatprep.subr.mxu0 0.0
  %2352 = vmatpush1.xpose.msra.mxu0 0.0
  %2353 = vmatprep.subr.mxu0 0.0
  %2354 = vmatpush1.xpose.msra.mxu0 0.0
  %2355 = vmatprep.subr.mxu0 0.0
  %2356 = vmatpush1.xpose.msra.mxu0 0.0
  %2357 = vmatprep.subr.mxu0 0.0
  %2358 = vmatpush1.xpose.msra.mxu0 0.0
  %2359 = vmatprep.subr.mxu0 0.0
  %2360 = vmatpush1.xpose.msra.mxu0 0.0
  %2361 = vmatprep.subr.mxu0 0.0
  %2362 = vmatpush1.xpose.msra.mxu0 0.0
  %2363 = vmatprep.subr.mxu0 0.0
  %2364 = vmatpush1.xpose.msra.mxu0 0.0
  %2365 = vmatprep.subr.mxu0 0.0
  %2366 = vmatpush1.xpose.msra.mxu0 0.0
  %2367 = vmatprep.subr.mxu0 0.0
  %2368 = vmatpush1.xpose.msra.mxu0 0.0
  %2369 = vmatprep.subr.mxu0 0.0
  %2370 = vmatpush1.xpose.msra.mxu0 0.0
  %2371 = vmatprep.subr.mxu0 0.0
  %2372 = vmatpush1.xpose.msra.mxu0 0.0
  %2373 = vmatprep.subr.mxu0 0.0
  %2374 = vmatpush1.xpose.msra.mxu0 0.0
  %2375 = vmatprep.subr.mxu0 0.0
  %2376 = vmatpush1.xpose.msra.mxu0 0.0
  %2377 = vmatprep.subr.mxu0 0.0
  %2378 = vmatpush1.xpose.msra.mxu0 0.0
  %2379 = vmatprep.subr.mxu0 0.0
  %2380 = vmatpush1.xpose.msra.mxu0 0.0
  %2381 = vmatprep.subr.mxu0 0.0
  %2382 = vmatpush1.xpose.msra.mxu0 0.0
  %2383 = vmatprep.subr.mxu0 0.0
  %2384 = vmatpush1.xpose.msra.mxu0 0.0
  %2385 = vmatprep.subr.mxu0 0.0
  %2386 = vmatpush1.xpose.msra.mxu0 0.0
  %2387 = vmatprep.subr.mxu0 0.0
  %2388 = vmatpush1.xpose.msra.mxu0 0.0
  %2389 = vmatprep.subr.mxu0 0.0
  %2390 = vmatpush1.xpose.msra.mxu0 0.0
  %2391 = vmatprep.subr.mxu0 0.0
  %2392 = vmatpush1.xpose.msra.mxu0 0.0
  %2393 = vmatprep.subr.mxu0 0.0
  %2394 = vmatpush1.xpose.msra.mxu0 0.0
  %2395 = vmatprep.subr.mxu0 0.0
  %2396 = vmatpush1.xpose.msra.mxu0 0.0
  %2397 = vmatprep.subr.mxu0 0.0
  %2398 = vmatpush1.xpose.msra.mxu0 0.0
  %2399 = vmatprep.subr.mxu0 0.0
  %2400 = vmatpush1.xpose.msra.mxu0 0.0
  %2401 = vmatprep.mubr.f32.mxu0 0.0
  %2402 = vmatmul.mubr.f32.gmra.mrb[0].mxu0 %v2329
  %v2403 = vpop.f32.mrb[0].mxu0
  %v2404 = vadd.f32 0.0, %v2403
  %v2405 = vpop.f32.mrb[0].mxu0
  %2406 = vmatprep.mubr.f32.mxu0 0.0
  %2407 = vmatmul.mubr.f32.gmra.mrb[0].mxu0 %v2331
  %v2408 = vpop.f32.mrb[0].mxu0
  %v2409 = vadd.f32 0.0, %v2408
  %v2410 = vpop.f32.mrb[0].mxu0
  %2411 = vdwg.mxu0
  %v2412 = vmul.f32 %v2404, 2.828427
  %v2413 = vmul.f32 %v2409, 2.828427
  %v2414 = vadd.f32 %v2412, %v148
  %v2415 = vadd.f32 %v2413, %v149
  %v2416 = vsel %vm334, %v2414, -inf
  %2417 = vmax.xlane.f32.xlu0 %v2416
  %v2418 = vpop.xlane.xlu0 %2417
  %v2419 = vsel %vm334, %v2415, -inf
  %2420 = vmax.xlane.f32.xlu0 %v2419
  %v2421 = vpop.xlane.xlu0 %2420
  %v2422 = vsub.f32 %v2414, %v2418
  %v2423 = vsub.f32 %v2415, %v2421
  %v2424 = vmul.f32 %v2422, 1.442695
  %v2425 = vpow.pop %v2424
  %v2426 = vmul.f32 %v2423, 1.442695
  %v2427 = vpow.pop %v2426
  %v2428 = vsel %vm334, %v2425, 0.0
  %2429 = vadd.xlane.f32.xlu0 %v2428
  %v2430 = vpop.xlane.xlu0 %2429
  %v2431 = vsel %vm334, %v2427, 0.0
  %2432 = vadd.xlane.f32.xlu0 %v2431
  %v2433 = vpop.xlane.xlu0 %2432
  %v2434 = vrcp.pop %v2430
  %v2435 = vrcp.pop %v2433
  %v2436 = vmul.f32 %v2425, %v2434
  %v2437 = vmul.f32 %v2427, %v2435
  %2438 = vrot.lane.b32.xlu0 %v1745, 48
  %v2439 = vpop.permute.xlu0 %2438
  %2440 = vrot.lane.b32.xlu0 %v1750, 48
  %v2441 = vpop.permute.xlu0 %2440
  %v2445 = vsel %vm334, %v2436, 0
  %v2448 = vsel %vm334, %v2437, 0
  %2450 = vmatprep.subr.mxu0 0.0
  %2451 = vmatpush1.msra.mxu0 %v2439
  %2452 = vmatprep.subr.mxu0 0.0
  %2453 = vmatpush1.msra.mxu0 %v2441
  %2454 = vmatprep.subr.mxu0 0.0
  %2455 = vmatpush1.msra.mxu0 0.0
  %2456 = vmatprep.subr.mxu0 0.0
  %2457 = vmatpush1.msra.mxu0 0.0
  %2458 = vmatprep.subr.mxu0 0.0
  %2459 = vmatpush1.msra.mxu0 0.0
  %2460 = vmatprep.subr.mxu0 0.0
  %2461 = vmatpush1.msra.mxu0 0.0
  %2462 = vmatprep.subr.mxu0 0.0
  %2463 = vmatpush1.msra.mxu0 0.0
  %2464 = vmatprep.subr.mxu0 0.0
  %2465 = vmatpush1.msra.mxu0 0.0
  %2466 = vmatprep.subr.mxu0 0.0
  %2467 = vmatpush1.msra.mxu0 0.0
  %2468 = vmatprep.subr.mxu0 0.0
  %2469 = vmatpush1.msra.mxu0 0.0
  %2470 = vmatprep.subr.mxu0 0.0
  %2471 = vmatpush1.msra.mxu0 0.0
  %2472 = vmatprep.subr.mxu0 0.0
  %2473 = vmatpush1.msra.mxu0 0.0
  %2474 = vmatprep.subr.mxu0 0.0
  %2475 = vmatpush1.msra.mxu0 0.0
  %2476 = vmatprep.subr.mxu0 0.0
  %2477 = vmatpush1.msra.mxu0 0.0
  %2478 = vmatprep.subr.mxu0 0.0
  %2479 = vmatpush1.msra.mxu0 0.0
  %2480 = vmatprep.subr.mxu0 0.0
  %2481 = vmatpush1.msra.mxu0 0.0
  %2482 = vmatprep.subr.mxu0 0.0
  %2483 = vmatpush1.msra.mxu0 0.0
  %2484 = vmatprep.subr.mxu0 0.0
  %2485 = vmatpush1.msra.mxu0 0.0
  %2486 = vmatprep.subr.mxu0 0.0
  %2487 = vmatpush1.msra.mxu0 0.0
  %2488 = vmatprep.subr.mxu0 0.0
  %2489 = vmatpush1.msra.mxu0 0.0
  %2490 = vmatprep.subr.mxu0 0.0
  %2491 = vmatpush1.msra.mxu0 0.0
  %2492 = vmatprep.subr.mxu0 0.0
  %2493 = vmatpush1.msra.mxu0 0.0
  %2494 = vmatprep.subr.mxu0 0.0
  %2495 = vmatpush1.msra.mxu0 0.0
  %2496 = vmatprep.subr.mxu0 0.0
  %2497 = vmatpush1.msra.mxu0 0.0
  %2498 = vmatprep.subr.mxu0 0.0
  %2499 = vmatpush1.msra.mxu0 0.0
  %2500 = vmatprep.subr.mxu0 0.0
  %2501 = vmatpush1.msra.mxu0 0.0
  %2502 = vmatprep.subr.mxu0 0.0
  %2503 = vmatpush1.msra.mxu0 0.0
  %2504 = vmatprep.subr.mxu0 0.0
  %2505 = vmatpush1.msra.mxu0 0.0
  %2506 = vmatprep.subr.mxu0 0.0
  %2507 = vmatpush1.msra.mxu0 0.0
  %2508 = vmatprep.subr.mxu0 0.0
  %2509 = vmatpush1.msra.mxu0 0.0
  %2510 = vmatprep.subr.mxu0 0.0
  %2511 = vmatpush1.msra.mxu0 0.0
  %2512 = vmatprep.subr.mxu0 0.0
  %2513 = vmatpush1.msra.mxu0 0.0
  %2514 = vmatprep.mubr.f32.mxu0 0.0
  %2515 = vmatmul.mubr.f32.gmra.mrb[0].mxu0 %v2445
  %v2516 = vpop.f32.mrb[0].mxu0
  %v2517 = vadd.f32 0.0, %v2516
  %v2518 = vpop.f32.mrb[0].mxu0
  %2519 = vmatprep.mubr.f32.mxu0 0.0
  %2520 = vmatmul.mubr.f32.gmra.mrb[0].mxu0 %v2448
  %v2521 = vpop.f32.mrb[0].mxu0
  %v2522 = vadd.f32 0.0, %v2521
  %v2523 = vpop.f32.mrb[0].mxu0
  %2524 = vdwg.mxu0
  %v2526 = vsel %vm246, %v2517, 0
  %v2529 = vsel %vm246, %v2522, 0
  %2531 = vmatprep.subr.mxu0 0.0
  %2532 = vmatpush1.msra.mxu0 %v1663
  %2533 = vmatprep.subr.mxu0 0.0
  %2534 = vmatpush1.msra.mxu0 0.0
  %2535 = vmatprep.subr.mxu0 0.0
  %2536 = vmatpush1.msra.mxu0 0.0
  %2537 = vmatprep.subr.mxu0 0.0
  %2538 = vmatpush1.msra.mxu0 0.0
  %2539 = vmatprep.subr.mxu0 0.0
  %2540 = vmatpush1.msra.mxu0 0.0
  %2541 = vmatprep.subr.mxu0 0.0
  %2542 = vmatpush1.msra.mxu0 0.0
  %2543 = vmatprep.subr.mxu0 0.0
  %2544 = vmatpush1.msra.mxu0 0.0
  %2545 = vmatprep.subr.mxu0 0.0
  %2546 = vmatpush1.msra.mxu0 0.0
  %2547 = vmatprep.subr.mxu0 0.0
  %2548 = vmatpush1.msra.mxu0 0.0
  %2549 = vmatprep.subr.mxu0 0.0
  %2550 = vmatpush1.msra.mxu0 0.0
  %2551 = vmatprep.subr.mxu0 0.0
  %2552 = vmatpush1.msra.mxu0 0.0
  %2553 = vmatprep.subr.mxu0 0.0
  %2554 = vmatpush1.msra.mxu0 0.0
  %2555 = vmatprep.subr.mxu0 0.0
  %2556 = vmatpush1.msra.mxu0 0.0
  %2557 = vmatprep.subr.mxu0 0.0
  %2558 = vmatpush1.msra.mxu0 0.0
  %2559 = vmatprep.subr.mxu0 0.0
  %2560 = vmatpush1.msra.mxu0 0.0
  %2561 = vmatprep.subr.mxu0 0.0
  %2562 = vmatpush1.msra.mxu0 0.0
  %2563 = vmatprep.subr.mxu0 0.0
  %2564 = vmatpush1.msra.mxu0 0.0
  %2565 = vmatprep.subr.mxu0 0.0
  %2566 = vmatpush1.msra.mxu0 0.0
  %2567 = vmatprep.subr.mxu0 0.0
  %2568 = vmatpush1.msra.mxu0 0.0
  %2569 = vmatprep.subr.mxu0 0.0
  %2570 = vmatpush1.msra.mxu0 0.0
  %2571 = vmatprep.subr.mxu0 0.0
  %2572 = vmatpush1.msra.mxu0 0.0
  %2573 = vmatprep.subr.mxu0 0.0
  %2574 = vmatpush1.msra.mxu0 0.0
  %2575 = vmatprep.subr.mxu0 0.0
  %2576 = vmatpush1.msra.mxu0 0.0
  %2577 = vmatprep.subr.mxu0 0.0
  %2578 = vmatpush1.msra.mxu0 0.0
  %2579 = vmatprep.subr.mxu0 0.0
  %2580 = vmatpush1.msra.mxu0 0.0
  %2581 = vmatprep.subr.mxu0 0.0
  %2582 = vmatpush1.msra.mxu0 0.0
  %2583 = vmatprep.subr.mxu0 0.0
  %2584 = vmatpush1.msra.mxu0 0.0
  %2585 = vmatprep.subr.mxu0 0.0
  %2586 = vmatpush1.msra.mxu0 0.0
  %2587 = vmatprep.subr.mxu0 0.0
  %2588 = vmatpush1.msra.mxu0 0.0
  %2589 = vmatprep.subr.mxu0 0.0
  %2590 = vmatpush1.msra.mxu0 0.0
  %2591 = vmatprep.subr.mxu0 0.0
  %2592 = vmatpush1.msra.mxu0 0.0
  %2593 = vmatprep.subr.mxu0 0.0
  %2594 = vmatpush1.msra.mxu0 0.0
  %2595 = vmatprep.mubr.f32.mxu0 0.0
  %2596 = vmatmul.mubr.f32.gmra.mrb[0].mxu0 %v2526
  %v2597 = vpop.f32.mrb[0].mxu0
  %v2598 = vadd.f32 0.0, %v2597
  %v2599 = vpop.f32.mrb[0].mxu0
  %2600 = vmatprep.mubr.f32.mxu0 0.0
  %2601 = vmatmul.mubr.f32.gmra.mrb[0].mxu0 %v2529
  %v2602 = vpop.f32.mrb[0].mxu0
  %v2603 = vadd.f32 0.0, %v2602
  %v2604 = vpop.f32.mrb[0].mxu0
  %2605 = vdwg.mxu0
  %v2606 = vadd.f32 %v2313, %v2598
  %v2607 = vadd.f32 %v2318, %v2603
  %2608 = vrot.lane.b32.xlu0 %v1745, 104
  %v2609 = vpop.permute.xlu0 %2608
  %2610 = vrot.lane.b32.xlu0 %v1750, 104
  %v2611 = vpop.permute.xlu0 %2610
  %2612 = vrot.lane.b32.xlu0 %v1745, 72
  %v2613 = vpop.permute.xlu0 %2612
  %2614 = vrot.lane.b32.xlu0 %v1750, 72
  %v2615 = vpop.permute.xlu0 %2614
  %v2616 = vsel %vm246, %v2609, 0
  %v2618 = vsel %vm246, %v2611, 0
  %v2620 = vsel %vm246, %v2613, 0
  %v2622 = vsel %vm246, %v2615, 0
  %2624 = vmatprep.subr.mxu0 0.0
  %2625 = vmatpush1.xpose.msra.mxu0 %v2620
  %2626 = vmatprep.subr.mxu0 0.0
  %2627 = vmatpush1.xpose.msra.mxu0 %v2622
  %2628 = vmatprep.subr.mxu0 0.0
  %2629 = vmatpush1.xpose.msra.mxu0 0.0
  %2630 = vmatprep.subr.mxu0 0.0
  %2631 = vmatpush1.xpose.msra.mxu0 0.0
  %2632 = vmatprep.subr.mxu0 0.0
  %2633 = vmatpush1.xpose.msra.mxu0 0.0
  %2634 = vmatprep.subr.mxu0 0.0
  %2635 = vmatpush1.xpose.msra.mxu0 0.0
  %2636 = vmatprep.subr.mxu0 0.0
  %2637 = vmatpush1.xpose.msra.mxu0 0.0
  %2638 = vmatprep.subr.mxu0 0.0
  %2639 = vmatpush1.xpose.msra.mxu0 0.0
  %2640 = vmatprep.subr.mxu0 0.0
  %2641 = vmatpush1.xpose.msra.mxu0 0.0
  %2642 = vmatprep.subr.mxu0 0.0
  %2643 = vmatpush1.xpose.msra.mxu0 0.0
  %2644 = vmatprep.subr.mxu0 0.0
  %2645 = vmatpush1.xpose.msra.mxu0 0.0
  %2646 = vmatprep.subr.mxu0 0.0
  %2647 = vmatpush1.xpose.msra.mxu0 0.0
  %2648 = vmatprep.subr.mxu0 0.0
  %2649 = vmatpush1.xpose.msra.mxu0 0.0
  %2650 = vmatprep.subr.mxu0 0.0
  %2651 = vmatpush1.xpose.msra.mxu0 0.0
  %2652 = vmatprep.subr.mxu0 0.0
  %2653 = vmatpush1.xpose.msra.mxu0 0.0
  %2654 = vmatprep.subr.mxu0 0.0
  %2655 = vmatpush1.xpose.msra.mxu0 0.0
  %2656 = vmatprep.subr.mxu0 0.0
  %2657 = vmatpush1.xpose.msra.mxu0 0.0
  %2658 = vmatprep.subr.mxu0 0.0
  %2659 = vmatpush1.xpose.msra.mxu0 0.0
  %2660 = vmatprep.subr.mxu0 0.0
  %2661 = vmatpush1.xpose.msra.mxu0 0.0
  %2662 = vmatprep.subr.mxu0 0.0
  %2663 = vmatpush1.xpose.msra.mxu0 0.0
  %2664 = vmatprep.subr.mxu0 0.0
  %2665 = vmatpush1.xpose.msra.mxu0 0.0
  %2666 = vmatprep.subr.mxu0 0.0
  %2667 = vmatpush1.xpose.msra.mxu0 0.0
  %2668 = vmatprep.subr.mxu0 0.0
  %2669 = vmatpush1.xpose.msra.mxu0 0.0
  %2670 = vmatprep.subr.mxu0 0.0
  %2671 = vmatpush1.xpose.msra.mxu0 0.0
  %2672 = vmatprep.subr.mxu0 0.0
  %2673 = vmatpush1.xpose.msra.mxu0 0.0
  %2674 = vmatprep.subr.mxu0 0.0
  %2675 = vmatpush1.xpose.msra.mxu0 0.0
  %2676 = vmatprep.subr.mxu0 0.0
  %2677 = vmatpush1.xpose.msra.mxu0 0.0
  %2678 = vmatprep.subr.mxu0 0.0
  %2679 = vmatpush1.xpose.msra.mxu0 0.0
  %2680 = vmatprep.subr.mxu0 0.0
  %2681 = vmatpush1.xpose.msra.mxu0 0.0
  %2682 = vmatprep.subr.mxu0 0.0
  %2683 = vmatpush1.xpose.msra.mxu0 0.0
  %2684 = vmatprep.subr.mxu0 0.0
  %2685 = vmatpush1.xpose.msra.mxu0 0.0
  %2686 = vmatprep.subr.mxu0 0.0
  %2687 = vmatpush1.xpose.msra.mxu0 0.0
  %2688 = vmatprep.mubr.f32.mxu0 0.0
  %2689 = vmatmul.mubr.f32.gmra.mrb[0].mxu0 %v2616
  %v2690 = vpop.f32.mrb[0].mxu0
  %v2691 = vadd.f32 0.0, %v2690
  %v2692 = vpop.f32.mrb[0].mxu0
  %2693 = vmatprep.mubr.f32.mxu0 0.0
  %2694 = vmatmul.mubr.f32.gmra.mrb[0].mxu0 %v2618
  %v2695 = vpop.f32.mrb[0].mxu0
  %v2696 = vadd.f32 0.0, %v2695
  %v2697 = vpop.f32.mrb[0].mxu0
  %2698 = vdwg.mxu0
  %v2699 = vmul.f32 %v2691, 2.828427
  %v2700 = vmul.f32 %v2696, 2.828427
  %v2701 = vadd.f32 %v2699, %v148
  %v2702 = vadd.f32 %v2700, %v149
  %v2703 = vsel %vm334, %v2701, -inf
  %2704 = vmax.xlane.f32.xlu0 %v2703
  %v2705 = vpop.xlane.xlu0 %2704
  %v2706 = vsel %vm334, %v2702, -inf
  %2707 = vmax.xlane.f32.xlu0 %v2706
  %v2708 = vpop.xlane.xlu0 %2707
  %v2709 = vsub.f32 %v2701, %v2705
  %v2710 = vsub.f32 %v2702, %v2708
  %v2711 = vmul.f32 %v2709, 1.442695
  %v2712 = vpow.pop %v2711
  %v2713 = vmul.f32 %v2710, 1.442695
  %v2714 = vpow.pop %v2713
  %v2715 = vsel %vm334, %v2712, 0.0
  %2716 = vadd.xlane.f32.xlu0 %v2715
  %v2717 = vpop.xlane.xlu0 %2716
  %v2718 = vsel %vm334, %v2714, 0.0
  %2719 = vadd.xlane.f32.xlu0 %v2718
  %v2720 = vpop.xlane.xlu0 %2719
  %v2721 = vrcp.pop %v2717
  %v2722 = vrcp.pop %v2720
  %v2723 = vmul.f32 %v2712, %v2721
  %v2724 = vmul.f32 %v2714, %v2722
  %2725 = vrot.lane.b32.xlu0 %v1745, 40
  %v2726 = vpop.permute.xlu0 %2725
  %2727 = vrot.lane.b32.xlu0 %v1750, 40
  %v2728 = vpop.permute.xlu0 %2727
  %v2732 = vsel %vm334, %v2723, 0
  %v2735 = vsel %vm334, %v2724, 0
  %2737 = vmatprep.subr.mxu0 0.0
  %2738 = vmatpush1.msra.mxu0 %v2726
  %2739 = vmatprep.subr.mxu0 0.0
  %2740 = vmatpush1.msra.mxu0 %v2728
  %2741 = vmatprep.subr.mxu0 0.0
  %2742 = vmatpush1.msra.mxu0 0.0
  %2743 = vmatprep.subr.mxu0 0.0
  %2744 = vmatpush1.msra.mxu0 0.0
  %2745 = vmatprep.subr.mxu0 0.0
  %2746 = vmatpush1.msra.mxu0 0.0
  %2747 = vmatprep.subr.mxu0 0.0
  %2748 = vmatpush1.msra.mxu0 0.0
  %2749 = vmatprep.subr.mxu0 0.0
  %2750 = vmatpush1.msra.mxu0 0.0
  %2751 = vmatprep.subr.mxu0 0.0
  %2752 = vmatpush1.msra.mxu0 0.0
  %2753 = vmatprep.subr.mxu0 0.0
  %2754 = vmatpush1.msra.mxu0 0.0
  %2755 = vmatprep.subr.mxu0 0.0
  %2756 = vmatpush1.msra.mxu0 0.0
  %2757 = vmatprep.subr.mxu0 0.0
  %2758 = vmatpush1.msra.mxu0 0.0
  %2759 = vmatprep.subr.mxu0 0.0
  %2760 = vmatpush1.msra.mxu0 0.0
  %2761 = vmatprep.subr.mxu0 0.0
  %2762 = vmatpush1.msra.mxu0 0.0
  %2763 = vmatprep.subr.mxu0 0.0
  %2764 = vmatpush1.msra.mxu0 0.0
  %2765 = vmatprep.subr.mxu0 0.0
  %2766 = vmatpush1.msra.mxu0 0.0
  %2767 = vmatprep.subr.mxu0 0.0
  %2768 = vmatpush1.msra.mxu0 0.0
  %2769 = vmatprep.subr.mxu0 0.0
  %2770 = vmatpush1.msra.mxu0 0.0
  %2771 = vmatprep.subr.mxu0 0.0
  %2772 = vmatpush1.msra.mxu0 0.0
  %2773 = vmatprep.subr.mxu0 0.0
  %2774 = vmatpush1.msra.mxu0 0.0
  %2775 = vmatprep.subr.mxu0 0.0
  %2776 = vmatpush1.msra.mxu0 0.0
  %2777 = vmatprep.subr.mxu0 0.0
  %2778 = vmatpush1.msra.mxu0 0.0
  %2779 = vmatprep.subr.mxu0 0.0
  %2780 = vmatpush1.msra.mxu0 0.0
  %2781 = vmatprep.subr.mxu0 0.0
  %2782 = vmatpush1.msra.mxu0 0.0
  %2783 = vmatprep.subr.mxu0 0.0
  %2784 = vmatpush1.msra.mxu0 0.0
  %2785 = vmatprep.subr.mxu0 0.0
  %2786 = vmatpush1.msra.mxu0 0.0
  %2787 = vmatprep.subr.mxu0 0.0
  %2788 = vmatpush1.msra.mxu0 0.0
  %2789 = vmatprep.subr.mxu0 0.0
  %2790 = vmatpush1.msra.mxu0 0.0
  %2791 = vmatprep.subr.mxu0 0.0
  %2792 = vmatpush1.msra.mxu0 0.0
  %2793 = vmatprep.subr.mxu0 0.0
  %2794 = vmatpush1.msra.mxu0 0.0
  %2795 = vmatprep.subr.mxu0 0.0
  %2796 = vmatpush1.msra.mxu0 0.0
  %2797 = vmatprep.subr.mxu0 0.0
  %2798 = vmatpush1.msra.mxu0 0.0
  %2799 = vmatprep.subr.mxu0 0.0
  %2800 = vmatpush1.msra.mxu0 0.0
  %2801 = vmatprep.mubr.f32.mxu0 0.0
  %2802 = vmatmul.mubr.f32.gmra.mrb[0].mxu0 %v2732
  %v2803 = vpop.f32.mrb[0].mxu0
  %v2804 = vadd.f32 0.0, %v2803
  %v2805 = vpop.f32.mrb[0].mxu0
  %2806 = vmatprep.mubr.f32.mxu0 0.0
  %2807 = vmatmul.mubr.f32.gmra.mrb[0].mxu0 %v2735
  %v2808 = vpop.f32.mrb[0].mxu0
  %v2809 = vadd.f32 0.0, %v2808
  %v2810 = vpop.f32.mrb[0].mxu0
  %2811 = vdwg.mxu0
  %v2813 = vsel %vm246, %v2804, 0
  %v2816 = vsel %vm246, %v2809, 0
  %2818 = vmatprep.subr.mxu0 0.0
  %2819 = vmatpush1.msra.mxu0 %v1664
  %2820 = vmatprep.subr.mxu0 0.0
  %2821 = vmatpush1.msra.mxu0 0.0
  %2822 = vmatprep.subr.mxu0 0.0
  %2823 = vmatpush1.msra.mxu0 0.0
  %2824 = vmatprep.subr.mxu0 0.0
  %2825 = vmatpush1.msra.mxu0 0.0
  %2826 = vmatprep.subr.mxu0 0.0
  %2827 = vmatpush1.msra.mxu0 0.0
  %2828 = vmatprep.subr.mxu0 0.0
  %2829 = vmatpush1.msra.mxu0 0.0
  %2830 = vmatprep.subr.mxu0 0.0
  %2831 = vmatpush1.msra.mxu0 0.0
  %2832 = vmatprep.subr.mxu0 0.0
  %2833 = vmatpush1.msra.mxu0 0.0
  %2834 = vmatprep.subr.mxu0 0.0
  %2835 = vmatpush1.msra.mxu0 0.0
  %2836 = vmatprep.subr.mxu0 0.0
  %2837 = vmatpush1.msra.mxu0 0.0
  %2838 = vmatprep.subr.mxu0 0.0
  %2839 = vmatpush1.msra.mxu0 0.0
  %2840 = vmatprep.subr.mxu0 0.0
  %2841 = vmatpush1.msra.mxu0 0.0
  %2842 = vmatprep.subr.mxu0 0.0
  %2843 = vmatpush1.msra.mxu0 0.0
  %2844 = vmatprep.subr.mxu0 0.0
  %2845 = vmatpush1.msra.mxu0 0.0
  %2846 = vmatprep.subr.mxu0 0.0
  %2847 = vmatpush1.msra.mxu0 0.0
  %2848 = vmatprep.subr.mxu0 0.0
  %2849 = vmatpush1.msra.mxu0 0.0
  %2850 = vmatprep.subr.mxu0 0.0
  %2851 = vmatpush1.msra.mxu0 0.0
  %2852 = vmatprep.subr.mxu0 0.0
  %2853 = vmatpush1.msra.mxu0 0.0
  %2854 = vmatprep.subr.mxu0 0.0
  %2855 = vmatpush1.msra.mxu0 0.0
  %2856 = vmatprep.subr.mxu0 0.0
  %2857 = vmatpush1.msra.mxu0 0.0
  %2858 = vmatprep.subr.mxu0 0.0
  %2859 = vmatpush1.msra.mxu0 0.0
  %2860 = vmatprep.subr.mxu0 0.0
  %2861 = vmatpush1.msra.mxu0 0.0
  %2862 = vmatprep.subr.mxu0 0.0
  %2863 = vmatpush1.msra.mxu0 0.0
  %2864 = vmatprep.subr.mxu0 0.0
  %2865 = vmatpush1.msra.mxu0 0.0
  %2866 = vmatprep.subr.mxu0 0.0
  %2867 = vmatpush1.msra.mxu0 0.0
  %2868 = vmatprep.subr.mxu0 0.0
  %2869 = vmatpush1.msra.mxu0 0.0
  %2870 = vmatprep.subr.mxu0 0.0
  %2871 = vmatpush1.msra.mxu0 0.0
  %2872 = vmatprep.subr.mxu0 0.0
  %2873 = vmatpush1.msra.mxu0 0.0
  %2874 = vmatprep.subr.mxu0 0.0
  %2875 = vmatpush1.msra.mxu0 0.0
  %2876 = vmatprep.subr.mxu0 0.0
  %2877 = vmatpush1.msra.mxu0 0.0
  %2878 = vmatprep.subr.mxu0 0.0
  %2879 = vmatpush1.msra.mxu0 0.0
  %2880 = vmatprep.subr.mxu0 0.0
  %2881 = vmatpush1.msra.mxu0 0.0
  %2882 = vmatprep.mubr.f32.mxu0 0.0
  %2883 = vmatmul.mubr.f32.gmra.mrb[0].mxu0 %v2813
  %v2884 = vpop.f32.mrb[0].mxu0
  %v2885 = vadd.f32 0.0, %v2884
  %v2886 = vpop.f32.mrb[0].mxu0
  %2887 = vmatprep.mubr.f32.mxu0 0.0
  %2888 = vmatmul.mubr.f32.gmra.mrb[0].mxu0 %v2816
  %v2889 = vpop.f32.mrb[0].mxu0
  %v2890 = vadd.f32 0.0, %v2889
  %v2891 = vpop.f32.mrb[0].mxu0
  %2892 = vdwg.mxu0
  %v2893 = vadd.f32 %v2606, %v2885
  %v2894 = vadd.f32 %v2607, %v2890
  %v2895 = vlaneseq
  %v2896 = vshrl.u32 %v2895, 7
  %v2897 = vsub.s32 0, %v2896
  %v2898 = vrot.slane %v1666, %v2897
  %v2899 = vadd.f32 %v2893, %v2898
  %v2900 = vadd.f32 %v2894, %v2898
  %v2901 = vadd.f32 %v1658, %v2899
  %v2902 = vadd.f32 %v1659, %v2900
  %v2903 = vsel %vm66, %v2901, 0.0
  %2904 = vadd.xlane.f32.xlu0 %v2903
  %v2905 = vpop.xlane.xlu0 %2904
  %v2906 = vsel %vm66, %v2902, 0.0
  %2907 = vadd.xlane.f32.xlu0 %v2906
  %v2908 = vpop.xlane.xlu0 %2907
  %v2909 = vmul.f32 %v2905, %v1398
  %v2910 = vmul.f32 %v2908, %v1398
  %v2911 = vsub.f32 %v2901, %v2909
  %v2912 = vsub.f32 %v2902, %v2910
  %v2913 = vmul.f32 %v2911, %v2911
  %v2914 = vmul.f32 %v2912, %v2912
  %v2915 = vsel %vm66, %v2913, 0.0
  %2916 = vadd.xlane.f32.xlu0 %v2915
  %v2917 = vpop.xlane.xlu0 %2916
  %v2918 = vsel %vm66, %v2914, 0.0
  %2919 = vadd.xlane.f32.xlu0 %v2918
  %v2920 = vpop.xlane.xlu0 %2919
  %v2921 = vmul.f32 %v2917, %v1398
  %v2922 = vmul.f32 %v2920, %v1398
  %v2923 = vadd.f32 %v2921, 1e-05
  %v2924 = vadd.f32 %v2922, 1e-05
  %v2925 = vrsqrt.pop %v2923
  %v2926 = vrsqrt.pop %v2924
  %v2927 = vmul.f32 %v2911, %v2925
  %v2928 = vmul.f32 %v2912, %v2926
  %v2929 = vlaneseq
  %v2930 = vshrl.u32 %v2929, 7
  %v2931 = vsub.s32 2, %v2930
  %v2932 = vrot.slane %v1666, %v2931
  %v2933 = vmul.f32 %v2927, %v2932
  %v2934 = vmul.f32 %v2928, %v2932
  %v2935 = vlaneseq
  %v2936 = vshrl.u32 %v2935, 7
  %v2937 = vsub.s32 3, %v2936
  %v2938 = vrot.slane %v1666, %v2937
  %v2939 = vadd.f32 %v2933, %v2938
  %v2940 = vadd.f32 %v2934, %v2938
  %s2941 = scalar_lea.vmem %s6, 32
  %v2942 = vld [vmem:[%s2941] sm:$0xff]
  %v2943 = vld [vmem:[%s2941 + $0x8] sm:$0xff]
  %v2944 = vld [vmem:[%s2941 + $0x10] sm:$0xff]
  %v2945 = vld [vmem:[%s2941 + $0x18] sm:$0xff]
  %s2946 = scalar_lea.vmem %s7, 1
  %v2947 = vld [vmem:[%s2946] sm:$0x1]
  %v2949 = vlaneseq
  %v2950 = vshrl.u32 %v2949, 7
  %v2951 = vsub.s32 0, %v2950
  %v2952 = vrot.slane %v2947, %v2951
  %v2955 = vsel %vm66, %v2939, 0
  %v2958 = vsel %vm66, %v2940, 0
  %2960 = vmatprep.subr.mxu0 0.0
  %2961 = vmatpush1.msra.mxu0 %v2942
  %2962 = vmatprep.subr.mxu0 0.0
  %2963 = vmatpush1.msra.mxu0 %v2943
  %2964 = vmatprep.subr.mxu0 0.0
  %2965 = vmatpush1.msra.mxu0 %v2944
  %2966 = vmatprep.subr.mxu0 0.0
  %2967 = vmatpush1.msra.mxu0 %v2945
  %2968 = vmatprep.subr.mxu0 0.0
  %2969 = vmatpush1.msra.mxu0 0.0
  %2970 = vmatprep.subr.mxu0 0.0
  %2971 = vmatpush1.msra.mxu0 0.0
  %2972 = vmatprep.subr.mxu0 0.0
  %2973 = vmatpush1.msra.mxu0 0.0
  %2974 = vmatprep.subr.mxu0 0.0
  %2975 = vmatpush1.msra.mxu0 0.0
  %2976 = vmatprep.subr.mxu0 0.0
  %2977 = vmatpush1.msra.mxu0 0.0
  %2978 = vmatprep.subr.mxu0 0.0
  %2979 = vmatpush1.msra.mxu0 0.0
  %2980 = vmatprep.subr.mxu0 0.0
  %2981 = vmatpush1.msra.mxu0 0.0
  %2982 = vmatprep.subr.mxu0 0.0
  %2983 = vmatpush1.msra.mxu0 0.0
  %2984 = vmatprep.subr.mxu0 0.0
  %2985 = vmatpush1.msra.mxu0 0.0
  %2986 = vmatprep.subr.mxu0 0.0
  %2987 = vmatpush1.msra.mxu0 0.0
  %2988 = vmatprep.subr.mxu0 0.0
  %2989 = vmatpush1.msra.mxu0 0.0
  %2990 = vmatprep.subr.mxu0 0.0
  %2991 = vmatpush1.msra.mxu0 0.0
  %2992 = vmatprep.subr.mxu0 0.0
  %2993 = vmatpush1.msra.mxu0 0.0
  %2994 = vmatprep.subr.mxu0 0.0
  %2995 = vmatpush1.msra.mxu0 0.0
  %2996 = vmatprep.subr.mxu0 0.0
  %2997 = vmatpush1.msra.mxu0 0.0
  %2998 = vmatprep.subr.mxu0 0.0
  %2999 = vmatpush1.msra.mxu0 0.0
  %3000 = vmatprep.subr.mxu0 0.0
  %3001 = vmatpush1.msra.mxu0 0.0
  %3002 = vmatprep.subr.mxu0 0.0
  %3003 = vmatpush1.msra.mxu0 0.0
  %3004 = vmatprep.subr.mxu0 0.0
  %3005 = vmatpush1.msra.mxu0 0.0
  %3006 = vmatprep.subr.mxu0 0.0
  %3007 = vmatpush1.msra.mxu0 0.0
  %3008 = vmatprep.subr.mxu0 0.0
  %3009 = vmatpush1.msra.mxu0 0.0
  %3010 = vmatprep.subr.mxu0 0.0
  %3011 = vmatpush1.msra.mxu0 0.0
  %3012 = vmatprep.subr.mxu0 0.0
  %3013 = vmatpush1.msra.mxu0 0.0
  %3014 = vmatprep.subr.mxu0 0.0
  %3015 = vmatpush1.msra.mxu0 0.0
  %3016 = vmatprep.subr.mxu0 0.0
  %3017 = vmatpush1.msra.mxu0 0.0
  %3018 = vmatprep.subr.mxu0 0.0
  %3019 = vmatpush1.msra.mxu0 0.0
  %3020 = vmatprep.subr.mxu0 0.0
  %3021 = vmatpush1.msra.mxu0 0.0
  %3022 = vmatprep.subr.mxu0 0.0
  %3023 = vmatpush1.msra.mxu0 0.0
  %3024 = vmatprep.mubr.f32.mxu0 0.0
  %3025 = vmatmul.mubr.f32.gmra.mrb[0].mxu0 %v2955
  %v3026 = vpop.f32.mrb[0].mxu0
  %v3027 = vadd.f32 %v2952, %v3026
  %v3028 = vpop.f32.mrb[0].mxu0
  %3029 = vmatprep.mubr.f32.mxu0 0.0
  %3030 = vmatmul.mubr.f32.gmra.mrb[0].mxu0 %v2958
  %v3031 = vpop.f32.mrb[0].mxu0
  %v3032 = vadd.f32 %v2952, %v3031
  %v3033 = vpop.f32.mrb[0].mxu0
  %3034 = vdwg.mxu0
  %v3035 = vmax.f32 %v3027, 0.0
  %v3036 = vmax.f32 %v3032, 0.0
  %s3037 = scalar_lea.vmem %s8, 128
  %v3038 = vld [vmem:[%s3037] sm:$0xff]
  %v3039 = vld [vmem:[%s3037 + $0x8] sm:$0xff]
  %v3040 = vld [vmem:[%s3037 + $0x10] sm:$0xff]
  %v3041 = vld [vmem:[%s3037 + $0x18] sm:$0xff]
  %v3042 = vld [vmem:[%s3037 + $0x20] sm:$0xff]
  %v3043 = vld [vmem:[%s3037 + $0x28] sm:$0xff]
  %v3044 = vld [vmem:[%s3037 + $0x30] sm:$0xff]
  %v3045 = vld [vmem:[%s3037 + $0x38] sm:$0xff]
  %v3046 = vld [vmem:[%s3037 + $0x40] sm:$0xff]
  %v3047 = vld [vmem:[%s3037 + $0x48] sm:$0xff]
  %v3048 = vld [vmem:[%s3037 + $0x50] sm:$0xff]
  %v3049 = vld [vmem:[%s3037 + $0x58] sm:$0xff]
  %v3050 = vld [vmem:[%s3037 + $0x60] sm:$0xff]
  %v3051 = vld [vmem:[%s3037 + $0x68] sm:$0xff]
  %v3052 = vld [vmem:[%s3037 + $0x70] sm:$0xff]
  %v3053 = vld [vmem:[%s3037 + $0x78] sm:$0xff]
  %v3054 = vlaneseq
  %v3055 = vshrl.u32 %v3054, 7
  %v3056 = vsub.s32 1, %v3055
  %v3057 = vrot.slane %v1666, %v3056
  %3058 = vmatprep.subr.mxu0 0.0
  %3059 = vmatpush1.msra.mxu0 %v3038
  %3060 = vmatprep.subr.mxu0 0.0
  %3061 = vmatpush1.msra.mxu0 %v3039
  %3062 = vmatprep.subr.mxu0 0.0
  %3063 = vmatpush1.msra.mxu0 %v3040
  %3064 = vmatprep.subr.mxu0 0.0
  %3065 = vmatpush1.msra.mxu0 %v3041
  %3066 = vmatprep.subr.mxu0 0.0
  %3067 = vmatpush1.msra.mxu0 %v3042
  %3068 = vmatprep.subr.mxu0 0.0
  %3069 = vmatpush1.msra.mxu0 %v3043
  %3070 = vmatprep.subr.mxu0 0.0
  %3071 = vmatpush1.msra.mxu0 %v3044
  %3072 = vmatprep.subr.mxu0 0.0
  %3073 = vmatpush1.msra.mxu0 %v3045
  %3074 = vmatprep.subr.mxu0 0.0
  %3075 = vmatpush1.msra.mxu0 %v3046
  %3076 = vmatprep.subr.mxu0 0.0
  %3077 = vmatpush1.msra.mxu0 %v3047
  %3078 = vmatprep.subr.mxu0 0.0
  %3079 = vmatpush1.msra.mxu0 %v3048
  %3080 = vmatprep.subr.mxu0 0.0
  %3081 = vmatpush1.msra.mxu0 %v3049
  %3082 = vmatprep.subr.mxu0 0.0
  %3083 = vmatpush1.msra.mxu0 %v3050
  %3084 = vmatprep.subr.mxu0 0.0
  %3085 = vmatpush1.msra.mxu0 %v3051
  %3086 = vmatprep.subr.mxu0 0.0
  %3087 = vmatpush1.msra.mxu0 %v3052
  %3088 = vmatprep.subr.mxu0 0.0
  %3089 = vmatpush1.msra.mxu0 %v3053
  %3090 = vmatprep.subr.mxu0 0.0
  %3091 = vmatpush1.msra.mxu0 0.0
  %3092 = vmatprep.subr.mxu0 0.0
  %3093 = vmatpush1.msra.mxu0 0.0
  %3094 = vmatprep.subr.mxu0 0.0
  %3095 = vmatpush1.msra.mxu0 0.0
  %3096 = vmatprep.subr.mxu0 0.0
  %3097 = vmatpush1.msra.mxu0 0.0
  %3098 = vmatprep.subr.mxu0 0.0
  %3099 = vmatpush1.msra.mxu0 0.0
  %3100 = vmatprep.subr.mxu0 0.0
  %3101 = vmatpush1.msra.mxu0 0.0
  %3102 = vmatprep.subr.mxu0 0.0
  %3103 = vmatpush1.msra.mxu0 0.0
  %3104 = vmatprep.subr.mxu0 0.0
  %3105 = vmatpush1.msra.mxu0 0.0
  %3106 = vmatprep.subr.mxu0 0.0
  %3107 = vmatpush1.msra.mxu0 0.0
  %3108 = vmatprep.subr.mxu0 0.0
  %3109 = vmatpush1.msra.mxu0 0.0
  %3110 = vmatprep.subr.mxu0 0.0
  %3111 = vmatpush1.msra.mxu0 0.0
  %3112 = vmatprep.subr.mxu0 0.0
  %3113 = vmatpush1.msra.mxu0 0.0
  %3114 = vmatprep.subr.mxu0 0.0
  %3115 = vmatpush1.msra.mxu0 0.0
  %3116 = vmatprep.subr.mxu0 0.0
  %3117 = vmatpush1.msra.mxu0 0.0
  %3118 = vmatprep.subr.mxu0 0.0
  %3119 = vmatpush1.msra.mxu0 0.0
  %3120 = vmatprep.subr.mxu0 0.0
  %3121 = vmatpush1.msra.mxu0 0.0
  %3122 = vmatprep.mubr.f32.mxu0 0.0
  %3123 = vmatmul.mubr.f32.gmra.mrb[0].mxu0 %v3035
  %v3124 = vpop.f32.mrb[0].mxu0
  %v3125 = vadd.f32 %v3057, %v3124
  %v3126 = vpop.f32.mrb[0].mxu0
  %3127 = vmatprep.mubr.f32.mxu0 0.0
  %3128 = vmatmul.mubr.f32.gmra.mrb[0].mxu0 %v3036
  %v3129 = vpop.f32.mrb[0].mxu0
  %v3130 = vadd.f32 %v3057, %v3129
  %v3131 = vpop.f32.mrb[0].mxu0
  %3132 = vdwg.mxu0
  %v3133 = vadd.f32 %v2939, %v3125
  %v3134 = vadd.f32 %v2940, %v3130
  %v3135 = vsel %vm66, %v3133, 0.0
  %3136 = vadd.xlane.f32.xlu0 %v3135
  %v3137 = vpop.xlane.xlu0 %3136
  %v3138 = vsel %vm66, %v3134, 0.0
  %3139 = vadd.xlane.f32.xlu0 %v3138
  %v3140 = vpop.xlane.xlu0 %3139
  %v3141 = vmul.f32 %v3137, %v1398
  %v3142 = vmul.f32 %v3140, %v1398
  %v3143 = vsub.f32 %v3133, %v3141
  %v3144 = vsub.f32 %v3134, %v3142
  %v3145 = vmul.f32 %v3143, %v3143
  %v3146 = vmul.f32 %v3144, %v3144
  %v3147 = vsel %vm66, %v3145, 0.0
  %3148 = vadd.xlane.f32.xlu0 %v3147
  %v3149 = vpop.xlane.xlu0 %3148
  %v3150 = vsel %vm66, %v3146, 0.0
  %3151 = vadd.xlane.f32.xlu0 %v3150
  %v3152 = vpop.xlane.xlu0 %3151
  %v3153 = vmul.f32 %v3149, %v1398
  %v3154 = vmul.f32 %v3152, %v1398
  %v3155 = vadd.f32 %v3153, 1e-05
  %v3156 = vadd.f32 %v3154, 1e-05
  %v3157 = vrsqrt.pop %v3155
  %v3158 = vrsqrt.pop %v3156
  %v3159 = vmul.f32 %v3143, %v3157
  %v3160 = vmul.f32 %v3144, %v3158
  %v3161 = vlaneseq
  %v3162 = vshrl.u32 %v3161, 7
  %v3163 = vsub.s32 4, %v3162
  %v3164 = vrot.slane %v1666, %v3163
  %v3165 = vmul.f32 %v3159, %v3164
  %v3166 = vmul.f32 %v3160, %v3164
  %v3167 = vlaneseq
  %v3168 = vshrl.u32 %v3167, 7
  %v3169 = vsub.s32 5, %v3168
  %v3170 = vrot.slane %v1666, %v3169
  %v3171 = vadd.f32 %v3165, %v3170
  %v3172 = vadd.f32 %v3166, %v3170
  %v3173 = vld [vmem:[%s10] sm:$0x1]
  %v3174 = vld [vmem:[%s10 + $0x1] sm:$0x1]
  %v3175 = vsel %vm66, %v3171, 0.0
  %3176 = vadd.xlane.f32.xlu0 %v3175
  %v3177 = vpop.xlane.xlu0 %3176
  %v3178 = vsel %vm66, %v3172, 0.0
  %3179 = vadd.xlane.f32.xlu0 %v3178
  %v3180 = vpop.xlane.xlu0 %3179
  %v3181 = vmul.f32 %v3177, %v1398
  %v3182 = vmul.f32 %v3180, %v1398
  %v3183 = vsub.f32 %v3171, %v3181
  %v3184 = vsub.f32 %v3172, %v3182
  %v3185 = vmul.f32 %v3183, %v3183
  %v3186 = vmul.f32 %v3184, %v3184
  %v3187 = vsel %vm66, %v3185, 0.0
  %3188 = vadd.xlane.f32.xlu0 %v3187
  %v3189 = vpop.xlane.xlu0 %3188
  %v3190 = vsel %vm66, %v3186, 0.0
  %3191 = vadd.xlane.f32.xlu0 %v3190
  %v3192 = vpop.xlane.xlu0 %3191
  %v3193 = vmul.f32 %v3189, %v1398
  %v3194 = vmul.f32 %v3192, %v1398
  %v3195 = vadd.f32 %v3193, 1e-05
  %v3196 = vadd.f32 %v3194, 1e-05
  %v3197 = vrsqrt.pop %v3195
  %v3198 = vrsqrt.pop %v3196
  %v3199 = vmul.f32 %v3183, %v3197
  %v3200 = vmul.f32 %v3184, %v3198
  %v3201 = vlaneseq
  %v3202 = vshrl.u32 %v3201, 7
  %v3203 = vsub.s32 0, %v3202
  %v3204 = vrot.slane %v3173, %v3203
  %v3205 = vmul.f32 %v3199, %v3204
  %v3206 = vmul.f32 %v3200, %v3204
  %v3207 = vlaneseq
  %v3208 = vshrl.u32 %v3207, 7
  %v3209 = vsub.s32 0, %v3208
  %v3210 = vrot.slane %v3174, %v3209
  %v3211 = vadd.f32 %v3205, %v3210
  %v3212 = vadd.f32 %v3206, %v3210
  %v3213 = vld [vmem:[%s11] sm:$0xff]
  %v3214 = vld [vmem:[%s11 + $0x8] sm:$0xff]
  %v3215 = vld [vmem:[%s11 + $0x10] sm:$0xff]
  %v3216 = vld [vmem:[%s11 + $0x18] sm:$0xff]
  %v3217 = vld [vmem:[%s12] sm:$0x1]
  %v3219 = vlaneseq
  %v3220 = vshrl.u32 %v3219, 7
  %v3221 = vsub.s32 0, %v3220
  %v3222 = vrot.slane %v3217, %v3221
  %v3225 = vsel %vm66, %v3211, 0
  %v3228 = vsel %vm66, %v3212, 0
  %3230 = vmatprep.subr.mxu0 0.0
  %3231 = vmatpush1.msra.mxu0 %v3213
  %3232 = vmatprep.subr.mxu0 0.0
  %3233 = vmatpush1.msra.mxu0 %v3214
  %3234 = vmatprep.subr.mxu0 0.0
  %3235 = vmatpush1.msra.mxu0 %v3215
  %3236 = vmatprep.subr.mxu0 0.0
  %3237 = vmatpush1.msra.mxu0 %v3216
  %3238 = vmatprep.subr.mxu0 0.0
  %3239 = vmatpush1.msra.mxu0 0.0
  %3240 = vmatprep.subr.mxu0 0.0
  %3241 = vmatpush1.msra.mxu0 0.0
  %3242 = vmatprep.subr.mxu0 0.0
  %3243 = vmatpush1.msra.mxu0 0.0
  %3244 = vmatprep.subr.mxu0 0.0
  %3245 = vmatpush1.msra.mxu0 0.0
  %3246 = vmatprep.subr.mxu0 0.0
  %3247 = vmatpush1.msra.mxu0 0.0
  %3248 = vmatprep.subr.mxu0 0.0
  %3249 = vmatpush1.msra.mxu0 0.0
  %3250 = vmatprep.subr.mxu0 0.0
  %3251 = vmatpush1.msra.mxu0 0.0
  %3252 = vmatprep.subr.mxu0 0.0
  %3253 = vmatpush1.msra.mxu0 0.0
  %3254 = vmatprep.subr.mxu0 0.0
  %3255 = vmatpush1.msra.mxu0 0.0
  %3256 = vmatprep.subr.mxu0 0.0
  %3257 = vmatpush1.msra.mxu0 0.0
  %3258 = vmatprep.subr.mxu0 0.0
  %3259 = vmatpush1.msra.mxu0 0.0
  %3260 = vmatprep.subr.mxu0 0.0
  %3261 = vmatpush1.msra.mxu0 0.0
  %3262 = vmatprep.subr.mxu0 0.0
  %3263 = vmatpush1.msra.mxu0 0.0
  %3264 = vmatprep.subr.mxu0 0.0
  %3265 = vmatpush1.msra.mxu0 0.0
  %3266 = vmatprep.subr.mxu0 0.0
  %3267 = vmatpush1.msra.mxu0 0.0
  %3268 = vmatprep.subr.mxu0 0.0
  %3269 = vmatpush1.msra.mxu0 0.0
  %3270 = vmatprep.subr.mxu0 0.0
  %3271 = vmatpush1.msra.mxu0 0.0
  %3272 = vmatprep.subr.mxu0 0.0
  %3273 = vmatpush1.msra.mxu0 0.0
  %3274 = vmatprep.subr.mxu0 0.0
  %3275 = vmatpush1.msra.mxu0 0.0
  %3276 = vmatprep.subr.mxu0 0.0
  %3277 = vmatpush1.msra.mxu0 0.0
  %3278 = vmatprep.subr.mxu0 0.0
  %3279 = vmatpush1.msra.mxu0 0.0
  %3280 = vmatprep.subr.mxu0 0.0
  %3281 = vmatpush1.msra.mxu0 0.0
  %3282 = vmatprep.subr.mxu0 0.0
  %3283 = vmatpush1.msra.mxu0 0.0
  %3284 = vmatprep.subr.mxu0 0.0
  %3285 = vmatpush1.msra.mxu0 0.0
  %3286 = vmatprep.subr.mxu0 0.0
  %3287 = vmatpush1.msra.mxu0 0.0
  %3288 = vmatprep.subr.mxu0 0.0
  %3289 = vmatpush1.msra.mxu0 0.0
  %3290 = vmatprep.subr.mxu0 0.0
  %3291 = vmatpush1.msra.mxu0 0.0
  %3292 = vmatprep.subr.mxu0 0.0
  %3293 = vmatpush1.msra.mxu0 0.0
  %3294 = vmatprep.mubr.f32.mxu0 0.0
  %3295 = vmatmul.mubr.f32.gmra.mrb[0].mxu0 %v3225
  %v3296 = vpop.f32.mrb[0].mxu0
  %v3297 = vadd.f32 %v3222, %v3296
  %v3298 = vpop.f32.mrb[0].mxu0
  %3299 = vmatprep.mubr.f32.mxu0 0.0
  %3300 = vmatmul.mubr.f32.gmra.mrb[0].mxu0 %v3228
  %v3301 = vpop.f32.mrb[0].mxu0
  %v3302 = vadd.f32 %v3222, %v3301
  %v3303 = vpop.f32.mrb[0].mxu0
  %3304 = vdwg.mxu0
  %3305 = vst [vmem:[%s13] sm:$0xff] %v3297
  %3306 = vst [vmem:[%s13 + $0x8] sm:$0xff] %v3302
  // Predicated region
  $region54: #{gpt_forward.1} parent=0 // pred_check
    _
  $region55: #{gpt_forward.1} parent=0 // pred_check_branch
    %3308 = sbr.rel (0) target = $region57
  $region56: #{gpt_forward.1} parent=0 // pred_region
    _
  $region57: #{gpt_forward.1} parent=0 // pred_fallthru
    _
  // Predicated region
  $region58: #{gpt_forward.1} parent=0 // pred_check
    _
  $region59: #{gpt_forward.1} parent=0 // pred_check_branch
    %3310 = sbr.rel (0) target = $region61
  $region60: #{gpt_forward.1} parent=0 // pred_region
    _
  $region61: #{gpt_forward.1} parent=0 // pred_fallthru
    _

</llo_original>
